<compile_context>
chip_gen: v7x
topology: tpu7x:2x2x1
jax: 0.10.0
libtpu: 0.0.40
codegen_flags: <defaults>
</compile_context>

<pallas_src>
import functools

import jax
import jax.numpy as jnp
from jax.experimental import pallas as pl
from jax.experimental.pallas import tpu as pltpu


# Lanczos g=7, n=9 coefficients.
_LANCZOS_C = (
    0.99999999999980993,
    676.5203681218851,
    -1259.1392167224028,
    771.32342877765313,
    -176.61502916214059,
    12.507343278686905,
    -0.13857109526572012,
    9.9843695780195716e-6,
    1.5056327351493116e-7,
)
_HALF_LOG_2PI = 0.9189385332046727  # 0.5 * log(2*pi)


def _lgamma(z, log_z=None, can_be_small=True):
    """Lanczos log-gamma for z > 0, EUP-lean rational form.

    Per lgamma: 2 logs + 2 divides (plus 1 log for the 0 < z < 0.5 recurrence
    lgamma(z) = lgamma(z+1) - log(z), which is skipped when can_be_small=False
    or reused via `log_z` when the caller already computed log(z)).
    The 2-group rational combination is algebraically identical to the plain
    8-term partial-fraction sum; degree-4 denominators (~zz^4) stay far from
    f32 overflow for any realistic count value.
    """
    c = _LANCZOS_C
    if can_be_small:
        small = z < 0.5
        zz = jnp.where(small, z + 1.0, z)
    else:
        zz = z

    z0 = zz
    z1 = zz + 1.0
    z2 = zz + 2.0
    z3 = zz + 3.0
    z4 = zz + 4.0
    z5 = zz + 5.0
    z6 = zz + 6.0
    z7 = zz + 7.0

    # Group A: poles 0..3 (coeffs c1..c4).
    p01 = z0 * z1
    p23 = z2 * z3
    p12 = z1 * z2
    d_a = p01 * p23
    n_a = (c[1] * (p12 * z3) + c[2] * (z0 * p23)
           + c[3] * (p01 * z3) + c[4] * (p01 * z2))
    # Group B: poles 4..7 (coeffs c5..c8).
    p45 = z4 * z5
    p67 = z6 * z7
    p56 = z5 * z6
    d_b = p45 * p67
    n_b = (c[5] * (p56 * z7) + c[6] * (z4 * p67)
           + c[7] * (p45 * z7) + c[8] * (p45 * z6))

    series = c[0] + n_a / d_a + n_b / d_b

    t = zz + 6.5  # zz + g - 0.5
    lg = _HALF_LOG_2PI + (zz - 0.5) * jnp.log(t) - t + jnp.log(series)

    if can_be_small:
        if log_z is None:
            log_z = jnp.log(z)
        lg = jnp.where(small, lg - log_z, lg)
    return lg


def _zinb_kernel(x_ref, mean_ref, disp_ref, pi_ref, out_ref, *,
                 n_valid, tm, inner, ridge_lambda, need_mask):
    i = pl.program_id(1)

    @pl.when(i == 0)
    def _():
        out_ref[...] = jnp.zeros_like(out_ref)

    eps = 1e-10
    x = x_ref[...]
    mu = mean_ref[...]
    disp = disp_ref[...]
    pi = pi_ref[...]

    # Shared logs (one EUP op each, reused across t2 / zero_nb / lgamma).
    l_d = jnp.log(disp + eps)          # log(disp + eps)
    l_m = jnp.log(mu + eps)            # log(mean + eps)
    l_dm = jnp.log(disp + mu + eps)    # log(disp + mean + eps)

    # t1 = lgamma(disp+eps) + lgamma(x+1) - lgamma(x+disp+eps)
    t1 = (_lgamma(disp + eps, log_z=l_d)
          + _lgamma(x + 1.0, can_be_small=False)
          - _lgamma(x + disp + eps))

    # t2 = (disp+x)*log(1 + mu/(disp+eps)) + x*(log(disp+eps) - log(mean+eps))
    #    = (disp+x)*(l_dm - l_d)          + x*(l_d - l_m)
    t2 = (disp + x) * (l_dm - l_d) + x * (l_d - l_m)
    nb_case = (t1 + t2) - jnp.log(1.0 - pi + eps)

    # zero_nb = (disp/(disp+mean+eps))**disp = exp(disp*(log(disp) - l_dm))
    zero_nb = jnp.exp(disp * (l_d - l_dm))
    zero_case = -jnp.log(pi + (1.0 - pi) * zero_nb + eps)

    result = jnp.where(x <= 1e-8, zero_case, nb_case)
    if ridge_lambda > 0.0:
        result = result + ridge_lambda * (pi * pi)

    if need_mask:
        # Zero contributions from rows past the true row count (tile overhang
        # and over-covered trailing tiles of the two-level grid).
        p = pl.program_id(0)
        row0 = (p * inner + i) * tm
        rows = jax.lax.broadcasted_iota(jnp.int32, result.shape, 0)
        result = jnp.where(rows < (n_valid - row0), result, 0.0)

    # Lane/sublane-dense partial accumulation: fold (tm, D) into (8, D) with
    # tile-aligned static slices (pure VPU adds, no per-step XLU reduce).
    partial = result[0:8, :]
    for r0 in range(8, tm, 8):
        partial = partial + result[r0:r0 + 8, :]
    out_ref[...] += partial


def zinb_loss(x, mean, disp, pi, scale_factor=1.0, ridge_lambda=0.0, *,
              tile_bytes=256 * 1024, num_parallel=2):
    """Pallas ZINB loss: scalar float32 mean over all N*D elements.

    `scale_factor` is accepted for API parity with the PyTorch module, which
    also never uses it inside forward().
    """
    del scale_factor  # unused in the reference forward pass as well
    assert x.shape == mean.shape == disp.shape == pi.shape
    assert x.ndim == 2
    n_valid, d = x.shape

    x = x.astype(jnp.float32)
    mean = mean.astype(jnp.float32)
    disp = disp.astype(jnp.float32)
    pi = pi.astype(jnp.float32)

    # Tiny inputs: pad up to one sublane tile; padded rows are masked in-kernel.
    n = n_valid
    if n < 8:
        pad = 8 - n
        x, mean, disp, pi = [jnp.pad(a, ((0, pad), (0, 0)))
                             for a in (x, mean, disp, pi)]
        n = 8

    # Row tile: largest multiple of 8 rows with ~tile_bytes per input tile.
    tm = max(8, (int(tile_bytes) // (d * 4)) // 8 * 8)
    tm = min(tm, (n // 8) * 8)
    num_tiles = pl.cdiv(n, tm)

    # Leading "parallel" axis (megacore sharding on v7x; harmless elsewhere).
    p_count = max(1, min(int(num_parallel), num_tiles))
    inner = pl.cdiv(num_tiles, p_count)
    need_mask = (p_count * inner * tm) != n_valid

    def in_map(p, i):
        # Clamp over-covered trailing tiles back into range; their rows are
        # fully masked in the kernel so they contribute zero.
        return (jnp.minimum(p * inner + i, num_tiles - 1), 0)

    row_spec = pl.BlockSpec((tm, d), in_map)
    kernel = functools.partial(
        _zinb_kernel,
        n_valid=n_valid, tm=tm, inner=inner,
        ridge_lambda=float(ridge_lambda), need_mask=need_mask)

    partials = pl.pallas_call(
        kernel,
        out_shape=jax.ShapeDtypeStruct((p_count, 8, d), jnp.float32),
        grid_spec=pltpu.PrefetchScalarGridSpec(
            num_scalar_prefetch=0,
            grid=(p_count, inner),
            in_specs=[row_spec, row_spec, row_spec, row_spec],
            out_specs=pl.BlockSpec((None, 8, d), lambda p, i: (p, 0, 0)),
        ),
        compiler_params=pltpu.CompilerParams(
            dimension_semantics=("parallel", "arbitrary"),
            vmem_limit_bytes=32 * 1024 * 1024,
        ),
    )(x, mean, disp, pi)

    return partials.sum() / (n_valid * d)


def _zinb_loss_ref(x, mean, disp, pi, ridge_lambda=0.0):
    """Pure-JAX reference mirroring the PyTorch forward exactly."""
    eps = 1e-10
    t1 = (jax.scipy.special.gammaln(disp + eps)
          + jax.scipy.special.gammaln(x + 1.0)
          - jax.scipy.special.gammaln(x + disp + eps))
    t2 = (disp + x) * jnp.log(1.0 + mean / (disp + eps)) + x * (
        jnp.log(disp + eps) - jnp.log(mean + eps))
    nb_case = t1 + t2 - jnp.log(1.0 - pi + eps)
    zero_nb = jnp.power(disp / (disp + mean + eps), disp)
    zero_case = -jnp.log(pi + (1.0 - pi) * zero_nb + eps)
    result = jnp.where(x <= 1e-8, zero_case, nb_case)
    if ridge_lambda > 0:
        result = result + ridge_lambda * jnp.square(pi)
    return jnp.mean(result)


if __name__ == "__main__":
    def make_inputs(key, n, d):
        k1, k2, k3, k4 = jax.random.split(key, 4)
        # Count-like data with plenty of exact zeros (zero-inflated branch).
        xv = jnp.floor(jax.random.exponential(k1, (n, d), dtype=jnp.float32) * 2.0)
        mv = jax.nn.softplus(jax.random.normal(k2, (n, d), dtype=jnp.float32)) + 0.1
        dv = jax.nn.softplus(jax.random.normal(k3, (n, d), dtype=jnp.float32)) + 0.1
        pv = jax.nn.sigmoid(jax.random.normal(k4, (n, d), dtype=jnp.float32))
        return xv, mv, dv, pv

    key = jax.random.PRNGKey(0)
    ka, kb = jax.random.split(key)

    # Case 1: single-tile fast path (default tiling), no ridge.
    x, mean, disp, pi = make_inputs(ka, 64, 256)
    loss = jax.block_until_ready(zinb_loss(x, mean, disp, pi, scale_factor=1.0))
    ref = jax.block_until_ready(_zinb_loss_ref(x, mean, disp, pi))
    assert jnp.allclose(loss, ref, rtol=1e-3, atol=1e-3), (loss, ref)

    # Case 2: multi-tile grid with the parallel axis, tail-row masking, and the
    # ridge term (a small tile budget forces several row tiles at this size).
    x, mean, disp, pi = make_inputs(kb, 72, 256)
    loss = jax.block_until_ready(
        zinb_loss(x, mean, disp, pi, ridge_lambda=0.1, tile_bytes=16 * 1024))
    ref = jax.block_until_ready(_zinb_loss_ref(x, mean, disp, pi, ridge_lambda=0.1))
    assert jnp.allclose(loss, ref, rtol=1e-3, atol=1e-3), (loss, ref)

    print("KERNEL_OK")
</pallas_src>

<mosaic_0001>
module attributes {stable_mosaic.version = 11 : i64} {
  func.func @_zinb_kernel(%arg0: i32, %arg1: i32, %arg2: memref<64x256xf32, #tpu.memory_space<vmem>>, %arg3: memref<64x256xf32, #tpu.memory_space<vmem>>, %arg4: memref<64x256xf32, #tpu.memory_space<vmem>>, %arg5: memref<64x256xf32, #tpu.memory_space<vmem>>, %arg6: memref<1x8x256xf32, #tpu.memory_space<vmem>>) attributes {dimension_semantics = [#tpu.dimension_semantics<parallel>, #tpu.dimension_semantics<arbitrary>], iteration_bounds = array<i64: 1, 1>, scalar_prefetch = 0 : i64, scratch_operands = 0 : i64, tpu.core_type = #tpu.core_type<tc>, window_params = [{transform_indices = @transform_0, window_bounds = array<i64: 64, 256>}, {transform_indices = @transform_1, window_bounds = array<i64: 64, 256>}, {transform_indices = @transform_2, window_bounds = array<i64: 64, 256>}, {transform_indices = @transform_3, window_bounds = array<i64: 64, 256>}, {transform_indices = @transform_4, window_bounds = array<i64: 1, 8, 256>}]} {
    %c0_i32 = arith.constant 0 : i32
    %0 = arith.cmpi eq, %arg1, %c0_i32 : i32
    %1 = arith.extui %0 : i1 to i32
    %c0_i32_0 = arith.constant 0 : i32
    %2 = arith.cmpi ne, %1, %c0_i32_0 : i32
    scf.if %2 {
      %cst_86 = arith.constant 0.000000e+00 : f32
      %294 = vector.broadcast %cst_86 : f32 to vector<8x256xf32>
      %c0_87 = arith.constant 0 : index
      %c0_88 = arith.constant 0 : index
      %c0_89 = arith.constant 0 : index
      %295 = vector.load %arg6[%c0_87, %c0_88, %c0_89] : memref<1x8x256xf32, #tpu.memory_space<vmem>>, vector<1x8x256xf32>
      %296 = vector.shape_cast %295 : vector<1x8x256xf32> to vector<8x256xf32>
      %297 = vector.shape_cast %294 : vector<8x256xf32> to vector<1x8x256xf32>
      tpu.vector_store %arg6[%c0_87, %c0_88, %c0_89], %297 {strides = array<i32>} : memref<1x8x256xf32, #tpu.memory_space<vmem>>, vector<1x8x256xf32>,
    } else {
    }
    %c0 = arith.constant 0 : index
    %c0_1 = arith.constant 0 : index
    %3 = vector.load %arg2[%c0, %c0_1] : memref<64x256xf32, #tpu.memory_space<vmem>>, vector<64x256xf32>
    %c0_2 = arith.constant 0 : index
    %c0_3 = arith.constant 0 : index
    %4 = vector.load %arg3[%c0_2, %c0_3] : memref<64x256xf32, #tpu.memory_space<vmem>>, vector<64x256xf32>
    %c0_4 = arith.constant 0 : index
    %c0_5 = arith.constant 0 : index
    %5 = vector.load %arg4[%c0_4, %c0_5] : memref<64x256xf32, #tpu.memory_space<vmem>>, vector<64x256xf32>
    %c0_6 = arith.constant 0 : index
    %c0_7 = arith.constant 0 : index
    %6 = vector.load %arg5[%c0_6, %c0_7] : memref<64x256xf32, #tpu.memory_space<vmem>>, vector<64x256xf32>
    %cst = arith.constant 1.000000e-10 : f32
    %7 = vector.broadcast %cst : f32 to vector<64x256xf32>
    %8 = arith.addf %5, %7 : vector<64x256xf32>
    %9 = math.log %8 : vector<64x256xf32>
    %cst_8 = arith.constant 1.000000e-10 : f32
    %10 = vector.broadcast %cst_8 : f32 to vector<64x256xf32>
    %11 = arith.addf %4, %10 : vector<64x256xf32>
    %12 = math.log %11 : vector<64x256xf32>
    %13 = arith.addf %5, %4 : vector<64x256xf32>
    %cst_9 = arith.constant 1.000000e-10 : f32
    %14 = vector.broadcast %cst_9 : f32 to vector<64x256xf32>
    %15 = arith.addf %13, %14 : vector<64x256xf32>
    %16 = math.log %15 : vector<64x256xf32>
    %cst_10 = arith.constant 1.000000e-10 : f32
    %17 = vector.broadcast %cst_10 : f32 to vector<64x256xf32>
    %18 = arith.addf %5, %17 : vector<64x256xf32>
    %cst_11 = arith.constant 5.000000e-01 : f32
    %19 = vector.broadcast %cst_11 : f32 to vector<64x256xf32>
    %20 = arith.cmpf olt, %18, %19 : vector<64x256xf32>
    %cst_12 = arith.constant 1.000000e+00 : f32
    %21 = vector.broadcast %cst_12 : f32 to vector<64x256xf32>
    %22 = arith.addf %18, %21 : vector<64x256xf32>
    %23 = arith.select %20, %22, %18 : vector<64x256xi1>, vector<64x256xf32>
    %cst_13 = arith.constant 1.000000e+00 : f32
    %24 = vector.broadcast %cst_13 : f32 to vector<64x256xf32>
    %25 = arith.addf %23, %24 : vector<64x256xf32>
    %cst_14 = arith.constant 2.000000e+00 : f32
    %26 = vector.broadcast %cst_14 : f32 to vector<64x256xf32>
    %27 = arith.addf %23, %26 : vector<64x256xf32>
    %cst_15 = arith.constant 3.000000e+00 : f32
    %28 = vector.broadcast %cst_15 : f32 to vector<64x256xf32>
    %29 = arith.addf %23, %28 : vector<64x256xf32>
    %cst_16 = arith.constant 4.000000e+00 : f32
    %30 = vector.broadcast %cst_16 : f32 to vector<64x256xf32>
    %31 = arith.addf %23, %30 : vector<64x256xf32>
    %cst_17 = arith.constant 5.000000e+00 : f32
    %32 = vector.broadcast %cst_17 : f32 to vector<64x256xf32>
    %33 = arith.addf %23, %32 : vector<64x256xf32>
    %cst_18 = arith.constant 6.000000e+00 : f32
    %34 = vector.broadcast %cst_18 : f32 to vector<64x256xf32>
    %35 = arith.addf %23, %34 : vector<64x256xf32>
    %cst_19 = arith.constant 7.000000e+00 : f32
    %36 = vector.broadcast %cst_19 : f32 to vector<64x256xf32>
    %37 = arith.addf %23, %36 : vector<64x256xf32>
    %38 = arith.mulf %23, %25 : vector<64x256xf32>
    %39 = arith.mulf %27, %29 : vector<64x256xf32>
    %40 = arith.mulf %25, %27 : vector<64x256xf32>
    %41 = arith.mulf %38, %39 : vector<64x256xf32>
    %42 = arith.mulf %40, %29 : vector<64x256xf32>
    %cst_20 = arith.constant 676.520386 : f32
    %43 = vector.broadcast %cst_20 : f32 to vector<64x256xf32>
    %44 = arith.mulf %43, %42 : vector<64x256xf32>
    %45 = arith.mulf %23, %39 : vector<64x256xf32>
    %cst_21 = arith.constant -1259.13916 : f32
    %46 = vector.broadcast %cst_21 : f32 to vector<64x256xf32>
    %47 = arith.mulf %46, %45 : vector<64x256xf32>
    %48 = arith.addf %44, %47 : vector<64x256xf32>
    %49 = arith.mulf %38, %29 : vector<64x256xf32>
    %cst_22 = arith.constant 771.323425 : f32
    %50 = vector.broadcast %cst_22 : f32 to vector<64x256xf32>
    %51 = arith.mulf %50, %49 : vector<64x256xf32>
    %52 = arith.addf %48, %51 : vector<64x256xf32>
    %53 = arith.mulf %38, %27 : vector<64x256xf32>
    %cst_23 = arith.constant -176.615036 : f32
    %54 = vector.broadcast %cst_23 : f32 to vector<64x256xf32>
    %55 = arith.mulf %54, %53 : vector<64x256xf32>
    %56 = arith.addf %52, %55 : vector<64x256xf32>
    %57 = arith.mulf %31, %33 : vector<64x256xf32>
    %58 = arith.mulf %35, %37 : vector<64x256xf32>
    %59 = arith.mulf %33, %35 : vector<64x256xf32>
    %60 = arith.mulf %57, %58 : vector<64x256xf32>
    %61 = arith.mulf %59, %37 : vector<64x256xf32>
    %cst_24 = arith.constant 12.5073433 : f32
    %62 = vector.broadcast %cst_24 : f32 to vector<64x256xf32>
    %63 = arith.mulf %62, %61 : vector<64x256xf32>
    %64 = arith.mulf %31, %58 : vector<64x256xf32>
    %cst_25 = arith.constant -0.138571098 : f32
    %65 = vector.broadcast %cst_25 : f32 to vector<64x256xf32>
    %66 = arith.mulf %65, %64 : vector<64x256xf32>
    %67 = arith.addf %63, %66 : vector<64x256xf32>
    %68 = arith.mulf %57, %37 : vector<64x256xf32>
    %cst_26 = arith.constant 9.98436917E-6 : f32
    %69 = vector.broadcast %cst_26 : f32 to vector<64x256xf32>
    %70 = arith.mulf %69, %68 : vector<64x256xf32>
    %71 = arith.addf %67, %70 : vector<64x256xf32>
    %72 = arith.mulf %57, %35 : vector<64x256xf32>
    %cst_27 = arith.constant 1.50563267E-7 : f32
    %73 = vector.broadcast %cst_27 : f32 to vector<64x256xf32>
    %74 = arith.mulf %73, %72 : vector<64x256xf32>
    %75 = arith.addf %71, %74 : vector<64x256xf32>
    %76 = arith.divf %56, %41 : vector<64x256xf32>
    %cst_28 = arith.constant 1.000000e+00 : f32
    %77 = vector.broadcast %cst_28 : f32 to vector<64x256xf32>
    %78 = arith.addf %77, %76 : vector<64x256xf32>
    %79 = arith.divf %75, %60 : vector<64x256xf32>
    %80 = arith.addf %78, %79 : vector<64x256xf32>
    %cst_29 = arith.constant 6.500000e+00 : f32
    %81 = vector.broadcast %cst_29 : f32 to vector<64x256xf32>
    %82 = arith.addf %23, %81 : vector<64x256xf32>
    %cst_30 = arith.constant 5.000000e-01 : f32
    %83 = vector.broadcast %cst_30 : f32 to vector<64x256xf32>
    %84 = arith.subf %23, %83 : vector<64x256xf32>
    %85 = math.log %82 : vector<64x256xf32>
    %86 = arith.mulf %84, %85 : vector<64x256xf32>
    %cst_31 = arith.constant 0.918938517 : f32
    %87 = vector.broadcast %cst_31 : f32 to vector<64x256xf32>
    %88 = arith.addf %87, %86 : vector<64x256xf32>
    %89 = arith.subf %88, %82 : vector<64x256xf32>
    %90 = math.log %80 : vector<64x256xf32>
    %91 = arith.addf %89, %90 : vector<64x256xf32>
    %92 = arith.subf %91, %9 : vector<64x256xf32>
    %93 = arith.select %20, %92, %91 : vector<64x256xi1>, vector<64x256xf32>
    %cst_32 = arith.constant 1.000000e+00 : f32
    %94 = vector.broadcast %cst_32 : f32 to vector<64x256xf32>
    %95 = arith.addf %3, %94 : vector<64x256xf32>
    %cst_33 = arith.constant 1.000000e+00 : f32
    %96 = vector.broadcast %cst_33 : f32 to vector<64x256xf32>
    %97 = arith.addf %95, %96 : vector<64x256xf32>
    %cst_34 = arith.constant 2.000000e+00 : f32
    %98 = vector.broadcast %cst_34 : f32 to vector<64x256xf32>
    %99 = arith.addf %95, %98 : vector<64x256xf32>
    %cst_35 = arith.constant 3.000000e+00 : f32
    %100 = vector.broadcast %cst_35 : f32 to vector<64x256xf32>
    %101 = arith.addf %95, %100 : vector<64x256xf32>
    %cst_36 = arith.constant 4.000000e+00 : f32
    %102 = vector.broadcast %cst_36 : f32 to vector<64x256xf32>
    %103 = arith.addf %95, %102 : vector<64x256xf32>
    %cst_37 = arith.constant 5.000000e+00 : f32
    %104 = vector.broadcast %cst_37 : f32 to vector<64x256xf32>
    %105 = arith.addf %95, %104 : vector<64x256xf32>
    %cst_38 = arith.constant 6.000000e+00 : f32
    %106 = vector.broadcast %cst_38 : f32 to vector<64x256xf32>
    %107 = arith.addf %95, %106 : vector<64x256xf32>
    %cst_39 = arith.constant 7.000000e+00 : f32
    %108 = vector.broadcast %cst_39 : f32 to vector<64x256xf32>
    %109 = arith.addf %95, %108 : vector<64x256xf32>
    %110 = arith.mulf %95, %97 : vector<64x256xf32>
    %111 = arith.mulf %99, %101 : vector<64x256xf32>
    %112 = arith.mulf %97, %99 : vector<64x256xf32>
    %113 = arith.mulf %110, %111 : vector<64x256xf32>
    %114 = arith.mulf %112, %101 : vector<64x256xf32>
    %cst_40 = arith.constant 676.520386 : f32
    %115 = vector.broadcast %cst_40 : f32 to vector<64x256xf32>
    %116 = arith.mulf %115, %114 : vector<64x256xf32>
    %117 = arith.mulf %95, %111 : vector<64x256xf32>
    %cst_41 = arith.constant -1259.13916 : f32
    %118 = vector.broadcast %cst_41 : f32 to vector<64x256xf32>
    %119 = arith.mulf %118, %117 : vector<64x256xf32>
    %120 = arith.addf %116, %119 : vector<64x256xf32>
    %121 = arith.mulf %110, %101 : vector<64x256xf32>
    %cst_42 = arith.constant 771.323425 : f32
    %122 = vector.broadcast %cst_42 : f32 to vector<64x256xf32>
    %123 = arith.mulf %122, %121 : vector<64x256xf32>
    %124 = arith.addf %120, %123 : vector<64x256xf32>
    %125 = arith.mulf %110, %99 : vector<64x256xf32>
    %cst_43 = arith.constant -176.615036 : f32
    %126 = vector.broadcast %cst_43 : f32 to vector<64x256xf32>
    %127 = arith.mulf %126, %125 : vector<64x256xf32>
    %128 = arith.addf %124, %127 : vector<64x256xf32>
    %129 = arith.mulf %103, %105 : vector<64x256xf32>
    %130 = arith.mulf %107, %109 : vector<64x256xf32>
    %131 = arith.mulf %105, %107 : vector<64x256xf32>
    %132 = arith.mulf %129, %130 : vector<64x256xf32>
    %133 = arith.mulf %131, %109 : vector<64x256xf32>
    %cst_44 = arith.constant 12.5073433 : f32
    %134 = vector.broadcast %cst_44 : f32 to vector<64x256xf32>
    %135 = arith.mulf %134, %133 : vector<64x256xf32>
    %136 = arith.mulf %103, %130 : vector<64x256xf32>
    %cst_45 = arith.constant -0.138571098 : f32
    %137 = vector.broadcast %cst_45 : f32 to vector<64x256xf32>
    %138 = arith.mulf %137, %136 : vector<64x256xf32>
    %139 = arith.addf %135, %138 : vector<64x256xf32>
    %140 = arith.mulf %129, %109 : vector<64x256xf32>
    %cst_46 = arith.constant 9.98436917E-6 : f32
    %141 = vector.broadcast %cst_46 : f32 to vector<64x256xf32>
    %142 = arith.mulf %141, %140 : vector<64x256xf32>
    %143 = arith.addf %139, %142 : vector<64x256xf32>
    %144 = arith.mulf %129, %107 : vector<64x256xf32>
    %cst_47 = arith.constant 1.50563267E-7 : f32
    %145 = vector.broadcast %cst_47 : f32 to vector<64x256xf32>
    %146 = arith.mulf %145, %144 : vector<64x256xf32>
    %147 = arith.addf %143, %146 : vector<64x256xf32>
    %148 = arith.divf %128, %113 : vector<64x256xf32>
    %cst_48 = arith.constant 1.000000e+00 : f32
    %149 = vector.broadcast %cst_48 : f32 to vector<64x256xf32>
    %150 = arith.addf %149, %148 : vector<64x256xf32>
    %151 = arith.divf %147, %132 : vector<64x256xf32>
    %152 = arith.addf %150, %151 : vector<64x256xf32>
    %cst_49 = arith.constant 6.500000e+00 : f32
    %153 = vector.broadcast %cst_49 : f32 to vector<64x256xf32>
    %154 = arith.addf %95, %153 : vector<64x256xf32>
    %cst_50 = arith.constant 5.000000e-01 : f32
    %155 = vector.broadcast %cst_50 : f32 to vector<64x256xf32>
    %156 = arith.subf %95, %155 : vector<64x256xf32>
    %157 = math.log %154 : vector<64x256xf32>
    %158 = arith.mulf %156, %157 : vector<64x256xf32>
    %cst_51 = arith.constant 0.918938517 : f32
    %159 = vector.broadcast %cst_51 : f32 to vector<64x256xf32>
    %160 = arith.addf %159, %158 : vector<64x256xf32>
    %161 = arith.subf %160, %154 : vector<64x256xf32>
    %162 = math.log %152 : vector<64x256xf32>
    %163 = arith.addf %161, %162 : vector<64x256xf32>
    %164 = arith.addf %93, %163 : vector<64x256xf32>
    %165 = arith.addf %3, %5 : vector<64x256xf32>
    %cst_52 = arith.constant 1.000000e-10 : f32
    %166 = vector.broadcast %cst_52 : f32 to vector<64x256xf32>
    %167 = arith.addf %165, %166 : vector<64x256xf32>
    %cst_53 = arith.constant 5.000000e-01 : f32
    %168 = vector.broadcast %cst_53 : f32 to vector<64x256xf32>
    %169 = arith.cmpf olt, %167, %168 : vector<64x256xf32>
    %cst_54 = arith.constant 1.000000e+00 : f32
    %170 = vector.broadcast %cst_54 : f32 to vector<64x256xf32>
    %171 = arith.addf %167, %170 : vector<64x256xf32>
    %172 = arith.select %169, %171, %167 : vector<64x256xi1>, vector<64x256xf32>
    %cst_55 = arith.constant 1.000000e+00 : f32
    %173 = vector.broadcast %cst_55 : f32 to vector<64x256xf32>
    %174 = arith.addf %172, %173 : vector<64x256xf32>
    %cst_56 = arith.constant 2.000000e+00 : f32
    %175 = vector.broadcast %cst_56 : f32 to vector<64x256xf32>
    %176 = arith.addf %172, %175 : vector<64x256xf32>
    %cst_57 = arith.constant 3.000000e+00 : f32
    %177 = vector.broadcast %cst_57 : f32 to vector<64x256xf32>
    %178 = arith.addf %172, %177 : vector<64x256xf32>
    %cst_58 = arith.constant 4.000000e+00 : f32
    %179 = vector.broadcast %cst_58 : f32 to vector<64x256xf32>
    %180 = arith.addf %172, %179 : vector<64x256xf32>
    %cst_59 = arith.constant 5.000000e+00 : f32
    %181 = vector.broadcast %cst_59 : f32 to vector<64x256xf32>
    %182 = arith.addf %172, %181 : vector<64x256xf32>
    %cst_60 = arith.constant 6.000000e+00 : f32
    %183 = vector.broadcast %cst_60 : f32 to vector<64x256xf32>
    %184 = arith.addf %172, %183 : vector<64x256xf32>
    %cst_61 = arith.constant 7.000000e+00 : f32
    %185 = vector.broadcast %cst_61 : f32 to vector<64x256xf32>
    %186 = arith.addf %172, %185 : vector<64x256xf32>
    %187 = arith.mulf %172, %174 : vector<64x256xf32>
    %188 = arith.mulf %176, %178 : vector<64x256xf32>
    %189 = arith.mulf %174, %176 : vector<64x256xf32>
    %190 = arith.mulf %187, %188 : vector<64x256xf32>
    %191 = arith.mulf %189, %178 : vector<64x256xf32>
    %cst_62 = arith.constant 676.520386 : f32
    %192 = vector.broadcast %cst_62 : f32 to vector<64x256xf32>
    %193 = arith.mulf %192, %191 : vector<64x256xf32>
    %194 = arith.mulf %172, %188 : vector<64x256xf32>
    %cst_63 = arith.constant -1259.13916 : f32
    %195 = vector.broadcast %cst_63 : f32 to vector<64x256xf32>
    %196 = arith.mulf %195, %194 : vector<64x256xf32>
    %197 = arith.addf %193, %196 : vector<64x256xf32>
    %198 = arith.mulf %187, %178 : vector<64x256xf32>
    %cst_64 = arith.constant 771.323425 : f32
    %199 = vector.broadcast %cst_64 : f32 to vector<64x256xf32>
    %200 = arith.mulf %199, %198 : vector<64x256xf32>
    %201 = arith.addf %197, %200 : vector<64x256xf32>
    %202 = arith.mulf %187, %176 : vector<64x256xf32>
    %cst_65 = arith.constant -176.615036 : f32
    %203 = vector.broadcast %cst_65 : f32 to vector<64x256xf32>
    %204 = arith.mulf %203, %202 : vector<64x256xf32>
    %205 = arith.addf %201, %204 : vector<64x256xf32>
    %206 = arith.mulf %180, %182 : vector<64x256xf32>
    %207 = arith.mulf %184, %186 : vector<64x256xf32>
    %208 = arith.mulf %182, %184 : vector<64x256xf32>
    %209 = arith.mulf %206, %207 : vector<64x256xf32>
    %210 = arith.mulf %208, %186 : vector<64x256xf32>
    %cst_66 = arith.constant 12.5073433 : f32
    %211 = vector.broadcast %cst_66 : f32 to vector<64x256xf32>
    %212 = arith.mulf %211, %210 : vector<64x256xf32>
    %213 = arith.mulf %180, %207 : vector<64x256xf32>
    %cst_67 = arith.constant -0.138571098 : f32
    %214 = vector.broadcast %cst_67 : f32 to vector<64x256xf32>
    %215 = arith.mulf %214, %213 : vector<64x256xf32>
    %216 = arith.addf %212, %215 : vector<64x256xf32>
    %217 = arith.mulf %206, %186 : vector<64x256xf32>
    %cst_68 = arith.constant 9.98436917E-6 : f32
    %218 = vector.broadcast %cst_68 : f32 to vector<64x256xf32>
    %219 = arith.mulf %218, %217 : vector<64x256xf32>
    %220 = arith.addf %216, %219 : vector<64x256xf32>
    %221 = arith.mulf %206, %184 : vector<64x256xf32>
    %cst_69 = arith.constant 1.50563267E-7 : f32
    %222 = vector.broadcast %cst_69 : f32 to vector<64x256xf32>
    %223 = arith.mulf %222, %221 : vector<64x256xf32>
    %224 = arith.addf %220, %223 : vector<64x256xf32>
    %225 = arith.divf %205, %190 : vector<64x256xf32>
    %cst_70 = arith.constant 1.000000e+00 : f32
    %226 = vector.broadcast %cst_70 : f32 to vector<64x256xf32>
    %227 = arith.addf %226, %225 : vector<64x256xf32>
    %228 = arith.divf %224, %209 : vector<64x256xf32>
    %229 = arith.addf %227, %228 : vector<64x256xf32>
    %cst_71 = arith.constant 6.500000e+00 : f32
    %230 = vector.broadcast %cst_71 : f32 to vector<64x256xf32>
    %231 = arith.addf %172, %230 : vector<64x256xf32>
    %cst_72 = arith.constant 5.000000e-01 : f32
    %232 = vector.broadcast %cst_72 : f32 to vector<64x256xf32>
    %233 = arith.subf %172, %232 : vector<64x256xf32>
    %234 = math.log %231 : vector<64x256xf32>
    %235 = arith.mulf %233, %234 : vector<64x256xf32>
    %cst_73 = arith.constant 0.918938517 : f32
    %236 = vector.broadcast %cst_73 : f32 to vector<64x256xf32>
    %237 = arith.addf %236, %235 : vector<64x256xf32>
    %238 = arith.subf %237, %231 : vector<64x256xf32>
    %239 = math.log %229 : vector<64x256xf32>
    %240 = arith.addf %238, %239 : vector<64x256xf32>
    %241 = math.log %167 : vector<64x256xf32>
    %242 = arith.subf %240, %241 : vector<64x256xf32>
    %243 = arith.select %169, %242, %240 : vector<64x256xi1>, vector<64x256xf32>
    %244 = arith.subf %164, %243 : vector<64x256xf32>
    %245 = arith.addf %5, %3 : vector<64x256xf32>
    %246 = arith.subf %16, %9 : vector<64x256xf32>
    %247 = arith.mulf %245, %246 : vector<64x256xf32>
    %248 = arith.subf %9, %12 : vector<64x256xf32>
    %249 = arith.mulf %3, %248 : vector<64x256xf32>
    %250 = arith.addf %247, %249 : vector<64x256xf32>
    %251 = arith.addf %244, %250 : vector<64x256xf32>
    %cst_74 = arith.constant 1.000000e+00 : f32
    %252 = vector.broadcast %cst_74 : f32 to vector<64x256xf32>
    %253 = arith.subf %252, %6 : vector<64x256xf32>
    %cst_75 = arith.constant 1.000000e-10 : f32
    %254 = vector.broadcast %cst_75 : f32 to vector<64x256xf32>
    %255 = arith.addf %253, %254 : vector<64x256xf32>
    %256 = math.log %255 : vector<64x256xf32>
    %257 = arith.subf %251, %256 : vector<64x256xf32>
    %258 = arith.subf %9, %16 : vector<64x256xf32>
    %259 = arith.mulf %5, %258 : vector<64x256xf32>
    %260 = math.exp %259 : vector<64x256xf32>
    %cst_76 = arith.constant 1.000000e+00 : f32
    %261 = vector.broadcast %cst_76 : f32 to vector<64x256xf32>
    %262 = arith.subf %261, %6 : vector<64x256xf32>
    %263 = arith.mulf %262, %260 : vector<64x256xf32>
    %264 = arith.addf %6, %263 : vector<64x256xf32>
    %cst_77 = arith.constant 1.000000e-10 : f32
    %265 = vector.broadcast %cst_77 : f32 to vector<64x256xf32>
    %266 = arith.addf %264, %265 : vector<64x256xf32>
    %267 = math.log %266 : vector<64x256xf32>
    %cst_78 = arith.constant 0.000000e+00 : f32
    %268 = vector.broadcast %cst_78 : f32 to vector<64x256xf32>
    %269 = arith.subf %268, %267 : vector<64x256xf32>
    %cst_79 = arith.constant 9.99999993E-9 : f32
    %270 = vector.broadcast %cst_79 : f32 to vector<64x256xf32>
    %271 = arith.cmpf ole, %3, %270 : vector<64x256xf32>
    %272 = arith.select %271, %269, %257 : vector<64x256xi1>, vector<64x256xf32>
    %273 = vector.extract_strided_slice %272 {offsets = [0, 0], sizes = [8, 256], strides = [1, 1]} : vector<64x256xf32> to vector<8x256xf32>
    %274 = vector.extract_strided_slice %272 {offsets = [8, 0], sizes = [8, 256], strides = [1, 1]} : vector<64x256xf32> to vector<8x256xf32>
    %275 = arith.addf %273, %274 : vector<8x256xf32>
    %276 = vector.extract_strided_slice %272 {offsets = [16, 0], sizes = [8, 256], strides = [1, 1]} : vector<64x256xf32> to vector<8x256xf32>
    %277 = arith.addf %275, %276 : vector<8x256xf32>
    %278 = vector.extract_strided_slice %272 {offsets = [24, 0], sizes = [8, 256], strides = [1, 1]} : vector<64x256xf32> to vector<8x256xf32>
    %279 = arith.addf %277, %278 : vector<8x256xf32>
    %280 = vector.extract_strided_slice %272 {offsets = [32, 0], sizes = [8, 256], strides = [1, 1]} : vector<64x256xf32> to vector<8x256xf32>
    %281 = arith.addf %279, %280 : vector<8x256xf32>
    %282 = vector.extract_strided_slice %272 {offsets = [40, 0], sizes = [8, 256], strides = [1, 1]} : vector<64x256xf32> to vector<8x256xf32>
    %283 = arith.addf %281, %282 : vector<8x256xf32>
    %284 = vector.extract_strided_slice %272 {offsets = [48, 0], sizes = [8, 256], strides = [1, 1]} : vector<64x256xf32> to vector<8x256xf32>
    %285 = arith.addf %283, %284 : vector<8x256xf32>
    %286 = vector.extract_strided_slice %272 {offsets = [56, 0], sizes = [8, 256], strides = [1, 1]} : vector<64x256xf32> to vector<8x256xf32>
    %287 = arith.addf %285, %286 : vector<8x256xf32>
    %c0_80 = arith.constant 0 : index
    %c0_81 = arith.constant 0 : index
    %c0_82 = arith.constant 0 : index
    %288 = vector.load %arg6[%c0_80, %c0_81, %c0_82] : memref<1x8x256xf32, #tpu.memory_space<vmem>>, vector<1x8x256xf32>
    %289 = vector.shape_cast %288 : vector<1x8x256xf32> to vector<8x256xf32>
    %290 = arith.addf %289, %287 : vector<8x256xf32>
    %c0_83 = arith.constant 0 : index
    %c0_84 = arith.constant 0 : index
    %c0_85 = arith.constant 0 : index
    %291 = vector.load %arg6[%c0_83, %c0_84, %c0_85] : memref<1x8x256xf32, #tpu.memory_space<vmem>>, vector<1x8x256xf32>
    %292 = vector.shape_cast %291 : vector<1x8x256xf32> to vector<8x256xf32>
    %293 = vector.shape_cast %290 : vector<8x256xf32> to vector<1x8x256xf32>
    tpu.vector_store %arg6[%c0_83, %c0_84, %c0_85], %293 {strides = array<i32>} : memref<1x8x256xf32, #tpu.memory_space<vmem>>, vector<1x8x256xf32>,
    return
  }
  func.func @transform_0(%arg0: i32, %arg1: i32) -> (i32, i32) {
    %c1_i32 = arith.constant 1 : i32
    %0 = arith.muli %arg0, %c1_i32 : i32
    %1 = arith.addi %0, %arg1 : i32
    %c0_i32 = arith.constant 0 : i32
    %2 = arith.minsi %1, %c0_i32 : i32
    %c0_i32_0 = arith.constant 0 : i32
    %c0_i32_1 = arith.constant 0 : i32
    return %2, %c0_i32_0 : i32, i32
  }
  func.func @transform_1(%arg0: i32, %arg1: i32) -> (i32, i32) {
    %c1_i32 = arith.constant 1 : i32
    %0 = arith.muli %arg0, %c1_i32 : i32
    %1 = arith.addi %0, %arg1 : i32
    %c0_i32 = arith.constant 0 : i32
    %2 = arith.minsi %1, %c0_i32 : i32
    %c0_i32_0 = arith.constant 0 : i32
    %c0_i32_1 = arith.constant 0 : i32
    return %2, %c0_i32_0 : i32, i32
  }
  func.func @transform_2(%arg0: i32, %arg1: i32) -> (i32, i32) {
    %c1_i32 = arith.constant 1 : i32
    %0 = arith.muli %arg0, %c1_i32 : i32
    %1 = arith.addi %0, %arg1 : i32
    %c0_i32 = arith.constant 0 : i32
    %2 = arith.minsi %1, %c0_i32 : i32
    %c0_i32_0 = arith.constant 0 : i32
    %c0_i32_1 = arith.constant 0 : i32
    return %2, %c0_i32_0 : i32, i32
  }
  func.func @transform_3(%arg0: i32, %arg1: i32) -> (i32, i32) {
    %c1_i32 = arith.constant 1 : i32
    %0 = arith.muli %arg0, %c1_i32 : i32
    %1 = arith.addi %0, %arg1 : i32
    %c0_i32 = arith.constant 0 : i32
    %2 = arith.minsi %1, %c0_i32 : i32
    %c0_i32_0 = arith.constant 0 : i32
    %c0_i32_1 = arith.constant 0 : i32
    return %2, %c0_i32_0 : i32, i32
  }
  func.func @transform_4(%arg0: i32, %arg1: i32) -> (i32, i32, i32) {
    %c0_i32 = arith.constant 0 : i32
    %c0_i32_0 = arith.constant 0 : i32
    %c0_i32_1 = arith.constant 0 : i32
    return %arg0, %c0_i32, %c0_i32_0 : i32, i32, i32
  }
}

</mosaic_0001>

<llo_original>
// kernel: tpu_custom_call.1
$region0: #{tpu_custom_call.1}
  #allocation0 [shape = 'u32[]', space=smem, size = 0x4, offset = 0x4, fixed_abs, tag = 'smem constant byte address 0x4 - core index']
  #allocation1 [shape = 'u32[144,128]{1,0:T(1,128)}', space=vmem, size = 0x12000, scoped, tag = 'internal scratch']
  %s0 = inlined_call_operand.hbm [shape: f32[64,256], index: 0, kind: input, shape index: {}]
  %s1 = inlined_call_operand.hbm [shape: f32[64,256], index: 1, kind: input, shape index: {}]
  %s2 = inlined_call_operand.hbm [shape: f32[64,256], index: 2, kind: input, shape index: {}]
  %s3 = inlined_call_operand.hbm [shape: f32[64,256], index: 3, kind: input, shape index: {}]
  %s4 = inlined_call_operand.hbm [shape: f32[1,8,256], index: 4, kind: output, shape index: {}]
  %s5 = sld [smem:[#allocation0]]
  $region46: #{tpu_custom_call.1} parent=0
    _
  %s7 = ssub.s32 1, %s5
  %s8 = scalar_select 0, %s7, %s5
  $region1: #{tpu_custom_call.1} parent=0
    #allocation2 [shape = 'u8[65536]{0}', space=vmem, size = 0x10000, scoped, tag = 'input window, operand 0, single buffered']
    #allocation3 [shape = 's32[1]{0}', space=sflag, size = 0x4, scoped, tag = 'scoped memory for tpu_custom_call.1']
    #allocation4 [shape = 's32[1]{0}', space=sflag, size = 0x4, scoped, tag = 'scoped memory for tpu_custom_call.1']
    #allocation5 [shape = 'u8[65536]{0}', space=vmem, size = 0x10000, scoped, tag = 'input window, operand 1, single buffered']
    #allocation6 [shape = 's32[1]{0}', space=sflag, size = 0x4, scoped, tag = 'scoped memory for tpu_custom_call.1']
    #allocation7 [shape = 'u8[65536]{0}', space=vmem, size = 0x10000, scoped, tag = 'input window, operand 2, single buffered']
    #allocation8 [shape = 'u8[65536]{0}', space=vmem, size = 0x10000, scoped, tag = 'input window, operand 3, single buffered']
    #allocation9 [shape = 's32[1]{0}', space=sflag, size = 0x4, scoped, tag = 'scoped memory for tpu_custom_call.1']
    #allocation10 [shape = 'u8[8192]{0}', space=vmem, size = 0x2000, scoped, tag = 'output window, operand 0, single buffered']
    %9 = vsyncpa [#allocation3], 0
    %10 = vsyncpa [#allocation6], 0
    %11 = vsyncpa [#allocation9], 0
    %12 = vsyncpa [#allocation4], 0
    // Predicated region
    $region2: #{tpu_custom_call.1} parent=1 // pred_check
      _
    $region3: #{tpu_custom_call.1} parent=1 // pred_check_branch
      %14 = sbr.rel (0) target = $region5
    $region4: #{tpu_custom_call.1} parent=1 // pred_region
      %s15 = sadd.s32 0, 0
      %p16 = scmp.lt.s32.totalorder %s15, 0
      %s17 = scalar_select %p16, %s15, 0
      %s18 = smul.u32 8, %s17
      %s20 = ssub.s32 2048, 2048
      %21 = vsyncadd [#allocation3], %s20
      %s22 = smul.addr %s18, 2
      %s23 = smul.addr %s22, 128
      %s24 = scalar_lea.hbm %s0, %s23
      %s25 = sshll.u32 [#allocation2], 4
      %s26 = int_to_ptr.vmem [resolvable:$true] %s25
      %31 = dma.hbm_to_vmem [thread:$0]  %s24, 2048, %s26, [#allocation3], 256, 256, 16
    $region5: #{tpu_custom_call.1} parent=1 // pred_fallthru
      _
    // Predicated region
    $region6: #{tpu_custom_call.1} parent=1 // pred_check
      _
    $region7: #{tpu_custom_call.1} parent=1 // pred_check_branch
      %33 = sbr.rel (0) target = $region9
    $region8: #{tpu_custom_call.1} parent=1 // pred_region
      %s34 = sadd.s32 0, 0
      %p35 = scmp.lt.s32.totalorder %s34, 0
      %s36 = scalar_select %p35, %s34, 0
      %s37 = smul.u32 8, %s36
      %s39 = ssub.s32 2048, 2048
      %40 = vsyncadd [#allocation6], %s39
      %s41 = smul.addr %s37, 2
      %s42 = smul.addr %s41, 128
      %s43 = scalar_lea.hbm %s1, %s42
      %s44 = sshll.u32 [#allocation5], 4
      %s45 = int_to_ptr.vmem [resolvable:$true] %s44
      %50 = dma.hbm_to_vmem [thread:$0]  %s43, 2048, %s45, [#allocation6], 256, 256, 16
    $region9: #{tpu_custom_call.1} parent=1 // pred_fallthru
      _
    // Predicated region
    $region10: #{tpu_custom_call.1} parent=1 // pred_check
      _
    $region11: #{tpu_custom_call.1} parent=1 // pred_check_branch
      %52 = sbr.rel (0) target = $region13
    $region12: #{tpu_custom_call.1} parent=1 // pred_region
      %s53 = sadd.s32 0, 0
      %p54 = scmp.lt.s32.totalorder %s53, 0
      %s55 = scalar_select %p54, %s53, 0
      %s56 = smul.u32 8, %s55
      %s58 = ssub.s32 2048, 2048
      %59 = vsyncadd [#allocation6], %s58
      %s60 = smul.addr %s56, 2
      %s61 = smul.addr %s60, 128
      %s62 = scalar_lea.hbm %s2, %s61
      %s63 = sshll.u32 [#allocation7], 4
      %s64 = int_to_ptr.vmem [resolvable:$true] %s63
      %69 = dma.hbm_to_vmem [thread:$0]  %s62, 2048, %s64, [#allocation6], 256, 256, 16
    $region13: #{tpu_custom_call.1} parent=1 // pred_fallthru
      _
    // Predicated region
    $region14: #{tpu_custom_call.1} parent=1 // pred_check
      _
    $region15: #{tpu_custom_call.1} parent=1 // pred_check_branch
      %71 = sbr.rel (0) target = $region17
    $region16: #{tpu_custom_call.1} parent=1 // pred_region
      %s72 = sadd.s32 0, 0
      %p73 = scmp.lt.s32.totalorder %s72, 0
      %s74 = scalar_select %p73, %s72, 0
      %s75 = smul.u32 8, %s74
      %s77 = ssub.s32 2048, 2048
      %78 = vsyncadd [#allocation9], %s77
      %s79 = smul.addr %s75, 2
      %s80 = smul.addr %s79, 128
      %s81 = scalar_lea.hbm %s3, %s80
      %s82 = sshll.u32 [#allocation8], 4
      %s83 = int_to_ptr.vmem [resolvable:$true] %s82
      %88 = dma.hbm_to_vmem [thread:$0]  %s81, 2048, %s83, [#allocation9], 256, 256, 16
    $region17: #{tpu_custom_call.1} parent=1 // pred_fallthru
      _
    // Predicated region
    $region18: #{tpu_custom_call.1} parent=1 // pred_check
      _
    $region19: #{tpu_custom_call.1} parent=1 // pred_check_branch
      %90 = sbr.rel (0) target = $region21
    $region20: #{tpu_custom_call.1} parent=1 // pred_region
      %91 = dma.done [#allocation3], 2048
    $region21: #{tpu_custom_call.1} parent=1 // pred_fallthru
      _
    // Predicated region
    $region22: #{tpu_custom_call.1} parent=1 // pred_check
      _
    $region23: #{tpu_custom_call.1} parent=1 // pred_check_branch
      %93 = sbr.rel (0) target = $region25
    $region24: #{tpu_custom_call.1} parent=1 // pred_region
      %94 = dma.done [#allocation6], 2048
    $region25: #{tpu_custom_call.1} parent=1 // pred_fallthru
      _
    // Predicated region
    $region26: #{tpu_custom_call.1} parent=1 // pred_check
      _
    $region27: #{tpu_custom_call.1} parent=1 // pred_check_branch
      %96 = sbr.rel (0) target = $region29
    $region28: #{tpu_custom_call.1} parent=1 // pred_region
      %97 = dma.done [#allocation6], 2048
    $region29: #{tpu_custom_call.1} parent=1 // pred_fallthru
      _
    // Predicated region
    $region30: #{tpu_custom_call.1} parent=1 // pred_check
      _
    $region31: #{tpu_custom_call.1} parent=1 // pred_check_branch
      %99 = sbr.rel (0) target = $region33
    $region32: #{tpu_custom_call.1} parent=1 // pred_region
      %100 = dma.done [#allocation9], 2048
    $region33: #{tpu_custom_call.1} parent=1 // pred_fallthru
      _
    %s101 = sadd.s32 0, 0
    %p102 = scmp.lt.s32.totalorder %s101, 0
    %s103 = scalar_select %p102, %s101, 0
    %s104 = smul.u32 8, %s103
    %s105 = sadd.s32 0, 0
    %p106 = scmp.lt.s32.totalorder %s105, 0
    %s107 = scalar_select %p106, %s105, 0
    %s108 = smul.u32 8, %s107
    %s109 = sadd.s32 0, 0
    %p110 = scmp.lt.s32.totalorder %s109, 0
    %s111 = scalar_select %p110, %s109, 0
    %s112 = smul.u32 8, %s111
    %s113 = sadd.s32 0, 0
    %p114 = scmp.lt.s32.totalorder %s113, 0
    %s115 = scalar_select %p114, %s113, 0
    %s116 = smul.u32 8, %s115
    %p117 = scmp.eq.s32.totalorder 0, 0
    // Predicated region
    $region34: #{tpu_custom_call.1} parent=1 // pred_check
      %p118 = pneg %p117
    $region35: #{tpu_custom_call.1} parent=1 // pred_check_branch
      %120 = sbr.rel (%p118) target = $region37
    $region36: #{tpu_custom_call.1} parent=1 // pred_region
      %121 = vst [vmem:[#allocation10] sm:$0xff] 0.0
      %122 = vst [vmem:[#allocation10 + $0x8] sm:$0xff] 0.0
    $region37: #{tpu_custom_call.1} parent=1 // pred_fallthru
      _
    %v123 = vld [vmem:[#allocation2] sm:$0xff]
    %v124 = vld [vmem:[#allocation2 + $0x8] sm:$0xff]
    %v125 = vld [vmem:[#allocation2 + $0x10] sm:$0xff]
    %v126 = vld [vmem:[#allocation2 + $0x18] sm:$0xff]
    %v127 = vld [vmem:[#allocation2 + $0x20] sm:$0xff]
    %v128 = vld [vmem:[#allocation2 + $0x28] sm:$0xff]
    %v129 = vld [vmem:[#allocation2 + $0x30] sm:$0xff]
    %v130 = vld [vmem:[#allocation2 + $0x38] sm:$0xff]
    %v131 = vld [vmem:[#allocation2 + $0x40] sm:$0xff]
    %v132 = vld [vmem:[#allocation2 + $0x48] sm:$0xff]
    %v133 = vld [vmem:[#allocation2 + $0x50] sm:$0xff]
    %v134 = vld [vmem:[#allocation2 + $0x58] sm:$0xff]
    %v135 = vld [vmem:[#allocation2 + $0x60] sm:$0xff]
    %v136 = vld [vmem:[#allocation2 + $0x68] sm:$0xff]
    %v137 = vld [vmem:[#allocation2 + $0x70] sm:$0xff]
    %v138 = vld [vmem:[#allocation2 + $0x78] sm:$0xff]
    %v139 = vld [vmem:[#allocation5] sm:$0xff]
    %v140 = vld [vmem:[#allocation5 + $0x8] sm:$0xff]
    %v141 = vld [vmem:[#allocation5 + $0x10] sm:$0xff]
    %v142 = vld [vmem:[#allocation5 + $0x18] sm:$0xff]
    %v143 = vld [vmem:[#allocation5 + $0x20] sm:$0xff]
    %v144 = vld [vmem:[#allocation5 + $0x28] sm:$0xff]
    %v145 = vld [vmem:[#allocation5 + $0x30] sm:$0xff]
    %v146 = vld [vmem:[#allocation5 + $0x38] sm:$0xff]
    %v147 = vld [vmem:[#allocation5 + $0x40] sm:$0xff]
    %v148 = vld [vmem:[#allocation5 + $0x48] sm:$0xff]
    %v149 = vld [vmem:[#allocation5 + $0x50] sm:$0xff]
    %v150 = vld [vmem:[#allocation5 + $0x58] sm:$0xff]
    %v151 = vld [vmem:[#allocation5 + $0x60] sm:$0xff]
    %v152 = vld [vmem:[#allocation5 + $0x68] sm:$0xff]
    %v153 = vld [vmem:[#allocation5 + $0x70] sm:$0xff]
    %v154 = vld [vmem:[#allocation5 + $0x78] sm:$0xff]
    %v155 = vld [vmem:[#allocation7] sm:$0xff]
    %v156 = vld [vmem:[#allocation7 + $0x8] sm:$0xff]
    %v157 = vld [vmem:[#allocation7 + $0x10] sm:$0xff]
    %v158 = vld [vmem:[#allocation7 + $0x18] sm:$0xff]
    %v159 = vld [vmem:[#allocation7 + $0x20] sm:$0xff]
    %v160 = vld [vmem:[#allocation7 + $0x28] sm:$0xff]
    %v161 = vld [vmem:[#allocation7 + $0x30] sm:$0xff]
    %v162 = vld [vmem:[#allocation7 + $0x38] sm:$0xff]
    %v163 = vld [vmem:[#allocation7 + $0x40] sm:$0xff]
    %v164 = vld [vmem:[#allocation7 + $0x48] sm:$0xff]
    %v165 = vld [vmem:[#allocation7 + $0x50] sm:$0xff]
    %v166 = vld [vmem:[#allocation7 + $0x58] sm:$0xff]
    %v167 = vld [vmem:[#allocation7 + $0x60] sm:$0xff]
    %v168 = vld [vmem:[#allocation7 + $0x68] sm:$0xff]
    %v169 = vld [vmem:[#allocation7 + $0x70] sm:$0xff]
    %v170 = vld [vmem:[#allocation7 + $0x78] sm:$0xff]
    %v171 = vld [vmem:[#allocation8] sm:$0xff]
    %v172 = vld [vmem:[#allocation8 + $0x8] sm:$0xff]
    %v173 = vld [vmem:[#allocation8 + $0x10] sm:$0xff]
    %v174 = vld [vmem:[#allocation8 + $0x18] sm:$0xff]
    %v175 = vld [vmem:[#allocation8 + $0x20] sm:$0xff]
    %v176 = vld [vmem:[#allocation8 + $0x28] sm:$0xff]
    %v177 = vld [vmem:[#allocation8 + $0x30] sm:$0xff]
    %v178 = vld [vmem:[#allocation8 + $0x38] sm:$0xff]
    %v179 = vld [vmem:[#allocation8 + $0x40] sm:$0xff]
    %v180 = vld [vmem:[#allocation8 + $0x48] sm:$0xff]
    %v181 = vld [vmem:[#allocation8 + $0x50] sm:$0xff]
    %v182 = vld [vmem:[#allocation8 + $0x58] sm:$0xff]
    %v183 = vld [vmem:[#allocation8 + $0x60] sm:$0xff]
    %v184 = vld [vmem:[#allocation8 + $0x68] sm:$0xff]
    %v185 = vld [vmem:[#allocation8 + $0x70] sm:$0xff]
    %v186 = vld [vmem:[#allocation8 + $0x78] sm:$0xff]
    %v187 = vadd.f32 %v155, 1e-10
    %v188 = vadd.f32 %v156, 1e-10
    %v189 = vadd.f32 %v157, 1e-10
    %v190 = vadd.f32 %v158, 1e-10
    %v191 = vadd.f32 %v159, 1e-10
    %v192 = vadd.f32 %v160, 1e-10
    %v193 = vadd.f32 %v161, 1e-10
    %v194 = vadd.f32 %v162, 1e-10
    %v195 = vadd.f32 %v163, 1e-10
    %v196 = vadd.f32 %v164, 1e-10
    %v197 = vadd.f32 %v165, 1e-10
    %v198 = vadd.f32 %v166, 1e-10
    %v199 = vadd.f32 %v167, 1e-10
    %v200 = vadd.f32 %v168, 1e-10
    %v201 = vadd.f32 %v169, 1e-10
    %v202 = vadd.f32 %v170, 1e-10
    %v203 = vlog2.pop %v187
    %v204 = vmul.f32 %v203, 0.6931472
    %v205 = vlog2.pop %v188
    %v206 = vmul.f32 %v205, 0.6931472
    %v207 = vlog2.pop %v189
    %v208 = vmul.f32 %v207, 0.6931472
    %v209 = vlog2.pop %v190
    %v210 = vmul.f32 %v209, 0.6931472
    %v211 = vlog2.pop %v191
    %v212 = vmul.f32 %v211, 0.6931472
    %v213 = vlog2.pop %v192
    %v214 = vmul.f32 %v213, 0.6931472
    %v215 = vlog2.pop %v193
    %v216 = vmul.f32 %v215, 0.6931472
    %v217 = vlog2.pop %v194
    %v218 = vmul.f32 %v217, 0.6931472
    %v219 = vlog2.pop %v195
    %v220 = vmul.f32 %v219, 0.6931472
    %v221 = vlog2.pop %v196
    %v222 = vmul.f32 %v221, 0.6931472
    %v223 = vlog2.pop %v197
    %v224 = vmul.f32 %v223, 0.6931472
    %v225 = vlog2.pop %v198
    %v226 = vmul.f32 %v225, 0.6931472
    %v227 = vlog2.pop %v199
    %v228 = vmul.f32 %v227, 0.6931472
    %v229 = vlog2.pop %v200
    %v230 = vmul.f32 %v229, 0.6931472
    %v231 = vlog2.pop %v201
    %v232 = vmul.f32 %v231, 0.6931472
    %v233 = vlog2.pop %v202
    %v234 = vmul.f32 %v233, 0.6931472
    %v235 = vadd.f32 %v139, 1e-10
    %v236 = vadd.f32 %v140, 1e-10
    %v237 = vadd.f32 %v141, 1e-10
    %v238 = vadd.f32 %v142, 1e-10
    %v239 = vadd.f32 %v143, 1e-10
    %v240 = vadd.f32 %v144, 1e-10
    %v241 = vadd.f32 %v145, 1e-10
    %v242 = vadd.f32 %v146, 1e-10
    %v243 = vadd.f32 %v147, 1e-10
    %v244 = vadd.f32 %v148, 1e-10
    %v245 = vadd.f32 %v149, 1e-10
    %v246 = vadd.f32 %v150, 1e-10
    %v247 = vadd.f32 %v151, 1e-10
    %v248 = vadd.f32 %v152, 1e-10
    %v249 = vadd.f32 %v153, 1e-10
    %v250 = vadd.f32 %v154, 1e-10
    %v251 = vlog2.pop %v235
    %v252 = vmul.f32 %v251, 0.6931472
    %v253 = vlog2.pop %v236
    %v254 = vmul.f32 %v253, 0.6931472
    %v255 = vlog2.pop %v237
    %v256 = vmul.f32 %v255, 0.6931472
    %v257 = vlog2.pop %v238
    %v258 = vmul.f32 %v257, 0.6931472
    %v259 = vlog2.pop %v239
    %v260 = vmul.f32 %v259, 0.6931472
    %v261 = vlog2.pop %v240
    %v262 = vmul.f32 %v261, 0.6931472
    %v263 = vlog2.pop %v241
    %v264 = vmul.f32 %v263, 0.6931472
    %v265 = vlog2.pop %v242
    %v266 = vmul.f32 %v265, 0.6931472
    %v267 = vlog2.pop %v243
    %v268 = vmul.f32 %v267, 0.6931472
    %v269 = vlog2.pop %v244
    %v270 = vmul.f32 %v269, 0.6931472
    %v271 = vlog2.pop %v245
    %v272 = vmul.f32 %v271, 0.6931472
    %v273 = vlog2.pop %v246
    %v274 = vmul.f32 %v273, 0.6931472
    %v275 = vlog2.pop %v247
    %v276 = vmul.f32 %v275, 0.6931472
    %v277 = vlog2.pop %v248
    %v278 = vmul.f32 %v277, 0.6931472
    %v279 = vlog2.pop %v249
    %v280 = vmul.f32 %v279, 0.6931472
    %v281 = vlog2.pop %v250
    %v282 = vmul.f32 %v281, 0.6931472
    %v283 = vadd.f32 %v155, %v139
    %v284 = vadd.f32 %v156, %v140
    %v285 = vadd.f32 %v157, %v141
    %v286 = vadd.f32 %v158, %v142
    %v287 = vadd.f32 %v159, %v143
    %v288 = vadd.f32 %v160, %v144
    %v289 = vadd.f32 %v161, %v145
    %v290 = vadd.f32 %v162, %v146
    %v291 = vadd.f32 %v163, %v147
    %v292 = vadd.f32 %v164, %v148
    %v293 = vadd.f32 %v165, %v149
    %v294 = vadd.f32 %v166, %v150
    %v295 = vadd.f32 %v167, %v151
    %v296 = vadd.f32 %v168, %v152
    %v297 = vadd.f32 %v169, %v153
    %v298 = vadd.f32 %v170, %v154
    %v299 = vadd.f32 %v283, 1e-10
    %v300 = vadd.f32 %v284, 1e-10
    %v301 = vadd.f32 %v285, 1e-10
    %v302 = vadd.f32 %v286, 1e-10
    %v303 = vadd.f32 %v287, 1e-10
    %v304 = vadd.f32 %v288, 1e-10
    %v305 = vadd.f32 %v289, 1e-10
    %v306 = vadd.f32 %v290, 1e-10
    %v307 = vadd.f32 %v291, 1e-10
    %v308 = vadd.f32 %v292, 1e-10
    %v309 = vadd.f32 %v293, 1e-10
    %v310 = vadd.f32 %v294, 1e-10
    %v311 = vadd.f32 %v295, 1e-10
    %v312 = vadd.f32 %v296, 1e-10
    %v313 = vadd.f32 %v297, 1e-10
    %v314 = vadd.f32 %v298, 1e-10
    %v315 = vlog2.pop %v299
    %v316 = vmul.f32 %v315, 0.6931472
    %v317 = vlog2.pop %v300
    %v318 = vmul.f32 %v317, 0.6931472
    %v319 = vlog2.pop %v301
    %v320 = vmul.f32 %v319, 0.6931472
    %v321 = vlog2.pop %v302
    %v322 = vmul.f32 %v321, 0.6931472
    %v323 = vlog2.pop %v303
    %v324 = vmul.f32 %v323, 0.6931472
    %v325 = vlog2.pop %v304
    %v326 = vmul.f32 %v325, 0.6931472
    %v327 = vlog2.pop %v305
    %v328 = vmul.f32 %v327, 0.6931472
    %v329 = vlog2.pop %v306
    %v330 = vmul.f32 %v329, 0.6931472
    %v331 = vlog2.pop %v307
    %v332 = vmul.f32 %v331, 0.6931472
    %v333 = vlog2.pop %v308
    %v334 = vmul.f32 %v333, 0.6931472
    %v335 = vlog2.pop %v309
    %v336 = vmul.f32 %v335, 0.6931472
    %v337 = vlog2.pop %v310
    %v338 = vmul.f32 %v337, 0.6931472
    %v339 = vlog2.pop %v311
    %v340 = vmul.f32 %v339, 0.6931472
    %v341 = vlog2.pop %v312
    %v342 = vmul.f32 %v341, 0.6931472
    %v343 = vlog2.pop %v313
    %v344 = vmul.f32 %v343, 0.6931472
    %v345 = vlog2.pop %v314
    %v346 = vmul.f32 %v345, 0.6931472
    %vm347 = vcmp.lt.f32.partialorder %v187, 0.5
    %vm348 = vcmp.lt.f32.partialorder %v188, 0.5
    %vm349 = vcmp.lt.f32.partialorder %v189, 0.5
    %vm350 = vcmp.lt.f32.partialorder %v190, 0.5
    %vm351 = vcmp.lt.f32.partialorder %v191, 0.5
    %vm352 = vcmp.lt.f32.partialorder %v192, 0.5
    %vm353 = vcmp.lt.f32.partialorder %v193, 0.5
    %vm354 = vcmp.lt.f32.partialorder %v194, 0.5
    %vm355 = vcmp.lt.f32.partialorder %v195, 0.5
    %vm356 = vcmp.lt.f32.partialorder %v196, 0.5
    %vm357 = vcmp.lt.f32.partialorder %v197, 0.5
    %vm358 = vcmp.lt.f32.partialorder %v198, 0.5
    %vm359 = vcmp.lt.f32.partialorder %v199, 0.5
    %vm360 = vcmp.lt.f32.partialorder %v200, 0.5
    %vm361 = vcmp.lt.f32.partialorder %v201, 0.5
    %vm362 = vcmp.lt.f32.partialorder %v202, 0.5
    %v363 = vadd.f32 %v187, 1.0
    %v364 = vadd.f32 %v188, 1.0
    %v365 = vadd.f32 %v189, 1.0
    %v366 = vadd.f32 %v190, 1.0
    %v367 = vadd.f32 %v191, 1.0
    %v368 = vadd.f32 %v192, 1.0
    %v369 = vadd.f32 %v193, 1.0
    %v370 = vadd.f32 %v194, 1.0
    %v371 = vadd.f32 %v195, 1.0
    %v372 = vadd.f32 %v196, 1.0
    %v373 = vadd.f32 %v197, 1.0
    %v374 = vadd.f32 %v198, 1.0
    %v375 = vadd.f32 %v199, 1.0
    %v376 = vadd.f32 %v200, 1.0
    %v377 = vadd.f32 %v201, 1.0
    %v378 = vadd.f32 %v202, 1.0
    %v379 = vsel %vm347, %v363, %v187
    %v380 = vsel %vm348, %v364, %v188
    %v381 = vsel %vm349, %v365, %v189
    %v382 = vsel %vm350, %v366, %v190
    %v383 = vsel %vm351, %v367, %v191
    %v384 = vsel %vm352, %v368, %v192
    %v385 = vsel %vm353, %v369, %v193
    %v386 = vsel %vm354, %v370, %v194
    %v387 = vsel %vm355, %v371, %v195
    %v388 = vsel %vm356, %v372, %v196
    %v389 = vsel %vm357, %v373, %v197
    %v390 = vsel %vm358, %v374, %v198
    %v391 = vsel %vm359, %v375, %v199
    %v392 = vsel %vm360, %v376, %v200
    %v393 = vsel %vm361, %v377, %v201
    %v394 = vsel %vm362, %v378, %v202
    %v395 = vadd.f32 %v379, 1.0
    %v396 = vadd.f32 %v380, 1.0
    %v397 = vadd.f32 %v381, 1.0
    %v398 = vadd.f32 %v382, 1.0
    %v399 = vadd.f32 %v383, 1.0
    %v400 = vadd.f32 %v384, 1.0
    %v401 = vadd.f32 %v385, 1.0
    %v402 = vadd.f32 %v386, 1.0
    %v403 = vadd.f32 %v387, 1.0
    %v404 = vadd.f32 %v388, 1.0
    %v405 = vadd.f32 %v389, 1.0
    %v406 = vadd.f32 %v390, 1.0
    %v407 = vadd.f32 %v391, 1.0
    %v408 = vadd.f32 %v392, 1.0
    %v409 = vadd.f32 %v393, 1.0
    %v410 = vadd.f32 %v394, 1.0
    %v411 = vadd.f32 %v379, 2.0
    %v412 = vadd.f32 %v380, 2.0
    %v413 = vadd.f32 %v381, 2.0
    %v414 = vadd.f32 %v382, 2.0
    %v415 = vadd.f32 %v383, 2.0
    %v416 = vadd.f32 %v384, 2.0
    %v417 = vadd.f32 %v385, 2.0
    %v418 = vadd.f32 %v386, 2.0
    %v419 = vadd.f32 %v387, 2.0
    %v420 = vadd.f32 %v388, 2.0
    %v421 = vadd.f32 %v389, 2.0
    %v422 = vadd.f32 %v390, 2.0
    %v423 = vadd.f32 %v391, 2.0
    %v424 = vadd.f32 %v392, 2.0
    %v425 = vadd.f32 %v393, 2.0
    %v426 = vadd.f32 %v394, 2.0
    %v427 = vadd.f32 %v379, 3.0
    %v428 = vadd.f32 %v380, 3.0
    %v429 = vadd.f32 %v381, 3.0
    %v430 = vadd.f32 %v382, 3.0
    %v431 = vadd.f32 %v383, 3.0
    %v432 = vadd.f32 %v384, 3.0
    %v433 = vadd.f32 %v385, 3.0
    %v434 = vadd.f32 %v386, 3.0
    %v435 = vadd.f32 %v387, 3.0
    %v436 = vadd.f32 %v388, 3.0
    %v437 = vadd.f32 %v389, 3.0
    %v438 = vadd.f32 %v390, 3.0
    %v439 = vadd.f32 %v391, 3.0
    %v440 = vadd.f32 %v392, 3.0
    %v441 = vadd.f32 %v393, 3.0
    %v442 = vadd.f32 %v394, 3.0
    %v443 = vadd.f32 %v379, 4.0
    %v444 = vadd.f32 %v380, 4.0
    %v445 = vadd.f32 %v381, 4.0
    %v446 = vadd.f32 %v382, 4.0
    %v447 = vadd.f32 %v383, 4.0
    %v448 = vadd.f32 %v384, 4.0
    %v449 = vadd.f32 %v385, 4.0
    %v450 = vadd.f32 %v386, 4.0
    %v451 = vadd.f32 %v387, 4.0
    %v452 = vadd.f32 %v388, 4.0
    %v453 = vadd.f32 %v389, 4.0
    %v454 = vadd.f32 %v390, 4.0
    %v455 = vadd.f32 %v391, 4.0
    %v456 = vadd.f32 %v392, 4.0
    %v457 = vadd.f32 %v393, 4.0
    %v458 = vadd.f32 %v394, 4.0
    %v459 = vadd.f32 %v379, 5.0
    %v460 = vadd.f32 %v380, 5.0
    %v461 = vadd.f32 %v381, 5.0
    %v462 = vadd.f32 %v382, 5.0
    %v463 = vadd.f32 %v383, 5.0
    %v464 = vadd.f32 %v384, 5.0
    %v465 = vadd.f32 %v385, 5.0
    %v466 = vadd.f32 %v386, 5.0
    %v467 = vadd.f32 %v387, 5.0
    %v468 = vadd.f32 %v388, 5.0
    %v469 = vadd.f32 %v389, 5.0
    %v470 = vadd.f32 %v390, 5.0
    %v471 = vadd.f32 %v391, 5.0
    %v472 = vadd.f32 %v392, 5.0
    %v473 = vadd.f32 %v393, 5.0
    %v474 = vadd.f32 %v394, 5.0
    %v475 = vadd.f32 %v379, 6.0
    %v476 = vadd.f32 %v380, 6.0
    %v477 = vadd.f32 %v381, 6.0
    %v478 = vadd.f32 %v382, 6.0
    %v479 = vadd.f32 %v383, 6.0
    %v480 = vadd.f32 %v384, 6.0
    %v481 = vadd.f32 %v385, 6.0
    %v482 = vadd.f32 %v386, 6.0
    %v483 = vadd.f32 %v387, 6.0
    %v484 = vadd.f32 %v388, 6.0
    %v485 = vadd.f32 %v389, 6.0
    %v486 = vadd.f32 %v390, 6.0
    %v487 = vadd.f32 %v391, 6.0
    %v488 = vadd.f32 %v392, 6.0
    %v489 = vadd.f32 %v393, 6.0
    %v490 = vadd.f32 %v394, 6.0
    %v491 = vadd.f32 %v379, 7.0
    %v492 = vadd.f32 %v380, 7.0
    %v493 = vadd.f32 %v381, 7.0
    %v494 = vadd.f32 %v382, 7.0
    %v495 = vadd.f32 %v383, 7.0
    %v496 = vadd.f32 %v384, 7.0
    %v497 = vadd.f32 %v385, 7.0
    %v498 = vadd.f32 %v386, 7.0
    %v499 = vadd.f32 %v387, 7.0
    %v500 = vadd.f32 %v388, 7.0
    %v501 = vadd.f32 %v389, 7.0
    %v502 = vadd.f32 %v390, 7.0
    %v503 = vadd.f32 %v391, 7.0
    %v504 = vadd.f32 %v392, 7.0
    %v505 = vadd.f32 %v393, 7.0
    %v506 = vadd.f32 %v394, 7.0
    %v507 = vmul.f32 %v379, %v395
    %v508 = vmul.f32 %v380, %v396
    %v509 = vmul.f32 %v381, %v397
    %v510 = vmul.f32 %v382, %v398
    %v511 = vmul.f32 %v383, %v399
    %v512 = vmul.f32 %v384, %v400
    %v513 = vmul.f32 %v385, %v401
    %v514 = vmul.f32 %v386, %v402
    %v515 = vmul.f32 %v387, %v403
    %v516 = vmul.f32 %v388, %v404
    %v517 = vmul.f32 %v389, %v405
    %v518 = vmul.f32 %v390, %v406
    %v519 = vmul.f32 %v391, %v407
    %v520 = vmul.f32 %v392, %v408
    %v521 = vmul.f32 %v393, %v409
    %v522 = vmul.f32 %v394, %v410
    %v523 = vmul.f32 %v411, %v427
    %v524 = vmul.f32 %v412, %v428
    %v525 = vmul.f32 %v413, %v429
    %v526 = vmul.f32 %v414, %v430
    %v527 = vmul.f32 %v415, %v431
    %v528 = vmul.f32 %v416, %v432
    %v529 = vmul.f32 %v417, %v433
    %v530 = vmul.f32 %v418, %v434
    %v531 = vmul.f32 %v419, %v435
    %v532 = vmul.f32 %v420, %v436
    %v533 = vmul.f32 %v421, %v437
    %v534 = vmul.f32 %v422, %v438
    %v535 = vmul.f32 %v423, %v439
    %v536 = vmul.f32 %v424, %v440
    %v537 = vmul.f32 %v425, %v441
    %v538 = vmul.f32 %v426, %v442
    %v539 = vmul.f32 %v395, %v411
    %v540 = vmul.f32 %v396, %v412
    %v541 = vmul.f32 %v397, %v413
    %v542 = vmul.f32 %v398, %v414
    %v543 = vmul.f32 %v399, %v415
    %v544 = vmul.f32 %v400, %v416
    %v545 = vmul.f32 %v401, %v417
    %v546 = vmul.f32 %v402, %v418
    %v547 = vmul.f32 %v403, %v419
    %v548 = vmul.f32 %v404, %v420
    %v549 = vmul.f32 %v405, %v421
    %v550 = vmul.f32 %v406, %v422
    %v551 = vmul.f32 %v407, %v423
    %v552 = vmul.f32 %v408, %v424
    %v553 = vmul.f32 %v409, %v425
    %v554 = vmul.f32 %v410, %v426
    %v555 = vmul.f32 %v507, %v523
    %v556 = vmul.f32 %v508, %v524
    %v557 = vmul.f32 %v509, %v525
    %v558 = vmul.f32 %v510, %v526
    %v559 = vmul.f32 %v511, %v527
    %v560 = vmul.f32 %v512, %v528
    %v561 = vmul.f32 %v513, %v529
    %v562 = vmul.f32 %v514, %v530
    %v563 = vmul.f32 %v515, %v531
    %v564 = vmul.f32 %v516, %v532
    %v565 = vmul.f32 %v517, %v533
    %v566 = vmul.f32 %v518, %v534
    %v567 = vmul.f32 %v519, %v535
    %v568 = vmul.f32 %v520, %v536
    %v569 = vmul.f32 %v521, %v537
    %v570 = vmul.f32 %v522, %v538
    %v571 = vmul.f32 %v539, %v427
    %v572 = vmul.f32 %v540, %v428
    %v573 = vmul.f32 %v541, %v429
    %v574 = vmul.f32 %v542, %v430
    %v575 = vmul.f32 %v543, %v431
    %v576 = vmul.f32 %v544, %v432
    %v577 = vmul.f32 %v545, %v433
    %v578 = vmul.f32 %v546, %v434
    %v579 = vmul.f32 %v547, %v435
    %v580 = vmul.f32 %v548, %v436
    %v581 = vmul.f32 %v549, %v437
    %v582 = vmul.f32 %v550, %v438
    %v583 = vmul.f32 %v551, %v439
    %v584 = vmul.f32 %v552, %v440
    %v585 = vmul.f32 %v553, %v441
    %v586 = vmul.f32 %v554, %v442
    %v587 = vmul.f32 %v571, 676.5204
    %v588 = vmul.f32 %v572, 676.5204
    %v589 = vmul.f32 %v573, 676.5204
    %v590 = vmul.f32 %v574, 676.5204
    %v591 = vmul.f32 %v575, 676.5204
    %v592 = vmul.f32 %v576, 676.5204
    %v593 = vmul.f32 %v577, 676.5204
    %v594 = vmul.f32 %v578, 676.5204
    %v595 = vmul.f32 %v579, 676.5204
    %v596 = vmul.f32 %v580, 676.5204
    %v597 = vmul.f32 %v581, 676.5204
    %v598 = vmul.f32 %v582, 676.5204
    %v599 = vmul.f32 %v583, 676.5204
    %v600 = vmul.f32 %v584, 676.5204
    %v601 = vmul.f32 %v585, 676.5204
    %v602 = vmul.f32 %v586, 676.5204
    %v603 = vmul.f32 %v379, %v523
    %v604 = vmul.f32 %v380, %v524
    %v605 = vmul.f32 %v381, %v525
    %v606 = vmul.f32 %v382, %v526
    %v607 = vmul.f32 %v383, %v527
    %v608 = vmul.f32 %v384, %v528
    %v609 = vmul.f32 %v385, %v529
    %v610 = vmul.f32 %v386, %v530
    %v611 = vmul.f32 %v387, %v531
    %v612 = vmul.f32 %v388, %v532
    %v613 = vmul.f32 %v389, %v533
    %v614 = vmul.f32 %v390, %v534
    %v615 = vmul.f32 %v391, %v535
    %v616 = vmul.f32 %v392, %v536
    %v617 = vmul.f32 %v393, %v537
    %v618 = vmul.f32 %v394, %v538
    %v619 = vmul.f32 %v603, -1259.1392
    %v620 = vmul.f32 %v604, -1259.1392
    %v621 = vmul.f32 %v605, -1259.1392
    %v622 = vmul.f32 %v606, -1259.1392
    %v623 = vmul.f32 %v607, -1259.1392
    %v624 = vmul.f32 %v608, -1259.1392
    %v625 = vmul.f32 %v609, -1259.1392
    %v626 = vmul.f32 %v610, -1259.1392
    %v627 = vmul.f32 %v611, -1259.1392
    %v628 = vmul.f32 %v612, -1259.1392
    %v629 = vmul.f32 %v613, -1259.1392
    %v630 = vmul.f32 %v614, -1259.1392
    %v631 = vmul.f32 %v615, -1259.1392
    %v632 = vmul.f32 %v616, -1259.1392
    %v633 = vmul.f32 %v617, -1259.1392
    %v634 = vmul.f32 %v618, -1259.1392
    %v635 = vadd.f32 %v587, %v619
    %v636 = vadd.f32 %v588, %v620
    %v637 = vadd.f32 %v589, %v621
    %v638 = vadd.f32 %v590, %v622
    %v639 = vadd.f32 %v591, %v623
    %v640 = vadd.f32 %v592, %v624
    %v641 = vadd.f32 %v593, %v625
    %v642 = vadd.f32 %v594, %v626
    %v643 = vadd.f32 %v595, %v627
    %v644 = vadd.f32 %v596, %v628
    %v645 = vadd.f32 %v597, %v629
    %v646 = vadd.f32 %v598, %v630
    %v647 = vadd.f32 %v599, %v631
    %v648 = vadd.f32 %v600, %v632
    %v649 = vadd.f32 %v601, %v633
    %v650 = vadd.f32 %v602, %v634
    %v651 = vmul.f32 %v507, %v427
    %v652 = vmul.f32 %v508, %v428
    %v653 = vmul.f32 %v509, %v429
    %v654 = vmul.f32 %v510, %v430
    %v655 = vmul.f32 %v511, %v431
    %v656 = vmul.f32 %v512, %v432
    %v657 = vmul.f32 %v513, %v433
    %v658 = vmul.f32 %v514, %v434
    %v659 = vmul.f32 %v515, %v435
    %v660 = vmul.f32 %v516, %v436
    %v661 = vmul.f32 %v517, %v437
    %v662 = vmul.f32 %v518, %v438
    %v663 = vmul.f32 %v519, %v439
    %v664 = vmul.f32 %v520, %v440
    %v665 = vmul.f32 %v521, %v441
    %v666 = vmul.f32 %v522, %v442
    %v667 = vmul.f32 %v651, 771.3234
    %v668 = vmul.f32 %v652, 771.3234
    %v669 = vmul.f32 %v653, 771.3234
    %v670 = vmul.f32 %v654, 771.3234
    %v671 = vmul.f32 %v655, 771.3234
    %v672 = vmul.f32 %v656, 771.3234
    %v673 = vmul.f32 %v657, 771.3234
    %v674 = vmul.f32 %v658, 771.3234
    %v675 = vmul.f32 %v659, 771.3234
    %v676 = vmul.f32 %v660, 771.3234
    %v677 = vmul.f32 %v661, 771.3234
    %v678 = vmul.f32 %v662, 771.3234
    %v679 = vmul.f32 %v663, 771.3234
    %v680 = vmul.f32 %v664, 771.3234
    %v681 = vmul.f32 %v665, 771.3234
    %v682 = vmul.f32 %v666, 771.3234
    %v683 = vadd.f32 %v635, %v667
    %v684 = vadd.f32 %v636, %v668
    %v685 = vadd.f32 %v637, %v669
    %v686 = vadd.f32 %v638, %v670
    %v687 = vadd.f32 %v639, %v671
    %v688 = vadd.f32 %v640, %v672
    %v689 = vadd.f32 %v641, %v673
    %v690 = vadd.f32 %v642, %v674
    %v691 = vadd.f32 %v643, %v675
    %v692 = vadd.f32 %v644, %v676
    %v693 = vadd.f32 %v645, %v677
    %v694 = vadd.f32 %v646, %v678
    %v695 = vadd.f32 %v647, %v679
    %v696 = vadd.f32 %v648, %v680
    %v697 = vadd.f32 %v649, %v681
    %v698 = vadd.f32 %v650, %v682
    %v699 = vmul.f32 %v507, %v411
    %v700 = vmul.f32 %v508, %v412
    %v701 = vmul.f32 %v509, %v413
    %v702 = vmul.f32 %v510, %v414
    %v703 = vmul.f32 %v511, %v415
    %v704 = vmul.f32 %v512, %v416
    %v705 = vmul.f32 %v513, %v417
    %v706 = vmul.f32 %v514, %v418
    %v707 = vmul.f32 %v515, %v419
    %v708 = vmul.f32 %v516, %v420
    %v709 = vmul.f32 %v517, %v421
    %v710 = vmul.f32 %v518, %v422
    %v711 = vmul.f32 %v519, %v423
    %v712 = vmul.f32 %v520, %v424
    %v713 = vmul.f32 %v521, %v425
    %v714 = vmul.f32 %v522, %v426
    %v715 = vmul.f32 %v699, -176.61504
    %v716 = vmul.f32 %v700, -176.61504
    %v717 = vmul.f32 %v701, -176.61504
    %v718 = vmul.f32 %v702, -176.61504
    %v719 = vmul.f32 %v703, -176.61504
    %v720 = vmul.f32 %v704, -176.61504
    %v721 = vmul.f32 %v705, -176.61504
    %v722 = vmul.f32 %v706, -176.61504
    %v723 = vmul.f32 %v707, -176.61504
    %v724 = vmul.f32 %v708, -176.61504
    %v725 = vmul.f32 %v709, -176.61504
    %v726 = vmul.f32 %v710, -176.61504
    %v727 = vmul.f32 %v711, -176.61504
    %v728 = vmul.f32 %v712, -176.61504
    %v729 = vmul.f32 %v713, -176.61504
    %v730 = vmul.f32 %v714, -176.61504
    %v731 = vadd.f32 %v683, %v715
    %v732 = vadd.f32 %v684, %v716
    %v733 = vadd.f32 %v685, %v717
    %v734 = vadd.f32 %v686, %v718
    %v735 = vadd.f32 %v687, %v719
    %v736 = vadd.f32 %v688, %v720
    %v737 = vadd.f32 %v689, %v721
    %v738 = vadd.f32 %v690, %v722
    %v739 = vadd.f32 %v691, %v723
    %v740 = vadd.f32 %v692, %v724
    %v741 = vadd.f32 %v693, %v725
    %v742 = vadd.f32 %v694, %v726
    %v743 = vadd.f32 %v695, %v727
    %v744 = vadd.f32 %v696, %v728
    %v745 = vadd.f32 %v697, %v729
    %v746 = vadd.f32 %v698, %v730
    %v747 = vmul.f32 %v443, %v459
    %v748 = vmul.f32 %v444, %v460
    %v749 = vmul.f32 %v445, %v461
    %v750 = vmul.f32 %v446, %v462
    %v751 = vmul.f32 %v447, %v463
    %v752 = vmul.f32 %v448, %v464
    %v753 = vmul.f32 %v449, %v465
    %v754 = vmul.f32 %v450, %v466
    %v755 = vmul.f32 %v451, %v467
    %v756 = vmul.f32 %v452, %v468
    %v757 = vmul.f32 %v453, %v469
    %v758 = vmul.f32 %v454, %v470
    %v759 = vmul.f32 %v455, %v471
    %v760 = vmul.f32 %v456, %v472
    %v761 = vmul.f32 %v457, %v473
    %v762 = vmul.f32 %v458, %v474
    %v763 = vmul.f32 %v475, %v491
    %v764 = vmul.f32 %v476, %v492
    %v765 = vmul.f32 %v477, %v493
    %v766 = vmul.f32 %v478, %v494
    %v767 = vmul.f32 %v479, %v495
    %v768 = vmul.f32 %v480, %v496
    %v769 = vmul.f32 %v481, %v497
    %v770 = vmul.f32 %v482, %v498
    %v771 = vmul.f32 %v483, %v499
    %v772 = vmul.f32 %v484, %v500
    %v773 = vmul.f32 %v485, %v501
    %v774 = vmul.f32 %v486, %v502
    %v775 = vmul.f32 %v487, %v503
    %v776 = vmul.f32 %v488, %v504
    %v777 = vmul.f32 %v489, %v505
    %v778 = vmul.f32 %v490, %v506
    %v779 = vmul.f32 %v459, %v475
    %v780 = vmul.f32 %v460, %v476
    %v781 = vmul.f32 %v461, %v477
    %v782 = vmul.f32 %v462, %v478
    %v783 = vmul.f32 %v463, %v479
    %v784 = vmul.f32 %v464, %v480
    %v785 = vmul.f32 %v465, %v481
    %v786 = vmul.f32 %v466, %v482
    %v787 = vmul.f32 %v467, %v483
    %v788 = vmul.f32 %v468, %v484
    %v789 = vmul.f32 %v469, %v485
    %v790 = vmul.f32 %v470, %v486
    %v791 = vmul.f32 %v471, %v487
    %v792 = vmul.f32 %v472, %v488
    %v793 = vmul.f32 %v473, %v489
    %v794 = vmul.f32 %v474, %v490
    %v795 = vmul.f32 %v747, %v763
    %v796 = vmul.f32 %v748, %v764
    %v797 = vmul.f32 %v749, %v765
    %v798 = vmul.f32 %v750, %v766
    %v799 = vmul.f32 %v751, %v767
    %v800 = vmul.f32 %v752, %v768
    %v801 = vmul.f32 %v753, %v769
    %v802 = vmul.f32 %v754, %v770
    %v803 = vmul.f32 %v755, %v771
    %v804 = vmul.f32 %v756, %v772
    %v805 = vmul.f32 %v757, %v773
    %v806 = vmul.f32 %v758, %v774
    %v807 = vmul.f32 %v759, %v775
    %v808 = vmul.f32 %v760, %v776
    %v809 = vmul.f32 %v761, %v777
    %v810 = vmul.f32 %v762, %v778
    %v811 = vmul.f32 %v779, %v491
    %v812 = vmul.f32 %v780, %v492
    %v813 = vmul.f32 %v781, %v493
    %v814 = vmul.f32 %v782, %v494
    %v815 = vmul.f32 %v783, %v495
    %v816 = vmul.f32 %v784, %v496
    %v817 = vmul.f32 %v785, %v497
    %v818 = vmul.f32 %v786, %v498
    %v819 = vmul.f32 %v787, %v499
    %v820 = vmul.f32 %v788, %v500
    %v821 = vmul.f32 %v789, %v501
    %v822 = vmul.f32 %v790, %v502
    %v823 = vmul.f32 %v791, %v503
    %v824 = vmul.f32 %v792, %v504
    %v825 = vmul.f32 %v793, %v505
    %v826 = vmul.f32 %v794, %v506
    %v827 = vmul.f32 %v811, 12.507343
    %v828 = vmul.f32 %v812, 12.507343
    %v829 = vmul.f32 %v813, 12.507343
    %v830 = vmul.f32 %v814, 12.507343
    %v831 = vmul.f32 %v815, 12.507343
    %v832 = vmul.f32 %v816, 12.507343
    %v833 = vmul.f32 %v817, 12.507343
    %v834 = vmul.f32 %v818, 12.507343
    %v835 = vmul.f32 %v819, 12.507343
    %v836 = vmul.f32 %v820, 12.507343
    %v837 = vmul.f32 %v821, 12.507343
    %v838 = vmul.f32 %v822, 12.507343
    %v839 = vmul.f32 %v823, 12.507343
    %v840 = vmul.f32 %v824, 12.507343
    %v841 = vmul.f32 %v825, 12.507343
    %v842 = vmul.f32 %v826, 12.507343
    %v843 = vmul.f32 %v443, %v763
    %v844 = vmul.f32 %v444, %v764
    %v845 = vmul.f32 %v445, %v765
    %v846 = vmul.f32 %v446, %v766
    %v847 = vmul.f32 %v447, %v767
    %v848 = vmul.f32 %v448, %v768
    %v849 = vmul.f32 %v449, %v769
    %v850 = vmul.f32 %v450, %v770
    %v851 = vmul.f32 %v451, %v771
    %v852 = vmul.f32 %v452, %v772
    %v853 = vmul.f32 %v453, %v773
    %v854 = vmul.f32 %v454, %v774
    %v855 = vmul.f32 %v455, %v775
    %v856 = vmul.f32 %v456, %v776
    %v857 = vmul.f32 %v457, %v777
    %v858 = vmul.f32 %v458, %v778
    %v859 = vmul.f32 %v843, -0.1385711
    %v860 = vmul.f32 %v844, -0.1385711
    %v861 = vmul.f32 %v845, -0.1385711
    %v862 = vmul.f32 %v846, -0.1385711
    %v863 = vmul.f32 %v847, -0.1385711
    %v864 = vmul.f32 %v848, -0.1385711
    %v865 = vmul.f32 %v849, -0.1385711
    %v866 = vmul.f32 %v850, -0.1385711
    %v867 = vmul.f32 %v851, -0.1385711
    %v868 = vmul.f32 %v852, -0.1385711
    %v869 = vmul.f32 %v853, -0.1385711
    %v870 = vmul.f32 %v854, -0.1385711
    %v871 = vmul.f32 %v855, -0.1385711
    %v872 = vmul.f32 %v856, -0.1385711
    %v873 = vmul.f32 %v857, -0.1385711
    %v874 = vmul.f32 %v858, -0.1385711
    %v875 = vadd.f32 %v827, %v859
    %v876 = vadd.f32 %v828, %v860
    %v877 = vadd.f32 %v829, %v861
    %v878 = vadd.f32 %v830, %v862
    %v879 = vadd.f32 %v831, %v863
    %v880 = vadd.f32 %v832, %v864
    %v881 = vadd.f32 %v833, %v865
    %v882 = vadd.f32 %v834, %v866
    %v883 = vadd.f32 %v835, %v867
    %v884 = vadd.f32 %v836, %v868
    %v885 = vadd.f32 %v837, %v869
    %v886 = vadd.f32 %v838, %v870
    %v887 = vadd.f32 %v839, %v871
    %v888 = vadd.f32 %v840, %v872
    %v889 = vadd.f32 %v841, %v873
    %v890 = vadd.f32 %v842, %v874
    %v891 = vmul.f32 %v747, %v491
    %v892 = vmul.f32 %v748, %v492
    %v893 = vmul.f32 %v749, %v493
    %v894 = vmul.f32 %v750, %v494
    %v895 = vmul.f32 %v751, %v495
    %v896 = vmul.f32 %v752, %v496
    %v897 = vmul.f32 %v753, %v497
    %v898 = vmul.f32 %v754, %v498
    %v899 = vmul.f32 %v755, %v499
    %v900 = vmul.f32 %v756, %v500
    %v901 = vmul.f32 %v757, %v501
    %v902 = vmul.f32 %v758, %v502
    %v903 = vmul.f32 %v759, %v503
    %v904 = vmul.f32 %v760, %v504
    %v905 = vmul.f32 %v761, %v505
    %v906 = vmul.f32 %v762, %v506
    %v907 = vmul.f32 %v891, 9.984369e-06
    %v908 = vmul.f32 %v892, 9.984369e-06
    %v909 = vmul.f32 %v893, 9.984369e-06
    %v910 = vmul.f32 %v894, 9.984369e-06
    %v911 = vmul.f32 %v895, 9.984369e-06
    %v912 = vmul.f32 %v896, 9.984369e-06
    %v913 = vmul.f32 %v897, 9.984369e-06
    %v914 = vmul.f32 %v898, 9.984369e-06
    %v915 = vmul.f32 %v899, 9.984369e-06
    %v916 = vmul.f32 %v900, 9.984369e-06
    %v917 = vmul.f32 %v901, 9.984369e-06
    %v918 = vmul.f32 %v902, 9.984369e-06
    %v919 = vmul.f32 %v903, 9.984369e-06
    %v920 = vmul.f32 %v904, 9.984369e-06
    %v921 = vmul.f32 %v905, 9.984369e-06
    %v922 = vmul.f32 %v906, 9.984369e-06
    %v923 = vadd.f32 %v875, %v907
    %v924 = vadd.f32 %v876, %v908
    %v925 = vadd.f32 %v877, %v909
    %v926 = vadd.f32 %v878, %v910
    %v927 = vadd.f32 %v879, %v911
    %v928 = vadd.f32 %v880, %v912
    %v929 = vadd.f32 %v881, %v913
    %v930 = vadd.f32 %v882, %v914
    %v931 = vadd.f32 %v883, %v915
    %v932 = vadd.f32 %v884, %v916
    %v933 = vadd.f32 %v885, %v917
    %v934 = vadd.f32 %v886, %v918
    %v935 = vadd.f32 %v887, %v919
    %v936 = vadd.f32 %v888, %v920
    %v937 = vadd.f32 %v889, %v921
    %v938 = vadd.f32 %v890, %v922
    %v939 = vmul.f32 %v747, %v475
    %v940 = vmul.f32 %v748, %v476
    %v941 = vmul.f32 %v749, %v477
    %v942 = vmul.f32 %v750, %v478
    %v943 = vmul.f32 %v751, %v479
    %v944 = vmul.f32 %v752, %v480
    %v945 = vmul.f32 %v753, %v481
    %v946 = vmul.f32 %v754, %v482
    %v947 = vmul.f32 %v755, %v483
    %v948 = vmul.f32 %v756, %v484
    %v949 = vmul.f32 %v757, %v485
    %v950 = vmul.f32 %v758, %v486
    %v951 = vmul.f32 %v759, %v487
    %v952 = vmul.f32 %v760, %v488
    %v953 = vmul.f32 %v761, %v489
    %v954 = vmul.f32 %v762, %v490
    %v955 = vmul.f32 %v939, 1.5056327e-07
    %v956 = vmul.f32 %v940, 1.5056327e-07
    %v957 = vmul.f32 %v941, 1.5056327e-07
    %v958 = vmul.f32 %v942, 1.5056327e-07
    %v959 = vmul.f32 %v943, 1.5056327e-07
    %v960 = vmul.f32 %v944, 1.5056327e-07
    %v961 = vmul.f32 %v945, 1.5056327e-07
    %v962 = vmul.f32 %v946, 1.5056327e-07
    %v963 = vmul.f32 %v947, 1.5056327e-07
    %v964 = vmul.f32 %v948, 1.5056327e-07
    %v965 = vmul.f32 %v949, 1.5056327e-07
    %v966 = vmul.f32 %v950, 1.5056327e-07
    %v967 = vmul.f32 %v951, 1.5056327e-07
    %v968 = vmul.f32 %v952, 1.5056327e-07
    %v969 = vmul.f32 %v953, 1.5056327e-07
    %v970 = vmul.f32 %v954, 1.5056327e-07
    %v971 = vadd.f32 %v923, %v955
    %v972 = vadd.f32 %v924, %v956
    %v973 = vadd.f32 %v925, %v957
    %v974 = vadd.f32 %v926, %v958
    %v975 = vadd.f32 %v927, %v959
    %v976 = vadd.f32 %v928, %v960
    %v977 = vadd.f32 %v929, %v961
    %v978 = vadd.f32 %v930, %v962
    %v979 = vadd.f32 %v931, %v963
    %v980 = vadd.f32 %v932, %v964
    %v981 = vadd.f32 %v933, %v965
    %v982 = vadd.f32 %v934, %v966
    %v983 = vadd.f32 %v935, %v967
    %v984 = vadd.f32 %v936, %v968
    %v985 = vadd.f32 %v937, %v969
    %v986 = vadd.f32 %v938, %v970
    %v987 = vrcp.pop %v555
    %v988 = vmul.f32 %v731, %v987
    %v989 = vrcp.pop %v556
    %v990 = vmul.f32 %v732, %v989
    %v991 = vrcp.pop %v557
    %v992 = vmul.f32 %v733, %v991
    %v993 = vrcp.pop %v558
    %v994 = vmul.f32 %v734, %v993
    %v995 = vrcp.pop %v559
    %v996 = vmul.f32 %v735, %v995
    %v997 = vrcp.pop %v560
    %v998 = vmul.f32 %v736, %v997
    %v999 = vrcp.pop %v561
    %v1000 = vmul.f32 %v737, %v999
    %v1001 = vrcp.pop %v562
    %v1002 = vmul.f32 %v738, %v1001
    %v1003 = vrcp.pop %v563
    %v1004 = vmul.f32 %v739, %v1003
    %v1005 = vrcp.pop %v564
    %v1006 = vmul.f32 %v740, %v1005
    %v1007 = vrcp.pop %v565
    %v1008 = vmul.f32 %v741, %v1007
    %v1009 = vrcp.pop %v566
    %v1010 = vmul.f32 %v742, %v1009
    %v1011 = vrcp.pop %v567
    %v1012 = vmul.f32 %v743, %v1011
    %v1013 = vrcp.pop %v568
    %v1014 = vmul.f32 %v744, %v1013
    %v1015 = vrcp.pop %v569
    %v1016 = vmul.f32 %v745, %v1015
    %v1017 = vrcp.pop %v570
    %v1018 = vmul.f32 %v746, %v1017
    %v1019 = vadd.f32 %v988, 1.0
    %v1020 = vadd.f32 %v990, 1.0
    %v1021 = vadd.f32 %v992, 1.0
    %v1022 = vadd.f32 %v994, 1.0
    %v1023 = vadd.f32 %v996, 1.0
    %v1024 = vadd.f32 %v998, 1.0
    %v1025 = vadd.f32 %v1000, 1.0
    %v1026 = vadd.f32 %v1002, 1.0
    %v1027 = vadd.f32 %v1004, 1.0
    %v1028 = vadd.f32 %v1006, 1.0
    %v1029 = vadd.f32 %v1008, 1.0
    %v1030 = vadd.f32 %v1010, 1.0
    %v1031 = vadd.f32 %v1012, 1.0
    %v1032 = vadd.f32 %v1014, 1.0
    %v1033 = vadd.f32 %v1016, 1.0
    %v1034 = vadd.f32 %v1018, 1.0
    %v1035 = vrcp.pop %v795
    %v1036 = vmul.f32 %v971, %v1035
    %v1037 = vrcp.pop %v796
    %v1038 = vmul.f32 %v972, %v1037
    %v1039 = vrcp.pop %v797
    %v1040 = vmul.f32 %v973, %v1039
    %v1041 = vrcp.pop %v798
    %v1042 = vmul.f32 %v974, %v1041
    %v1043 = vrcp.pop %v799
    %v1044 = vmul.f32 %v975, %v1043
    %v1045 = vrcp.pop %v800
    %v1046 = vmul.f32 %v976, %v1045
    %v1047 = vrcp.pop %v801
    %v1048 = vmul.f32 %v977, %v1047
    %v1049 = vrcp.pop %v802
    %v1050 = vmul.f32 %v978, %v1049
    %v1051 = vrcp.pop %v803
    %v1052 = vmul.f32 %v979, %v1051
    %v1053 = vrcp.pop %v804
    %v1054 = vmul.f32 %v980, %v1053
    %v1055 = vrcp.pop %v805
    %v1056 = vmul.f32 %v981, %v1055
    %v1057 = vrcp.pop %v806
    %v1058 = vmul.f32 %v982, %v1057
    %v1059 = vrcp.pop %v807
    %v1060 = vmul.f32 %v983, %v1059
    %v1061 = vrcp.pop %v808
    %v1062 = vmul.f32 %v984, %v1061
    %v1063 = vrcp.pop %v809
    %v1064 = vmul.f32 %v985, %v1063
    %v1065 = vrcp.pop %v810
    %v1066 = vmul.f32 %v986, %v1065
    %v1067 = vadd.f32 %v1019, %v1036
    %v1068 = vadd.f32 %v1020, %v1038
    %v1069 = vadd.f32 %v1021, %v1040
    %v1070 = vadd.f32 %v1022, %v1042
    %v1071 = vadd.f32 %v1023, %v1044
    %v1072 = vadd.f32 %v1024, %v1046
    %v1073 = vadd.f32 %v1025, %v1048
    %v1074 = vadd.f32 %v1026, %v1050
    %v1075 = vadd.f32 %v1027, %v1052
    %v1076 = vadd.f32 %v1028, %v1054
    %v1077 = vadd.f32 %v1029, %v1056
    %v1078 = vadd.f32 %v1030, %v1058
    %v1079 = vadd.f32 %v1031, %v1060
    %v1080 = vadd.f32 %v1032, %v1062
    %v1081 = vadd.f32 %v1033, %v1064
    %v1082 = vadd.f32 %v1034, %v1066
    %v1083 = vadd.f32 %v379, 6.5
    %v1084 = vadd.f32 %v380, 6.5
    %v1085 = vadd.f32 %v381, 6.5
    %v1086 = vadd.f32 %v382, 6.5
    %v1087 = vadd.f32 %v383, 6.5
    %v1088 = vadd.f32 %v384, 6.5
    %v1089 = vadd.f32 %v385, 6.5
    %v1090 = vadd.f32 %v386, 6.5
    %v1091 = vadd.f32 %v387, 6.5
    %v1092 = vadd.f32 %v388, 6.5
    %v1093 = vadd.f32 %v389, 6.5
    %v1094 = vadd.f32 %v390, 6.5
    %v1095 = vadd.f32 %v391, 6.5
    %v1096 = vadd.f32 %v392, 6.5
    %v1097 = vadd.f32 %v393, 6.5
    %v1098 = vadd.f32 %v394, 6.5
    %v1099 = vsub.f32 %v379, 0.5
    %v1100 = vsub.f32 %v380, 0.5
    %v1101 = vsub.f32 %v381, 0.5
    %v1102 = vsub.f32 %v382, 0.5
    %v1103 = vsub.f32 %v383, 0.5
    %v1104 = vsub.f32 %v384, 0.5
    %v1105 = vsub.f32 %v385, 0.5
    %v1106 = vsub.f32 %v386, 0.5
    %v1107 = vsub.f32 %v387, 0.5
    %v1108 = vsub.f32 %v388, 0.5
    %v1109 = vsub.f32 %v389, 0.5
    %v1110 = vsub.f32 %v390, 0.5
    %v1111 = vsub.f32 %v391, 0.5
    %v1112 = vsub.f32 %v392, 0.5
    %v1113 = vsub.f32 %v393, 0.5
    %v1114 = vsub.f32 %v394, 0.5
    %v1115 = vlog2.pop %v1083
    %v1116 = vmul.f32 %v1115, 0.6931472
    %v1117 = vlog2.pop %v1084
    %v1118 = vmul.f32 %v1117, 0.6931472
    %v1119 = vlog2.pop %v1085
    %v1120 = vmul.f32 %v1119, 0.6931472
    %v1121 = vlog2.pop %v1086
    %v1122 = vmul.f32 %v1121, 0.6931472
    %v1123 = vlog2.pop %v1087
    %v1124 = vmul.f32 %v1123, 0.6931472
    %v1125 = vlog2.pop %v1088
    %v1126 = vmul.f32 %v1125, 0.6931472
    %v1127 = vlog2.pop %v1089
    %v1128 = vmul.f32 %v1127, 0.6931472
    %v1129 = vlog2.pop %v1090
    %v1130 = vmul.f32 %v1129, 0.6931472
    %v1131 = vlog2.pop %v1091
    %v1132 = vmul.f32 %v1131, 0.6931472
    %v1133 = vlog2.pop %v1092
    %v1134 = vmul.f32 %v1133, 0.6931472
    %v1135 = vlog2.pop %v1093
    %v1136 = vmul.f32 %v1135, 0.6931472
    %v1137 = vlog2.pop %v1094
    %v1138 = vmul.f32 %v1137, 0.6931472
    %v1139 = vlog2.pop %v1095
    %v1140 = vmul.f32 %v1139, 0.6931472
    %v1141 = vlog2.pop %v1096
    %v1142 = vmul.f32 %v1141, 0.6931472
    %v1143 = vlog2.pop %v1097
    %v1144 = vmul.f32 %v1143, 0.6931472
    %v1145 = vlog2.pop %v1098
    %v1146 = vmul.f32 %v1145, 0.6931472
    %v1147 = vmul.f32 %v1099, %v1116
    %v1148 = vmul.f32 %v1100, %v1118
    %v1149 = vmul.f32 %v1101, %v1120
    %v1150 = vmul.f32 %v1102, %v1122
    %v1151 = vmul.f32 %v1103, %v1124
    %v1152 = vmul.f32 %v1104, %v1126
    %v1153 = vmul.f32 %v1105, %v1128
    %v1154 = vmul.f32 %v1106, %v1130
    %v1155 = vmul.f32 %v1107, %v1132
    %v1156 = vmul.f32 %v1108, %v1134
    %v1157 = vmul.f32 %v1109, %v1136
    %v1158 = vmul.f32 %v1110, %v1138
    %v1159 = vmul.f32 %v1111, %v1140
    %v1160 = vmul.f32 %v1112, %v1142
    %v1161 = vmul.f32 %v1113, %v1144
    %v1162 = vmul.f32 %v1114, %v1146
    %v1163 = vadd.f32 %v1147, 0.9189385
    %v1164 = vadd.f32 %v1148, 0.9189385
    %v1165 = vadd.f32 %v1149, 0.9189385
    %v1166 = vadd.f32 %v1150, 0.9189385
    %v1167 = vadd.f32 %v1151, 0.9189385
    %v1168 = vadd.f32 %v1152, 0.9189385
    %v1169 = vadd.f32 %v1153, 0.9189385
    %v1170 = vadd.f32 %v1154, 0.9189385
    %v1171 = vadd.f32 %v1155, 0.9189385
    %v1172 = vadd.f32 %v1156, 0.9189385
    %v1173 = vadd.f32 %v1157, 0.9189385
    %v1174 = vadd.f32 %v1158, 0.9189385
    %v1175 = vadd.f32 %v1159, 0.9189385
    %v1176 = vadd.f32 %v1160, 0.9189385
    %v1177 = vadd.f32 %v1161, 0.9189385
    %v1178 = vadd.f32 %v1162, 0.9189385
    %v1179 = vsub.f32 %v1163, %v1083
    %v1180 = vsub.f32 %v1164, %v1084
    %v1181 = vsub.f32 %v1165, %v1085
    %v1182 = vsub.f32 %v1166, %v1086
    %v1183 = vsub.f32 %v1167, %v1087
    %v1184 = vsub.f32 %v1168, %v1088
    %v1185 = vsub.f32 %v1169, %v1089
    %v1186 = vsub.f32 %v1170, %v1090
    %v1187 = vsub.f32 %v1171, %v1091
    %v1188 = vsub.f32 %v1172, %v1092
    %v1189 = vsub.f32 %v1173, %v1093
    %v1190 = vsub.f32 %v1174, %v1094
    %v1191 = vsub.f32 %v1175, %v1095
    %v1192 = vsub.f32 %v1176, %v1096
    %v1193 = vsub.f32 %v1177, %v1097
    %v1194 = vsub.f32 %v1178, %v1098
    %v1195 = vlog2.pop %v1067
    %v1196 = vmul.f32 %v1195, 0.6931472
    %v1197 = vlog2.pop %v1068
    %v1198 = vmul.f32 %v1197, 0.6931472
    %v1199 = vlog2.pop %v1069
    %v1200 = vmul.f32 %v1199, 0.6931472
    %v1201 = vlog2.pop %v1070
    %v1202 = vmul.f32 %v1201, 0.6931472
    %v1203 = vlog2.pop %v1071
    %v1204 = vmul.f32 %v1203, 0.6931472
    %v1205 = vlog2.pop %v1072
    %v1206 = vmul.f32 %v1205, 0.6931472
    %v1207 = vlog2.pop %v1073
    %v1208 = vmul.f32 %v1207, 0.6931472
    %v1209 = vlog2.pop %v1074
    %v1210 = vmul.f32 %v1209, 0.6931472
    %v1211 = vlog2.pop %v1075
    %v1212 = vmul.f32 %v1211, 0.6931472
    %v1213 = vlog2.pop %v1076
    %v1214 = vmul.f32 %v1213, 0.6931472
    %v1215 = vlog2.pop %v1077
    %v1216 = vmul.f32 %v1215, 0.6931472
    %v1217 = vlog2.pop %v1078
    %v1218 = vmul.f32 %v1217, 0.6931472
    %v1219 = vlog2.pop %v1079
    %v1220 = vmul.f32 %v1219, 0.6931472
    %v1221 = vlog2.pop %v1080
    %v1222 = vmul.f32 %v1221, 0.6931472
    %v1223 = vlog2.pop %v1081
    %v1224 = vmul.f32 %v1223, 0.6931472
    %v1225 = vlog2.pop %v1082
    %v1226 = vmul.f32 %v1225, 0.6931472
    %v1227 = vadd.f32 %v1179, %v1196
    %v1228 = vadd.f32 %v1180, %v1198
    %v1229 = vadd.f32 %v1181, %v1200
    %v1230 = vadd.f32 %v1182, %v1202
    %v1231 = vadd.f32 %v1183, %v1204
    %v1232 = vadd.f32 %v1184, %v1206
    %v1233 = vadd.f32 %v1185, %v1208
    %v1234 = vadd.f32 %v1186, %v1210
    %v1235 = vadd.f32 %v1187, %v1212
    %v1236 = vadd.f32 %v1188, %v1214
    %v1237 = vadd.f32 %v1189, %v1216
    %v1238 = vadd.f32 %v1190, %v1218
    %v1239 = vadd.f32 %v1191, %v1220
    %v1240 = vadd.f32 %v1192, %v1222
    %v1241 = vadd.f32 %v1193, %v1224
    %v1242 = vadd.f32 %v1194, %v1226
    %v1243 = vsub.f32 %v1227, %v204
    %v1244 = vsub.f32 %v1228, %v206
    %v1245 = vsub.f32 %v1229, %v208
    %v1246 = vsub.f32 %v1230, %v210
    %v1247 = vsub.f32 %v1231, %v212
    %v1248 = vsub.f32 %v1232, %v214
    %v1249 = vsub.f32 %v1233, %v216
    %v1250 = vsub.f32 %v1234, %v218
    %v1251 = vsub.f32 %v1235, %v220
    %v1252 = vsub.f32 %v1236, %v222
    %v1253 = vsub.f32 %v1237, %v224
    %v1254 = vsub.f32 %v1238, %v226
    %v1255 = vsub.f32 %v1239, %v228
    %v1256 = vsub.f32 %v1240, %v230
    %v1257 = vsub.f32 %v1241, %v232
    %v1258 = vsub.f32 %v1242, %v234
    %v1259 = vsel %vm347, %v1243, %v1227
    %v1260 = vsel %vm348, %v1244, %v1228
    %v1261 = vsel %vm349, %v1245, %v1229
    %v1262 = vsel %vm350, %v1246, %v1230
    %v1263 = vsel %vm351, %v1247, %v1231
    %v1264 = vsel %vm352, %v1248, %v1232
    %v1265 = vsel %vm353, %v1249, %v1233
    %v1266 = vsel %vm354, %v1250, %v1234
    %v1267 = vsel %vm355, %v1251, %v1235
    %v1268 = vsel %vm356, %v1252, %v1236
    %v1269 = vsel %vm357, %v1253, %v1237
    %v1270 = vsel %vm358, %v1254, %v1238
    %v1271 = vsel %vm359, %v1255, %v1239
    %v1272 = vsel %vm360, %v1256, %v1240
    %v1273 = vsel %vm361, %v1257, %v1241
    %v1274 = vsel %vm362, %v1258, %v1242
    %v1275 = vadd.f32 %v123, 1.0
    %v1276 = vadd.f32 %v124, 1.0
    %v1277 = vadd.f32 %v125, 1.0
    %v1278 = vadd.f32 %v126, 1.0
    %v1279 = vadd.f32 %v127, 1.0
    %v1280 = vadd.f32 %v128, 1.0
    %v1281 = vadd.f32 %v129, 1.0
    %v1282 = vadd.f32 %v130, 1.0
    %v1283 = vadd.f32 %v131, 1.0
    %v1284 = vadd.f32 %v132, 1.0
    %v1285 = vadd.f32 %v133, 1.0
    %v1286 = vadd.f32 %v134, 1.0
    %v1287 = vadd.f32 %v135, 1.0
    %v1288 = vadd.f32 %v136, 1.0
    %v1289 = vadd.f32 %v137, 1.0
    %v1290 = vadd.f32 %v138, 1.0
    %v1291 = vadd.f32 %v1275, 1.0
    %v1292 = vadd.f32 %v1276, 1.0
    %v1293 = vadd.f32 %v1277, 1.0
    %v1294 = vadd.f32 %v1278, 1.0
    %v1295 = vadd.f32 %v1279, 1.0
    %v1296 = vadd.f32 %v1280, 1.0
    %v1297 = vadd.f32 %v1281, 1.0
    %v1298 = vadd.f32 %v1282, 1.0
    %v1299 = vadd.f32 %v1283, 1.0
    %v1300 = vadd.f32 %v1284, 1.0
    %v1301 = vadd.f32 %v1285, 1.0
    %v1302 = vadd.f32 %v1286, 1.0
    %v1303 = vadd.f32 %v1287, 1.0
    %v1304 = vadd.f32 %v1288, 1.0
    %v1305 = vadd.f32 %v1289, 1.0
    %v1306 = vadd.f32 %v1290, 1.0
    %v1307 = vadd.f32 %v1275, 2.0
    %v1308 = vadd.f32 %v1276, 2.0
    %v1309 = vadd.f32 %v1277, 2.0
    %v1310 = vadd.f32 %v1278, 2.0
    %v1311 = vadd.f32 %v1279, 2.0
    %v1312 = vadd.f32 %v1280, 2.0
    %v1313 = vadd.f32 %v1281, 2.0
    %v1314 = vadd.f32 %v1282, 2.0
    %v1315 = vadd.f32 %v1283, 2.0
    %v1316 = vadd.f32 %v1284, 2.0
    %v1317 = vadd.f32 %v1285, 2.0
    %v1318 = vadd.f32 %v1286, 2.0
    %v1319 = vadd.f32 %v1287, 2.0
    %v1320 = vadd.f32 %v1288, 2.0
    %v1321 = vadd.f32 %v1289, 2.0
    %v1322 = vadd.f32 %v1290, 2.0
    %v1323 = vadd.f32 %v1275, 3.0
    %v1324 = vadd.f32 %v1276, 3.0
    %v1325 = vadd.f32 %v1277, 3.0
    %v1326 = vadd.f32 %v1278, 3.0
    %v1327 = vadd.f32 %v1279, 3.0
    %v1328 = vadd.f32 %v1280, 3.0
    %v1329 = vadd.f32 %v1281, 3.0
    %v1330 = vadd.f32 %v1282, 3.0
    %v1331 = vadd.f32 %v1283, 3.0
    %v1332 = vadd.f32 %v1284, 3.0
    %v1333 = vadd.f32 %v1285, 3.0
    %v1334 = vadd.f32 %v1286, 3.0
    %v1335 = vadd.f32 %v1287, 3.0
    %v1336 = vadd.f32 %v1288, 3.0
    %v1337 = vadd.f32 %v1289, 3.0
    %v1338 = vadd.f32 %v1290, 3.0
    %v1339 = vadd.f32 %v1275, 4.0
    %v1340 = vadd.f32 %v1276, 4.0
    %v1341 = vadd.f32 %v1277, 4.0
    %v1342 = vadd.f32 %v1278, 4.0
    %v1343 = vadd.f32 %v1279, 4.0
    %v1344 = vadd.f32 %v1280, 4.0
    %v1345 = vadd.f32 %v1281, 4.0
    %v1346 = vadd.f32 %v1282, 4.0
    %v1347 = vadd.f32 %v1283, 4.0
    %v1348 = vadd.f32 %v1284, 4.0
    %v1349 = vadd.f32 %v1285, 4.0
    %v1350 = vadd.f32 %v1286, 4.0
    %v1351 = vadd.f32 %v1287, 4.0
    %v1352 = vadd.f32 %v1288, 4.0
    %v1353 = vadd.f32 %v1289, 4.0
    %v1354 = vadd.f32 %v1290, 4.0
    %v1355 = vadd.f32 %v1275, 5.0
    %v1356 = vadd.f32 %v1276, 5.0
    %v1357 = vadd.f32 %v1277, 5.0
    %v1358 = vadd.f32 %v1278, 5.0
    %v1359 = vadd.f32 %v1279, 5.0
    %v1360 = vadd.f32 %v1280, 5.0
    %v1361 = vadd.f32 %v1281, 5.0
    %v1362 = vadd.f32 %v1282, 5.0
    %v1363 = vadd.f32 %v1283, 5.0
    %v1364 = vadd.f32 %v1284, 5.0
    %v1365 = vadd.f32 %v1285, 5.0
    %v1366 = vadd.f32 %v1286, 5.0
    %v1367 = vadd.f32 %v1287, 5.0
    %v1368 = vadd.f32 %v1288, 5.0
    %v1369 = vadd.f32 %v1289, 5.0
    %v1370 = vadd.f32 %v1290, 5.0
    %v1371 = vadd.f32 %v1275, 6.0
    %v1372 = vadd.f32 %v1276, 6.0
    %v1373 = vadd.f32 %v1277, 6.0
    %v1374 = vadd.f32 %v1278, 6.0
    %v1375 = vadd.f32 %v1279, 6.0
    %v1376 = vadd.f32 %v1280, 6.0
    %v1377 = vadd.f32 %v1281, 6.0
    %v1378 = vadd.f32 %v1282, 6.0
    %v1379 = vadd.f32 %v1283, 6.0
    %v1380 = vadd.f32 %v1284, 6.0
    %v1381 = vadd.f32 %v1285, 6.0
    %v1382 = vadd.f32 %v1286, 6.0
    %v1383 = vadd.f32 %v1287, 6.0
    %v1384 = vadd.f32 %v1288, 6.0
    %v1385 = vadd.f32 %v1289, 6.0
    %v1386 = vadd.f32 %v1290, 6.0
    %v1387 = vadd.f32 %v1275, 7.0
    %v1388 = vadd.f32 %v1276, 7.0
    %v1389 = vadd.f32 %v1277, 7.0
    %v1390 = vadd.f32 %v1278, 7.0
    %v1391 = vadd.f32 %v1279, 7.0
    %v1392 = vadd.f32 %v1280, 7.0
    %v1393 = vadd.f32 %v1281, 7.0
    %v1394 = vadd.f32 %v1282, 7.0
    %v1395 = vadd.f32 %v1283, 7.0
    %v1396 = vadd.f32 %v1284, 7.0
    %v1397 = vadd.f32 %v1285, 7.0
    %v1398 = vadd.f32 %v1286, 7.0
    %v1399 = vadd.f32 %v1287, 7.0
    %v1400 = vadd.f32 %v1288, 7.0
    %v1401 = vadd.f32 %v1289, 7.0
    %v1402 = vadd.f32 %v1290, 7.0
    %v1403 = vmul.f32 %v1275, %v1291
    %v1404 = vmul.f32 %v1276, %v1292
    %v1405 = vmul.f32 %v1277, %v1293
    %v1406 = vmul.f32 %v1278, %v1294
    %v1407 = vmul.f32 %v1279, %v1295
    %v1408 = vmul.f32 %v1280, %v1296
    %v1409 = vmul.f32 %v1281, %v1297
    %v1410 = vmul.f32 %v1282, %v1298
    %v1411 = vmul.f32 %v1283, %v1299
    %v1412 = vmul.f32 %v1284, %v1300
    %v1413 = vmul.f32 %v1285, %v1301
    %v1414 = vmul.f32 %v1286, %v1302
    %v1415 = vmul.f32 %v1287, %v1303
    %v1416 = vmul.f32 %v1288, %v1304
    %v1417 = vmul.f32 %v1289, %v1305
    %v1418 = vmul.f32 %v1290, %v1306
    %v1419 = vmul.f32 %v1307, %v1323
    %v1420 = vmul.f32 %v1308, %v1324
    %v1421 = vmul.f32 %v1309, %v1325
    %v1422 = vmul.f32 %v1310, %v1326
    %v1423 = vmul.f32 %v1311, %v1327
    %v1424 = vmul.f32 %v1312, %v1328
    %v1425 = vmul.f32 %v1313, %v1329
    %v1426 = vmul.f32 %v1314, %v1330
    %v1427 = vmul.f32 %v1315, %v1331
    %v1428 = vmul.f32 %v1316, %v1332
    %v1429 = vmul.f32 %v1317, %v1333
    %v1430 = vmul.f32 %v1318, %v1334
    %v1431 = vmul.f32 %v1319, %v1335
    %v1432 = vmul.f32 %v1320, %v1336
    %v1433 = vmul.f32 %v1321, %v1337
    %v1434 = vmul.f32 %v1322, %v1338
    %v1435 = vmul.f32 %v1291, %v1307
    %v1436 = vmul.f32 %v1292, %v1308
    %v1437 = vmul.f32 %v1293, %v1309
    %v1438 = vmul.f32 %v1294, %v1310
    %v1439 = vmul.f32 %v1295, %v1311
    %v1440 = vmul.f32 %v1296, %v1312
    %v1441 = vmul.f32 %v1297, %v1313
    %v1442 = vmul.f32 %v1298, %v1314
    %v1443 = vmul.f32 %v1299, %v1315
    %v1444 = vmul.f32 %v1300, %v1316
    %v1445 = vmul.f32 %v1301, %v1317
    %v1446 = vmul.f32 %v1302, %v1318
    %v1447 = vmul.f32 %v1303, %v1319
    %v1448 = vmul.f32 %v1304, %v1320
    %v1449 = vmul.f32 %v1305, %v1321
    %v1450 = vmul.f32 %v1306, %v1322
    %v1451 = vmul.f32 %v1403, %v1419
    %v1452 = vmul.f32 %v1404, %v1420
    %v1453 = vmul.f32 %v1405, %v1421
    %v1454 = vmul.f32 %v1406, %v1422
    %v1455 = vmul.f32 %v1407, %v1423
    %v1456 = vmul.f32 %v1408, %v1424
    %v1457 = vmul.f32 %v1409, %v1425
    %v1458 = vmul.f32 %v1410, %v1426
    %v1459 = vmul.f32 %v1411, %v1427
    %v1460 = vmul.f32 %v1412, %v1428
    %v1461 = vmul.f32 %v1413, %v1429
    %v1462 = vmul.f32 %v1414, %v1430
    %v1463 = vmul.f32 %v1415, %v1431
    %v1464 = vmul.f32 %v1416, %v1432
    %v1465 = vmul.f32 %v1417, %v1433
    %v1466 = vmul.f32 %v1418, %v1434
    %v1467 = vmul.f32 %v1435, %v1323
    %v1468 = vmul.f32 %v1436, %v1324
    %v1469 = vmul.f32 %v1437, %v1325
    %v1470 = vmul.f32 %v1438, %v1326
    %v1471 = vmul.f32 %v1439, %v1327
    %v1472 = vmul.f32 %v1440, %v1328
    %v1473 = vmul.f32 %v1441, %v1329
    %v1474 = vmul.f32 %v1442, %v1330
    %v1475 = vmul.f32 %v1443, %v1331
    %v1476 = vmul.f32 %v1444, %v1332
    %v1477 = vmul.f32 %v1445, %v1333
    %v1478 = vmul.f32 %v1446, %v1334
    %v1479 = vmul.f32 %v1447, %v1335
    %v1480 = vmul.f32 %v1448, %v1336
    %v1481 = vmul.f32 %v1449, %v1337
    %v1482 = vmul.f32 %v1450, %v1338
    %v1483 = vmul.f32 %v1467, 676.5204
    %v1484 = vmul.f32 %v1468, 676.5204
    %v1485 = vmul.f32 %v1469, 676.5204
    %v1486 = vmul.f32 %v1470, 676.5204
    %v1487 = vmul.f32 %v1471, 676.5204
    %v1488 = vmul.f32 %v1472, 676.5204
    %v1489 = vmul.f32 %v1473, 676.5204
    %v1490 = vmul.f32 %v1474, 676.5204
    %v1491 = vmul.f32 %v1475, 676.5204
    %v1492 = vmul.f32 %v1476, 676.5204
    %v1493 = vmul.f32 %v1477, 676.5204
    %v1494 = vmul.f32 %v1478, 676.5204
    %v1495 = vmul.f32 %v1479, 676.5204
    %v1496 = vmul.f32 %v1480, 676.5204
    %v1497 = vmul.f32 %v1481, 676.5204
    %v1498 = vmul.f32 %v1482, 676.5204
    %v1499 = vmul.f32 %v1275, %v1419
    %v1500 = vmul.f32 %v1276, %v1420
    %v1501 = vmul.f32 %v1277, %v1421
    %v1502 = vmul.f32 %v1278, %v1422
    %v1503 = vmul.f32 %v1279, %v1423
    %v1504 = vmul.f32 %v1280, %v1424
    %v1505 = vmul.f32 %v1281, %v1425
    %v1506 = vmul.f32 %v1282, %v1426
    %v1507 = vmul.f32 %v1283, %v1427
    %v1508 = vmul.f32 %v1284, %v1428
    %v1509 = vmul.f32 %v1285, %v1429
    %v1510 = vmul.f32 %v1286, %v1430
    %v1511 = vmul.f32 %v1287, %v1431
    %v1512 = vmul.f32 %v1288, %v1432
    %v1513 = vmul.f32 %v1289, %v1433
    %v1514 = vmul.f32 %v1290, %v1434
    %v1515 = vmul.f32 %v1499, -1259.1392
    %v1516 = vmul.f32 %v1500, -1259.1392
    %v1517 = vmul.f32 %v1501, -1259.1392
    %v1518 = vmul.f32 %v1502, -1259.1392
    %v1519 = vmul.f32 %v1503, -1259.1392
    %v1520 = vmul.f32 %v1504, -1259.1392
    %v1521 = vmul.f32 %v1505, -1259.1392
    %v1522 = vmul.f32 %v1506, -1259.1392
    %v1523 = vmul.f32 %v1507, -1259.1392
    %v1524 = vmul.f32 %v1508, -1259.1392
    %v1525 = vmul.f32 %v1509, -1259.1392
    %v1526 = vmul.f32 %v1510, -1259.1392
    %v1527 = vmul.f32 %v1511, -1259.1392
    %v1528 = vmul.f32 %v1512, -1259.1392
    %v1529 = vmul.f32 %v1513, -1259.1392
    %v1530 = vmul.f32 %v1514, -1259.1392
    %v1531 = vadd.f32 %v1483, %v1515
    %v1532 = vadd.f32 %v1484, %v1516
    %v1533 = vadd.f32 %v1485, %v1517
    %v1534 = vadd.f32 %v1486, %v1518
    %v1535 = vadd.f32 %v1487, %v1519
    %v1536 = vadd.f32 %v1488, %v1520
    %v1537 = vadd.f32 %v1489, %v1521
    %v1538 = vadd.f32 %v1490, %v1522
    %v1539 = vadd.f32 %v1491, %v1523
    %v1540 = vadd.f32 %v1492, %v1524
    %v1541 = vadd.f32 %v1493, %v1525
    %v1542 = vadd.f32 %v1494, %v1526
    %v1543 = vadd.f32 %v1495, %v1527
    %v1544 = vadd.f32 %v1496, %v1528
    %v1545 = vadd.f32 %v1497, %v1529
    %v1546 = vadd.f32 %v1498, %v1530
    %v1547 = vmul.f32 %v1403, %v1323
    %v1548 = vmul.f32 %v1404, %v1324
    %v1549 = vmul.f32 %v1405, %v1325
    %v1550 = vmul.f32 %v1406, %v1326
    %v1551 = vmul.f32 %v1407, %v1327
    %v1552 = vmul.f32 %v1408, %v1328
    %v1553 = vmul.f32 %v1409, %v1329
    %v1554 = vmul.f32 %v1410, %v1330
    %v1555 = vmul.f32 %v1411, %v1331
    %v1556 = vmul.f32 %v1412, %v1332
    %v1557 = vmul.f32 %v1413, %v1333
    %v1558 = vmul.f32 %v1414, %v1334
    %v1559 = vmul.f32 %v1415, %v1335
    %v1560 = vmul.f32 %v1416, %v1336
    %v1561 = vmul.f32 %v1417, %v1337
    %v1562 = vmul.f32 %v1418, %v1338
    %v1563 = vmul.f32 %v1547, 771.3234
    %v1564 = vmul.f32 %v1548, 771.3234
    %v1565 = vmul.f32 %v1549, 771.3234
    %v1566 = vmul.f32 %v1550, 771.3234
    %v1567 = vmul.f32 %v1551, 771.3234
    %v1568 = vmul.f32 %v1552, 771.3234
    %v1569 = vmul.f32 %v1553, 771.3234
    %v1570 = vmul.f32 %v1554, 771.3234
    %v1571 = vmul.f32 %v1555, 771.3234
    %v1572 = vmul.f32 %v1556, 771.3234
    %v1573 = vmul.f32 %v1557, 771.3234
    %v1574 = vmul.f32 %v1558, 771.3234
    %v1575 = vmul.f32 %v1559, 771.3234
    %v1576 = vmul.f32 %v1560, 771.3234
    %v1577 = vmul.f32 %v1561, 771.3234
    %v1578 = vmul.f32 %v1562, 771.3234
    %v1579 = vadd.f32 %v1531, %v1563
    %v1580 = vadd.f32 %v1532, %v1564
    %v1581 = vadd.f32 %v1533, %v1565
    %v1582 = vadd.f32 %v1534, %v1566
    %v1583 = vadd.f32 %v1535, %v1567
    %v1584 = vadd.f32 %v1536, %v1568
    %v1585 = vadd.f32 %v1537, %v1569
    %v1586 = vadd.f32 %v1538, %v1570
    %v1587 = vadd.f32 %v1539, %v1571
    %v1588 = vadd.f32 %v1540, %v1572
    %v1589 = vadd.f32 %v1541, %v1573
    %v1590 = vadd.f32 %v1542, %v1574
    %v1591 = vadd.f32 %v1543, %v1575
    %v1592 = vadd.f32 %v1544, %v1576
    %v1593 = vadd.f32 %v1545, %v1577
    %v1594 = vadd.f32 %v1546, %v1578
    %v1595 = vmul.f32 %v1403, %v1307
    %v1596 = vmul.f32 %v1404, %v1308
    %v1597 = vmul.f32 %v1405, %v1309
    %v1598 = vmul.f32 %v1406, %v1310
    %v1599 = vmul.f32 %v1407, %v1311
    %v1600 = vmul.f32 %v1408, %v1312
    %v1601 = vmul.f32 %v1409, %v1313
    %v1602 = vmul.f32 %v1410, %v1314
    %v1603 = vmul.f32 %v1411, %v1315
    %v1604 = vmul.f32 %v1412, %v1316
    %v1605 = vmul.f32 %v1413, %v1317
    %v1606 = vmul.f32 %v1414, %v1318
    %v1607 = vmul.f32 %v1415, %v1319
    %v1608 = vmul.f32 %v1416, %v1320
    %v1609 = vmul.f32 %v1417, %v1321
    %v1610 = vmul.f32 %v1418, %v1322
    %v1611 = vmul.f32 %v1595, -176.61504
    %v1612 = vmul.f32 %v1596, -176.61504
    %v1613 = vmul.f32 %v1597, -176.61504
    %v1614 = vmul.f32 %v1598, -176.61504
    %v1615 = vmul.f32 %v1599, -176.61504
    %v1616 = vmul.f32 %v1600, -176.61504
    %v1617 = vmul.f32 %v1601, -176.61504
    %v1618 = vmul.f32 %v1602, -176.61504
    %v1619 = vmul.f32 %v1603, -176.61504
    %v1620 = vmul.f32 %v1604, -176.61504
    %v1621 = vmul.f32 %v1605, -176.61504
    %v1622 = vmul.f32 %v1606, -176.61504
    %v1623 = vmul.f32 %v1607, -176.61504
    %v1624 = vmul.f32 %v1608, -176.61504
    %v1625 = vmul.f32 %v1609, -176.61504
    %v1626 = vmul.f32 %v1610, -176.61504
    %v1627 = vadd.f32 %v1579, %v1611
    %v1628 = vadd.f32 %v1580, %v1612
    %v1629 = vadd.f32 %v1581, %v1613
    %v1630 = vadd.f32 %v1582, %v1614
    %v1631 = vadd.f32 %v1583, %v1615
    %v1632 = vadd.f32 %v1584, %v1616
    %v1633 = vadd.f32 %v1585, %v1617
    %v1634 = vadd.f32 %v1586, %v1618
    %v1635 = vadd.f32 %v1587, %v1619
    %v1636 = vadd.f32 %v1588, %v1620
    %v1637 = vadd.f32 %v1589, %v1621
    %v1638 = vadd.f32 %v1590, %v1622
    %v1639 = vadd.f32 %v1591, %v1623
    %v1640 = vadd.f32 %v1592, %v1624
    %v1641 = vadd.f32 %v1593, %v1625
    %v1642 = vadd.f32 %v1594, %v1626
    %v1643 = vmul.f32 %v1339, %v1355
    %v1644 = vmul.f32 %v1340, %v1356
    %v1645 = vmul.f32 %v1341, %v1357
    %v1646 = vmul.f32 %v1342, %v1358
    %v1647 = vmul.f32 %v1343, %v1359
    %v1648 = vmul.f32 %v1344, %v1360
    %v1649 = vmul.f32 %v1345, %v1361
    %v1650 = vmul.f32 %v1346, %v1362
    %v1651 = vmul.f32 %v1347, %v1363
    %v1652 = vmul.f32 %v1348, %v1364
    %v1653 = vmul.f32 %v1349, %v1365
    %v1654 = vmul.f32 %v1350, %v1366
    %v1655 = vmul.f32 %v1351, %v1367
    %v1656 = vmul.f32 %v1352, %v1368
    %v1657 = vmul.f32 %v1353, %v1369
    %v1658 = vmul.f32 %v1354, %v1370
    %v1659 = vmul.f32 %v1371, %v1387
    %v1660 = vmul.f32 %v1372, %v1388
    %v1661 = vmul.f32 %v1373, %v1389
    %v1662 = vmul.f32 %v1374, %v1390
    %v1663 = vmul.f32 %v1375, %v1391
    %v1664 = vmul.f32 %v1376, %v1392
    %v1665 = vmul.f32 %v1377, %v1393
    %v1666 = vmul.f32 %v1378, %v1394
    %v1667 = vmul.f32 %v1379, %v1395
    %v1668 = vmul.f32 %v1380, %v1396
    %v1669 = vmul.f32 %v1381, %v1397
    %v1670 = vmul.f32 %v1382, %v1398
    %v1671 = vmul.f32 %v1383, %v1399
    %v1672 = vmul.f32 %v1384, %v1400
    %v1673 = vmul.f32 %v1385, %v1401
    %v1674 = vmul.f32 %v1386, %v1402
    %v1675 = vmul.f32 %v1355, %v1371
    %v1676 = vmul.f32 %v1356, %v1372
    %v1677 = vmul.f32 %v1357, %v1373
    %v1678 = vmul.f32 %v1358, %v1374
    %v1679 = vmul.f32 %v1359, %v1375
    %v1680 = vmul.f32 %v1360, %v1376
    %v1681 = vmul.f32 %v1361, %v1377
    %v1682 = vmul.f32 %v1362, %v1378
    %v1683 = vmul.f32 %v1363, %v1379
    %v1684 = vmul.f32 %v1364, %v1380
    %v1685 = vmul.f32 %v1365, %v1381
    %v1686 = vmul.f32 %v1366, %v1382
    %v1687 = vmul.f32 %v1367, %v1383
    %v1688 = vmul.f32 %v1368, %v1384
    %v1689 = vmul.f32 %v1369, %v1385
    %v1690 = vmul.f32 %v1370, %v1386
    %v1691 = vmul.f32 %v1643, %v1659
    %v1692 = vmul.f32 %v1644, %v1660
    %v1693 = vmul.f32 %v1645, %v1661
    %v1694 = vmul.f32 %v1646, %v1662
    %v1695 = vmul.f32 %v1647, %v1663
    %v1696 = vmul.f32 %v1648, %v1664
    %v1697 = vmul.f32 %v1649, %v1665
    %v1698 = vmul.f32 %v1650, %v1666
    %v1699 = vmul.f32 %v1651, %v1667
    %v1700 = vmul.f32 %v1652, %v1668
    %v1701 = vmul.f32 %v1653, %v1669
    %v1702 = vmul.f32 %v1654, %v1670
    %v1703 = vmul.f32 %v1655, %v1671
    %v1704 = vmul.f32 %v1656, %v1672
    %v1705 = vmul.f32 %v1657, %v1673
    %v1706 = vmul.f32 %v1658, %v1674
    %v1707 = vmul.f32 %v1675, %v1387
    %v1708 = vmul.f32 %v1676, %v1388
    %v1709 = vmul.f32 %v1677, %v1389
    %v1710 = vmul.f32 %v1678, %v1390
    %v1711 = vmul.f32 %v1679, %v1391
    %v1712 = vmul.f32 %v1680, %v1392
    %v1713 = vmul.f32 %v1681, %v1393
    %v1714 = vmul.f32 %v1682, %v1394
    %v1715 = vmul.f32 %v1683, %v1395
    %v1716 = vmul.f32 %v1684, %v1396
    %v1717 = vmul.f32 %v1685, %v1397
    %v1718 = vmul.f32 %v1686, %v1398
    %v1719 = vmul.f32 %v1687, %v1399
    %v1720 = vmul.f32 %v1688, %v1400
    %v1721 = vmul.f32 %v1689, %v1401
    %v1722 = vmul.f32 %v1690, %v1402
    %v1723 = vmul.f32 %v1707, 12.507343
    %v1724 = vmul.f32 %v1708, 12.507343
    %v1725 = vmul.f32 %v1709, 12.507343
    %v1726 = vmul.f32 %v1710, 12.507343
    %v1727 = vmul.f32 %v1711, 12.507343
    %v1728 = vmul.f32 %v1712, 12.507343
    %v1729 = vmul.f32 %v1713, 12.507343
    %v1730 = vmul.f32 %v1714, 12.507343
    %v1731 = vmul.f32 %v1715, 12.507343
    %v1732 = vmul.f32 %v1716, 12.507343
    %v1733 = vmul.f32 %v1717, 12.507343
    %v1734 = vmul.f32 %v1718, 12.507343
    %v1735 = vmul.f32 %v1719, 12.507343
    %v1736 = vmul.f32 %v1720, 12.507343
    %v1737 = vmul.f32 %v1721, 12.507343
    %v1738 = vmul.f32 %v1722, 12.507343
    %v1739 = vmul.f32 %v1339, %v1659
    %v1740 = vmul.f32 %v1340, %v1660
    %v1741 = vmul.f32 %v1341, %v1661
    %v1742 = vmul.f32 %v1342, %v1662
    %v1743 = vmul.f32 %v1343, %v1663
    %v1744 = vmul.f32 %v1344, %v1664
    %v1745 = vmul.f32 %v1345, %v1665
    %v1746 = vmul.f32 %v1346, %v1666
    %v1747 = vmul.f32 %v1347, %v1667
    %v1748 = vmul.f32 %v1348, %v1668
    %v1749 = vmul.f32 %v1349, %v1669
    %v1750 = vmul.f32 %v1350, %v1670
    %v1751 = vmul.f32 %v1351, %v1671
    %v1752 = vmul.f32 %v1352, %v1672
    %v1753 = vmul.f32 %v1353, %v1673
    %v1754 = vmul.f32 %v1354, %v1674
    %v1755 = vmul.f32 %v1739, -0.1385711
    %v1756 = vmul.f32 %v1740, -0.1385711
    %v1757 = vmul.f32 %v1741, -0.1385711
    %v1758 = vmul.f32 %v1742, -0.1385711
    %v1759 = vmul.f32 %v1743, -0.1385711
    %v1760 = vmul.f32 %v1744, -0.1385711
    %v1761 = vmul.f32 %v1745, -0.1385711
    %v1762 = vmul.f32 %v1746, -0.1385711
    %v1763 = vmul.f32 %v1747, -0.1385711
    %v1764 = vmul.f32 %v1748, -0.1385711
    %v1765 = vmul.f32 %v1749, -0.1385711
    %v1766 = vmul.f32 %v1750, -0.1385711
    %v1767 = vmul.f32 %v1751, -0.1385711
    %v1768 = vmul.f32 %v1752, -0.1385711
    %v1769 = vmul.f32 %v1753, -0.1385711
    %v1770 = vmul.f32 %v1754, -0.1385711
    %v1771 = vadd.f32 %v1723, %v1755
    %v1772 = vadd.f32 %v1724, %v1756
    %v1773 = vadd.f32 %v1725, %v1757
    %v1774 = vadd.f32 %v1726, %v1758
    %v1775 = vadd.f32 %v1727, %v1759
    %v1776 = vadd.f32 %v1728, %v1760
    %v1777 = vadd.f32 %v1729, %v1761
    %v1778 = vadd.f32 %v1730, %v1762
    %v1779 = vadd.f32 %v1731, %v1763
    %v1780 = vadd.f32 %v1732, %v1764
    %v1781 = vadd.f32 %v1733, %v1765
    %v1782 = vadd.f32 %v1734, %v1766
    %v1783 = vadd.f32 %v1735, %v1767
    %v1784 = vadd.f32 %v1736, %v1768
    %v1785 = vadd.f32 %v1737, %v1769
    %v1786 = vadd.f32 %v1738, %v1770
    %v1787 = vmul.f32 %v1643, %v1387
    %v1788 = vmul.f32 %v1644, %v1388
    %v1789 = vmul.f32 %v1645, %v1389
    %v1790 = vmul.f32 %v1646, %v1390
    %v1791 = vmul.f32 %v1647, %v1391
    %v1792 = vmul.f32 %v1648, %v1392
    %v1793 = vmul.f32 %v1649, %v1393
    %v1794 = vmul.f32 %v1650, %v1394
    %v1795 = vmul.f32 %v1651, %v1395
    %v1796 = vmul.f32 %v1652, %v1396
    %v1797 = vmul.f32 %v1653, %v1397
    %v1798 = vmul.f32 %v1654, %v1398
    %v1799 = vmul.f32 %v1655, %v1399
    %v1800 = vmul.f32 %v1656, %v1400
    %v1801 = vmul.f32 %v1657, %v1401
    %v1802 = vmul.f32 %v1658, %v1402
    %v1803 = vmul.f32 %v1787, 9.984369e-06
    %v1804 = vmul.f32 %v1788, 9.984369e-06
    %v1805 = vmul.f32 %v1789, 9.984369e-06
    %v1806 = vmul.f32 %v1790, 9.984369e-06
    %v1807 = vmul.f32 %v1791, 9.984369e-06
    %v1808 = vmul.f32 %v1792, 9.984369e-06
    %v1809 = vmul.f32 %v1793, 9.984369e-06
    %v1810 = vmul.f32 %v1794, 9.984369e-06
    %v1811 = vmul.f32 %v1795, 9.984369e-06
    %v1812 = vmul.f32 %v1796, 9.984369e-06
    %v1813 = vmul.f32 %v1797, 9.984369e-06
    %v1814 = vmul.f32 %v1798, 9.984369e-06
    %v1815 = vmul.f32 %v1799, 9.984369e-06
    %v1816 = vmul.f32 %v1800, 9.984369e-06
    %v1817 = vmul.f32 %v1801, 9.984369e-06
    %v1818 = vmul.f32 %v1802, 9.984369e-06
    %v1819 = vadd.f32 %v1771, %v1803
    %v1820 = vadd.f32 %v1772, %v1804
    %v1821 = vadd.f32 %v1773, %v1805
    %v1822 = vadd.f32 %v1774, %v1806
    %v1823 = vadd.f32 %v1775, %v1807
    %v1824 = vadd.f32 %v1776, %v1808
    %v1825 = vadd.f32 %v1777, %v1809
    %v1826 = vadd.f32 %v1778, %v1810
    %v1827 = vadd.f32 %v1779, %v1811
    %v1828 = vadd.f32 %v1780, %v1812
    %v1829 = vadd.f32 %v1781, %v1813
    %v1830 = vadd.f32 %v1782, %v1814
    %v1831 = vadd.f32 %v1783, %v1815
    %v1832 = vadd.f32 %v1784, %v1816
    %v1833 = vadd.f32 %v1785, %v1817
    %v1834 = vadd.f32 %v1786, %v1818
    %v1835 = vmul.f32 %v1643, %v1371
    %v1836 = vmul.f32 %v1644, %v1372
    %v1837 = vmul.f32 %v1645, %v1373
    %v1838 = vmul.f32 %v1646, %v1374
    %v1839 = vmul.f32 %v1647, %v1375
    %v1840 = vmul.f32 %v1648, %v1376
    %v1841 = vmul.f32 %v1649, %v1377
    %v1842 = vmul.f32 %v1650, %v1378
    %v1843 = vmul.f32 %v1651, %v1379
    %v1844 = vmul.f32 %v1652, %v1380
    %v1845 = vmul.f32 %v1653, %v1381
    %v1846 = vmul.f32 %v1654, %v1382
    %v1847 = vmul.f32 %v1655, %v1383
    %v1848 = vmul.f32 %v1656, %v1384
    %v1849 = vmul.f32 %v1657, %v1385
    %v1850 = vmul.f32 %v1658, %v1386
    %v1851 = vmul.f32 %v1835, 1.5056327e-07
    %v1852 = vmul.f32 %v1836, 1.5056327e-07
    %v1853 = vmul.f32 %v1837, 1.5056327e-07
    %v1854 = vmul.f32 %v1838, 1.5056327e-07
    %v1855 = vmul.f32 %v1839, 1.5056327e-07
    %v1856 = vmul.f32 %v1840, 1.5056327e-07
    %v1857 = vmul.f32 %v1841, 1.5056327e-07
    %v1858 = vmul.f32 %v1842, 1.5056327e-07
    %v1859 = vmul.f32 %v1843, 1.5056327e-07
    %v1860 = vmul.f32 %v1844, 1.5056327e-07
    %v1861 = vmul.f32 %v1845, 1.5056327e-07
    %v1862 = vmul.f32 %v1846, 1.5056327e-07
    %v1863 = vmul.f32 %v1847, 1.5056327e-07
    %v1864 = vmul.f32 %v1848, 1.5056327e-07
    %v1865 = vmul.f32 %v1849, 1.5056327e-07
    %v1866 = vmul.f32 %v1850, 1.5056327e-07
    %v1867 = vadd.f32 %v1819, %v1851
    %v1868 = vadd.f32 %v1820, %v1852
    %v1869 = vadd.f32 %v1821, %v1853
    %v1870 = vadd.f32 %v1822, %v1854
    %v1871 = vadd.f32 %v1823, %v1855
    %v1872 = vadd.f32 %v1824, %v1856
    %v1873 = vadd.f32 %v1825, %v1857
    %v1874 = vadd.f32 %v1826, %v1858
    %v1875 = vadd.f32 %v1827, %v1859
    %v1876 = vadd.f32 %v1828, %v1860
    %v1877 = vadd.f32 %v1829, %v1861
    %v1878 = vadd.f32 %v1830, %v1862
    %v1879 = vadd.f32 %v1831, %v1863
    %v1880 = vadd.f32 %v1832, %v1864
    %v1881 = vadd.f32 %v1833, %v1865
    %v1882 = vadd.f32 %v1834, %v1866
    %v1883 = vrcp.pop %v1451
    %v1884 = vmul.f32 %v1627, %v1883
    %v1885 = vrcp.pop %v1452
    %v1886 = vmul.f32 %v1628, %v1885
    %v1887 = vrcp.pop %v1453
    %v1888 = vmul.f32 %v1629, %v1887
    %v1889 = vrcp.pop %v1454
    %v1890 = vmul.f32 %v1630, %v1889
    %v1891 = vrcp.pop %v1455
    %v1892 = vmul.f32 %v1631, %v1891
    %v1893 = vrcp.pop %v1456
    %v1894 = vmul.f32 %v1632, %v1893
    %v1895 = vrcp.pop %v1457
    %v1896 = vmul.f32 %v1633, %v1895
    %v1897 = vrcp.pop %v1458
    %v1898 = vmul.f32 %v1634, %v1897
    %v1899 = vrcp.pop %v1459
    %v1900 = vmul.f32 %v1635, %v1899
    %v1901 = vrcp.pop %v1460
    %v1902 = vmul.f32 %v1636, %v1901
    %v1903 = vrcp.pop %v1461
    %v1904 = vmul.f32 %v1637, %v1903
    %v1905 = vrcp.pop %v1462
    %v1906 = vmul.f32 %v1638, %v1905
    %v1907 = vrcp.pop %v1463
    %v1908 = vmul.f32 %v1639, %v1907
    %v1909 = vrcp.pop %v1464
    %v1910 = vmul.f32 %v1640, %v1909
    %v1911 = vrcp.pop %v1465
    %v1912 = vmul.f32 %v1641, %v1911
    %v1913 = vrcp.pop %v1466
    %v1914 = vmul.f32 %v1642, %v1913
    %v1915 = vadd.f32 %v1884, 1.0
    %v1916 = vadd.f32 %v1886, 1.0
    %v1917 = vadd.f32 %v1888, 1.0
    %v1918 = vadd.f32 %v1890, 1.0
    %v1919 = vadd.f32 %v1892, 1.0
    %v1920 = vadd.f32 %v1894, 1.0
    %v1921 = vadd.f32 %v1896, 1.0
    %v1922 = vadd.f32 %v1898, 1.0
    %v1923 = vadd.f32 %v1900, 1.0
    %v1924 = vadd.f32 %v1902, 1.0
    %v1925 = vadd.f32 %v1904, 1.0
    %v1926 = vadd.f32 %v1906, 1.0
    %v1927 = vadd.f32 %v1908, 1.0
    %v1928 = vadd.f32 %v1910, 1.0
    %v1929 = vadd.f32 %v1912, 1.0
    %v1930 = vadd.f32 %v1914, 1.0
    %v1931 = vrcp.pop %v1691
    %v1932 = vmul.f32 %v1867, %v1931
    %v1933 = vrcp.pop %v1692
    %v1934 = vmul.f32 %v1868, %v1933
    %v1935 = vrcp.pop %v1693
    %v1936 = vmul.f32 %v1869, %v1935
    %v1937 = vrcp.pop %v1694
    %v1938 = vmul.f32 %v1870, %v1937
    %v1939 = vrcp.pop %v1695
    %v1940 = vmul.f32 %v1871, %v1939
    %v1941 = vrcp.pop %v1696
    %v1942 = vmul.f32 %v1872, %v1941
    %v1943 = vrcp.pop %v1697
    %v1944 = vmul.f32 %v1873, %v1943
    %v1945 = vrcp.pop %v1698
    %v1946 = vmul.f32 %v1874, %v1945
    %v1947 = vrcp.pop %v1699
    %v1948 = vmul.f32 %v1875, %v1947
    %v1949 = vrcp.pop %v1700
    %v1950 = vmul.f32 %v1876, %v1949
    %v1951 = vrcp.pop %v1701
    %v1952 = vmul.f32 %v1877, %v1951
    %v1953 = vrcp.pop %v1702
    %v1954 = vmul.f32 %v1878, %v1953
    %v1955 = vrcp.pop %v1703
    %v1956 = vmul.f32 %v1879, %v1955
    %v1957 = vrcp.pop %v1704
    %v1958 = vmul.f32 %v1880, %v1957
    %v1959 = vrcp.pop %v1705
    %v1960 = vmul.f32 %v1881, %v1959
    %v1961 = vrcp.pop %v1706
    %v1962 = vmul.f32 %v1882, %v1961
    %v1963 = vadd.f32 %v1915, %v1932
    %v1964 = vadd.f32 %v1916, %v1934
    %v1965 = vadd.f32 %v1917, %v1936
    %v1966 = vadd.f32 %v1918, %v1938
    %v1967 = vadd.f32 %v1919, %v1940
    %v1968 = vadd.f32 %v1920, %v1942
    %v1969 = vadd.f32 %v1921, %v1944
    %v1970 = vadd.f32 %v1922, %v1946
    %v1971 = vadd.f32 %v1923, %v1948
    %v1972 = vadd.f32 %v1924, %v1950
    %v1973 = vadd.f32 %v1925, %v1952
    %v1974 = vadd.f32 %v1926, %v1954
    %v1975 = vadd.f32 %v1927, %v1956
    %v1976 = vadd.f32 %v1928, %v1958
    %v1977 = vadd.f32 %v1929, %v1960
    %v1978 = vadd.f32 %v1930, %v1962
    %v1979 = vadd.f32 %v1275, 6.5
    %v1980 = vadd.f32 %v1276, 6.5
    %v1981 = vadd.f32 %v1277, 6.5
    %v1982 = vadd.f32 %v1278, 6.5
    %v1983 = vadd.f32 %v1279, 6.5
    %v1984 = vadd.f32 %v1280, 6.5
    %v1985 = vadd.f32 %v1281, 6.5
    %v1986 = vadd.f32 %v1282, 6.5
    %v1987 = vadd.f32 %v1283, 6.5
    %v1988 = vadd.f32 %v1284, 6.5
    %v1989 = vadd.f32 %v1285, 6.5
    %v1990 = vadd.f32 %v1286, 6.5
    %v1991 = vadd.f32 %v1287, 6.5
    %v1992 = vadd.f32 %v1288, 6.5
    %v1993 = vadd.f32 %v1289, 6.5
    %v1994 = vadd.f32 %v1290, 6.5
    %v1995 = vsub.f32 %v1275, 0.5
    %v1996 = vsub.f32 %v1276, 0.5
    %v1997 = vsub.f32 %v1277, 0.5
    %v1998 = vsub.f32 %v1278, 0.5
    %v1999 = vsub.f32 %v1279, 0.5
    %v2000 = vsub.f32 %v1280, 0.5
    %v2001 = vsub.f32 %v1281, 0.5
    %v2002 = vsub.f32 %v1282, 0.5
    %v2003 = vsub.f32 %v1283, 0.5
    %v2004 = vsub.f32 %v1284, 0.5
    %v2005 = vsub.f32 %v1285, 0.5
    %v2006 = vsub.f32 %v1286, 0.5
    %v2007 = vsub.f32 %v1287, 0.5
    %v2008 = vsub.f32 %v1288, 0.5
    %v2009 = vsub.f32 %v1289, 0.5
    %v2010 = vsub.f32 %v1290, 0.5
    %v2011 = vlog2.pop %v1979
    %v2012 = vmul.f32 %v2011, 0.6931472
    %v2013 = vlog2.pop %v1980
    %v2014 = vmul.f32 %v2013, 0.6931472
    %v2015 = vlog2.pop %v1981
    %v2016 = vmul.f32 %v2015, 0.6931472
    %v2017 = vlog2.pop %v1982
    %v2018 = vmul.f32 %v2017, 0.6931472
    %v2019 = vlog2.pop %v1983
    %v2020 = vmul.f32 %v2019, 0.6931472
    %v2021 = vlog2.pop %v1984
    %v2022 = vmul.f32 %v2021, 0.6931472
    %v2023 = vlog2.pop %v1985
    %v2024 = vmul.f32 %v2023, 0.6931472
    %v2025 = vlog2.pop %v1986
    %v2026 = vmul.f32 %v2025, 0.6931472
    %v2027 = vlog2.pop %v1987
    %v2028 = vmul.f32 %v2027, 0.6931472
    %v2029 = vlog2.pop %v1988
    %v2030 = vmul.f32 %v2029, 0.6931472
    %v2031 = vlog2.pop %v1989
    %v2032 = vmul.f32 %v2031, 0.6931472
    %v2033 = vlog2.pop %v1990
    %v2034 = vmul.f32 %v2033, 0.6931472
    %v2035 = vlog2.pop %v1991
    %v2036 = vmul.f32 %v2035, 0.6931472
    %v2037 = vlog2.pop %v1992
    %v2038 = vmul.f32 %v2037, 0.6931472
    %v2039 = vlog2.pop %v1993
    %v2040 = vmul.f32 %v2039, 0.6931472
    %v2041 = vlog2.pop %v1994
    %v2042 = vmul.f32 %v2041, 0.6931472
    %v2043 = vmul.f32 %v1995, %v2012
    %v2044 = vmul.f32 %v1996, %v2014
    %v2045 = vmul.f32 %v1997, %v2016
    %v2046 = vmul.f32 %v1998, %v2018
    %v2047 = vmul.f32 %v1999, %v2020
    %v2048 = vmul.f32 %v2000, %v2022
    %v2049 = vmul.f32 %v2001, %v2024
    %v2050 = vmul.f32 %v2002, %v2026
    %v2051 = vmul.f32 %v2003, %v2028
    %v2052 = vmul.f32 %v2004, %v2030
    %v2053 = vmul.f32 %v2005, %v2032
    %v2054 = vmul.f32 %v2006, %v2034
    %v2055 = vmul.f32 %v2007, %v2036
    %v2056 = vmul.f32 %v2008, %v2038
    %v2057 = vmul.f32 %v2009, %v2040
    %v2058 = vmul.f32 %v2010, %v2042
    %v2059 = vadd.f32 %v2043, 0.9189385
    %v2060 = vadd.f32 %v2044, 0.9189385
    %v2061 = vadd.f32 %v2045, 0.9189385
    %v2062 = vadd.f32 %v2046, 0.9189385
    %v2063 = vadd.f32 %v2047, 0.9189385
    %v2064 = vadd.f32 %v2048, 0.9189385
    %v2065 = vadd.f32 %v2049, 0.9189385
    %v2066 = vadd.f32 %v2050, 0.9189385
    %v2067 = vadd.f32 %v2051, 0.9189385
    %v2068 = vadd.f32 %v2052, 0.9189385
    %v2069 = vadd.f32 %v2053, 0.9189385
    %v2070 = vadd.f32 %v2054, 0.9189385
    %v2071 = vadd.f32 %v2055, 0.9189385
    %v2072 = vadd.f32 %v2056, 0.9189385
    %v2073 = vadd.f32 %v2057, 0.9189385
    %v2074 = vadd.f32 %v2058, 0.9189385
    %v2075 = vsub.f32 %v2059, %v1979
    %v2076 = vsub.f32 %v2060, %v1980
    %v2077 = vsub.f32 %v2061, %v1981
    %v2078 = vsub.f32 %v2062, %v1982
    %v2079 = vsub.f32 %v2063, %v1983
    %v2080 = vsub.f32 %v2064, %v1984
    %v2081 = vsub.f32 %v2065, %v1985
    %v2082 = vsub.f32 %v2066, %v1986
    %v2083 = vsub.f32 %v2067, %v1987
    %v2084 = vsub.f32 %v2068, %v1988
    %v2085 = vsub.f32 %v2069, %v1989
    %v2086 = vsub.f32 %v2070, %v1990
    %v2087 = vsub.f32 %v2071, %v1991
    %v2088 = vsub.f32 %v2072, %v1992
    %v2089 = vsub.f32 %v2073, %v1993
    %v2090 = vsub.f32 %v2074, %v1994
    %v2091 = vlog2.pop %v1963
    %v2092 = vmul.f32 %v2091, 0.6931472
    %v2093 = vlog2.pop %v1964
    %v2094 = vmul.f32 %v2093, 0.6931472
    %v2095 = vlog2.pop %v1965
    %v2096 = vmul.f32 %v2095, 0.6931472
    %v2097 = vlog2.pop %v1966
    %v2098 = vmul.f32 %v2097, 0.6931472
    %v2099 = vlog2.pop %v1967
    %v2100 = vmul.f32 %v2099, 0.6931472
    %v2101 = vlog2.pop %v1968
    %v2102 = vmul.f32 %v2101, 0.6931472
    %v2103 = vlog2.pop %v1969
    %v2104 = vmul.f32 %v2103, 0.6931472
    %v2105 = vlog2.pop %v1970
    %v2106 = vmul.f32 %v2105, 0.6931472
    %v2107 = vlog2.pop %v1971
    %v2108 = vmul.f32 %v2107, 0.6931472
    %v2109 = vlog2.pop %v1972
    %v2110 = vmul.f32 %v2109, 0.6931472
    %v2111 = vlog2.pop %v1973
    %v2112 = vmul.f32 %v2111, 0.6931472
    %v2113 = vlog2.pop %v1974
    %v2114 = vmul.f32 %v2113, 0.6931472
    %v2115 = vlog2.pop %v1975
    %v2116 = vmul.f32 %v2115, 0.6931472
    %v2117 = vlog2.pop %v1976
    %v2118 = vmul.f32 %v2117, 0.6931472
    %v2119 = vlog2.pop %v1977
    %v2120 = vmul.f32 %v2119, 0.6931472
    %v2121 = vlog2.pop %v1978
    %v2122 = vmul.f32 %v2121, 0.6931472
    %v2123 = vadd.f32 %v2075, %v2092
    %v2124 = vadd.f32 %v2076, %v2094
    %v2125 = vadd.f32 %v2077, %v2096
    %v2126 = vadd.f32 %v2078, %v2098
    %v2127 = vadd.f32 %v2079, %v2100
    %v2128 = vadd.f32 %v2080, %v2102
    %v2129 = vadd.f32 %v2081, %v2104
    %v2130 = vadd.f32 %v2082, %v2106
    %v2131 = vadd.f32 %v2083, %v2108
    %v2132 = vadd.f32 %v2084, %v2110
    %v2133 = vadd.f32 %v2085, %v2112
    %v2134 = vadd.f32 %v2086, %v2114
    %v2135 = vadd.f32 %v2087, %v2116
    %v2136 = vadd.f32 %v2088, %v2118
    %v2137 = vadd.f32 %v2089, %v2120
    %v2138 = vadd.f32 %v2090, %v2122
    %v2139 = vadd.f32 %v1259, %v2123
    %v2140 = vadd.f32 %v1260, %v2124
    %v2141 = vadd.f32 %v1261, %v2125
    %v2142 = vadd.f32 %v1262, %v2126
    %v2143 = vadd.f32 %v1263, %v2127
    %v2144 = vadd.f32 %v1264, %v2128
    %v2145 = vadd.f32 %v1265, %v2129
    %v2146 = vadd.f32 %v1266, %v2130
    %v2147 = vadd.f32 %v1267, %v2131
    %v2148 = vadd.f32 %v1268, %v2132
    %v2149 = vadd.f32 %v1269, %v2133
    %v2150 = vadd.f32 %v1270, %v2134
    %v2151 = vadd.f32 %v1271, %v2135
    %v2152 = vadd.f32 %v1272, %v2136
    %v2153 = vadd.f32 %v1273, %v2137
    %v2154 = vadd.f32 %v1274, %v2138
    %v2155 = vadd.f32 %v123, %v155
    %v2156 = vadd.f32 %v124, %v156
    %v2157 = vadd.f32 %v125, %v157
    %v2158 = vadd.f32 %v126, %v158
    %v2159 = vadd.f32 %v127, %v159
    %v2160 = vadd.f32 %v128, %v160
    %v2161 = vadd.f32 %v129, %v161
    %v2162 = vadd.f32 %v130, %v162
    %v2163 = vadd.f32 %v131, %v163
    %v2164 = vadd.f32 %v132, %v164
    %v2165 = vadd.f32 %v133, %v165
    %v2166 = vadd.f32 %v134, %v166
    %v2167 = vadd.f32 %v135, %v167
    %v2168 = vadd.f32 %v136, %v168
    %v2169 = vadd.f32 %v137, %v169
    %v2170 = vadd.f32 %v138, %v170
    %v2171 = vadd.f32 %v2155, 1e-10
    %v2172 = vadd.f32 %v2156, 1e-10
    %v2173 = vadd.f32 %v2157, 1e-10
    %v2174 = vadd.f32 %v2158, 1e-10
    %v2175 = vadd.f32 %v2159, 1e-10
    %v2176 = vadd.f32 %v2160, 1e-10
    %v2177 = vadd.f32 %v2161, 1e-10
    %v2178 = vadd.f32 %v2162, 1e-10
    %v2179 = vadd.f32 %v2163, 1e-10
    %v2180 = vadd.f32 %v2164, 1e-10
    %v2181 = vadd.f32 %v2165, 1e-10
    %v2182 = vadd.f32 %v2166, 1e-10
    %v2183 = vadd.f32 %v2167, 1e-10
    %v2184 = vadd.f32 %v2168, 1e-10
    %v2185 = vadd.f32 %v2169, 1e-10
    %v2186 = vadd.f32 %v2170, 1e-10
    %vm2187 = vcmp.lt.f32.partialorder %v2171, 0.5
    %vm2188 = vcmp.lt.f32.partialorder %v2172, 0.5
    %vm2189 = vcmp.lt.f32.partialorder %v2173, 0.5
    %vm2190 = vcmp.lt.f32.partialorder %v2174, 0.5
    %vm2191 = vcmp.lt.f32.partialorder %v2175, 0.5
    %vm2192 = vcmp.lt.f32.partialorder %v2176, 0.5
    %vm2193 = vcmp.lt.f32.partialorder %v2177, 0.5
    %vm2194 = vcmp.lt.f32.partialorder %v2178, 0.5
    %vm2195 = vcmp.lt.f32.partialorder %v2179, 0.5
    %vm2196 = vcmp.lt.f32.partialorder %v2180, 0.5
    %vm2197 = vcmp.lt.f32.partialorder %v2181, 0.5
    %vm2198 = vcmp.lt.f32.partialorder %v2182, 0.5
    %vm2199 = vcmp.lt.f32.partialorder %v2183, 0.5
    %vm2200 = vcmp.lt.f32.partialorder %v2184, 0.5
    %vm2201 = vcmp.lt.f32.partialorder %v2185, 0.5
    %vm2202 = vcmp.lt.f32.partialorder %v2186, 0.5
    %v2203 = vadd.f32 %v2171, 1.0
    %v2204 = vadd.f32 %v2172, 1.0
    %v2205 = vadd.f32 %v2173, 1.0
    %v2206 = vadd.f32 %v2174, 1.0
    %v2207 = vadd.f32 %v2175, 1.0
    %v2208 = vadd.f32 %v2176, 1.0
    %v2209 = vadd.f32 %v2177, 1.0
    %v2210 = vadd.f32 %v2178, 1.0
    %v2211 = vadd.f32 %v2179, 1.0
    %v2212 = vadd.f32 %v2180, 1.0
    %v2213 = vadd.f32 %v2181, 1.0
    %v2214 = vadd.f32 %v2182, 1.0
    %v2215 = vadd.f32 %v2183, 1.0
    %v2216 = vadd.f32 %v2184, 1.0
    %v2217 = vadd.f32 %v2185, 1.0
    %v2218 = vadd.f32 %v2186, 1.0
    %v2219 = vsel %vm2187, %v2203, %v2171
    %v2220 = vsel %vm2188, %v2204, %v2172
    %v2221 = vsel %vm2189, %v2205, %v2173
    %v2222 = vsel %vm2190, %v2206, %v2174
    %v2223 = vsel %vm2191, %v2207, %v2175
    %v2224 = vsel %vm2192, %v2208, %v2176
    %v2225 = vsel %vm2193, %v2209, %v2177
    %v2226 = vsel %vm2194, %v2210, %v2178
    %v2227 = vsel %vm2195, %v2211, %v2179
    %v2228 = vsel %vm2196, %v2212, %v2180
    %v2229 = vsel %vm2197, %v2213, %v2181
    %v2230 = vsel %vm2198, %v2214, %v2182
    %v2231 = vsel %vm2199, %v2215, %v2183
    %v2232 = vsel %vm2200, %v2216, %v2184
    %v2233 = vsel %vm2201, %v2217, %v2185
    %v2234 = vsel %vm2202, %v2218, %v2186
    %v2235 = vadd.f32 %v2219, 1.0
    %v2236 = vadd.f32 %v2220, 1.0
    %v2237 = vadd.f32 %v2221, 1.0
    %v2238 = vadd.f32 %v2222, 1.0
    %v2239 = vadd.f32 %v2223, 1.0
    %v2240 = vadd.f32 %v2224, 1.0
    %v2241 = vadd.f32 %v2225, 1.0
    %v2242 = vadd.f32 %v2226, 1.0
    %v2243 = vadd.f32 %v2227, 1.0
    %v2244 = vadd.f32 %v2228, 1.0
    %v2245 = vadd.f32 %v2229, 1.0
    %v2246 = vadd.f32 %v2230, 1.0
    %v2247 = vadd.f32 %v2231, 1.0
    %v2248 = vadd.f32 %v2232, 1.0
    %v2249 = vadd.f32 %v2233, 1.0
    %v2250 = vadd.f32 %v2234, 1.0
    %v2251 = vadd.f32 %v2219, 2.0
    %v2252 = vadd.f32 %v2220, 2.0
    %v2253 = vadd.f32 %v2221, 2.0
    %v2254 = vadd.f32 %v2222, 2.0
    %v2255 = vadd.f32 %v2223, 2.0
    %v2256 = vadd.f32 %v2224, 2.0
    %v2257 = vadd.f32 %v2225, 2.0
    %v2258 = vadd.f32 %v2226, 2.0
    %v2259 = vadd.f32 %v2227, 2.0
    %v2260 = vadd.f32 %v2228, 2.0
    %v2261 = vadd.f32 %v2229, 2.0
    %v2262 = vadd.f32 %v2230, 2.0
    %v2263 = vadd.f32 %v2231, 2.0
    %v2264 = vadd.f32 %v2232, 2.0
    %v2265 = vadd.f32 %v2233, 2.0
    %v2266 = vadd.f32 %v2234, 2.0
    %v2267 = vadd.f32 %v2219, 3.0
    %v2268 = vadd.f32 %v2220, 3.0
    %v2269 = vadd.f32 %v2221, 3.0
    %v2270 = vadd.f32 %v2222, 3.0
    %v2271 = vadd.f32 %v2223, 3.0
    %v2272 = vadd.f32 %v2224, 3.0
    %v2273 = vadd.f32 %v2225, 3.0
    %v2274 = vadd.f32 %v2226, 3.0
    %v2275 = vadd.f32 %v2227, 3.0
    %v2276 = vadd.f32 %v2228, 3.0
    %v2277 = vadd.f32 %v2229, 3.0
    %v2278 = vadd.f32 %v2230, 3.0
    %v2279 = vadd.f32 %v2231, 3.0
    %v2280 = vadd.f32 %v2232, 3.0
    %v2281 = vadd.f32 %v2233, 3.0
    %v2282 = vadd.f32 %v2234, 3.0
    %v2283 = vadd.f32 %v2219, 4.0
    %v2284 = vadd.f32 %v2220, 4.0
    %v2285 = vadd.f32 %v2221, 4.0
    %v2286 = vadd.f32 %v2222, 4.0
    %v2287 = vadd.f32 %v2223, 4.0
    %v2288 = vadd.f32 %v2224, 4.0
    %v2289 = vadd.f32 %v2225, 4.0
    %v2290 = vadd.f32 %v2226, 4.0
    %v2291 = vadd.f32 %v2227, 4.0
    %v2292 = vadd.f32 %v2228, 4.0
    %v2293 = vadd.f32 %v2229, 4.0
    %v2294 = vadd.f32 %v2230, 4.0
    %v2295 = vadd.f32 %v2231, 4.0
    %v2296 = vadd.f32 %v2232, 4.0
    %v2297 = vadd.f32 %v2233, 4.0
    %v2298 = vadd.f32 %v2234, 4.0
    %v2299 = vadd.f32 %v2219, 5.0
    %v2300 = vadd.f32 %v2220, 5.0
    %v2301 = vadd.f32 %v2221, 5.0
    %v2302 = vadd.f32 %v2222, 5.0
    %v2303 = vadd.f32 %v2223, 5.0
    %v2304 = vadd.f32 %v2224, 5.0
    %v2305 = vadd.f32 %v2225, 5.0
    %v2306 = vadd.f32 %v2226, 5.0
    %v2307 = vadd.f32 %v2227, 5.0
    %v2308 = vadd.f32 %v2228, 5.0
    %v2309 = vadd.f32 %v2229, 5.0
    %v2310 = vadd.f32 %v2230, 5.0
    %v2311 = vadd.f32 %v2231, 5.0
    %v2312 = vadd.f32 %v2232, 5.0
    %v2313 = vadd.f32 %v2233, 5.0
    %v2314 = vadd.f32 %v2234, 5.0
    %v2315 = vadd.f32 %v2219, 6.0
    %v2316 = vadd.f32 %v2220, 6.0
    %v2317 = vadd.f32 %v2221, 6.0
    %v2318 = vadd.f32 %v2222, 6.0
    %v2319 = vadd.f32 %v2223, 6.0
    %v2320 = vadd.f32 %v2224, 6.0
    %v2321 = vadd.f32 %v2225, 6.0
    %v2322 = vadd.f32 %v2226, 6.0
    %v2323 = vadd.f32 %v2227, 6.0
    %v2324 = vadd.f32 %v2228, 6.0
    %v2325 = vadd.f32 %v2229, 6.0
    %v2326 = vadd.f32 %v2230, 6.0
    %v2327 = vadd.f32 %v2231, 6.0
    %v2328 = vadd.f32 %v2232, 6.0
    %v2329 = vadd.f32 %v2233, 6.0
    %v2330 = vadd.f32 %v2234, 6.0
    %v2331 = vadd.f32 %v2219, 7.0
    %v2332 = vadd.f32 %v2220, 7.0
    %v2333 = vadd.f32 %v2221, 7.0
    %v2334 = vadd.f32 %v2222, 7.0
    %v2335 = vadd.f32 %v2223, 7.0
    %v2336 = vadd.f32 %v2224, 7.0
    %v2337 = vadd.f32 %v2225, 7.0
    %v2338 = vadd.f32 %v2226, 7.0
    %v2339 = vadd.f32 %v2227, 7.0
    %v2340 = vadd.f32 %v2228, 7.0
    %v2341 = vadd.f32 %v2229, 7.0
    %v2342 = vadd.f32 %v2230, 7.0
    %v2343 = vadd.f32 %v2231, 7.0
    %v2344 = vadd.f32 %v2232, 7.0
    %v2345 = vadd.f32 %v2233, 7.0
    %v2346 = vadd.f32 %v2234, 7.0
    %v2347 = vmul.f32 %v2219, %v2235
    %v2348 = vmul.f32 %v2220, %v2236
    %v2349 = vmul.f32 %v2221, %v2237
    %v2350 = vmul.f32 %v2222, %v2238
    %v2351 = vmul.f32 %v2223, %v2239
    %v2352 = vmul.f32 %v2224, %v2240
    %v2353 = vmul.f32 %v2225, %v2241
    %v2354 = vmul.f32 %v2226, %v2242
    %v2355 = vmul.f32 %v2227, %v2243
    %v2356 = vmul.f32 %v2228, %v2244
    %v2357 = vmul.f32 %v2229, %v2245
    %v2358 = vmul.f32 %v2230, %v2246
    %v2359 = vmul.f32 %v2231, %v2247
    %v2360 = vmul.f32 %v2232, %v2248
    %v2361 = vmul.f32 %v2233, %v2249
    %v2362 = vmul.f32 %v2234, %v2250
    %v2363 = vmul.f32 %v2251, %v2267
    %v2364 = vmul.f32 %v2252, %v2268
    %v2365 = vmul.f32 %v2253, %v2269
    %v2366 = vmul.f32 %v2254, %v2270
    %v2367 = vmul.f32 %v2255, %v2271
    %v2368 = vmul.f32 %v2256, %v2272
    %v2369 = vmul.f32 %v2257, %v2273
    %v2370 = vmul.f32 %v2258, %v2274
    %v2371 = vmul.f32 %v2259, %v2275
    %v2372 = vmul.f32 %v2260, %v2276
    %v2373 = vmul.f32 %v2261, %v2277
    %v2374 = vmul.f32 %v2262, %v2278
    %v2375 = vmul.f32 %v2263, %v2279
    %v2376 = vmul.f32 %v2264, %v2280
    %v2377 = vmul.f32 %v2265, %v2281
    %v2378 = vmul.f32 %v2266, %v2282
    %v2379 = vmul.f32 %v2235, %v2251
    %v2380 = vmul.f32 %v2236, %v2252
    %v2381 = vmul.f32 %v2237, %v2253
    %v2382 = vmul.f32 %v2238, %v2254
    %v2383 = vmul.f32 %v2239, %v2255
    %v2384 = vmul.f32 %v2240, %v2256
    %v2385 = vmul.f32 %v2241, %v2257
    %v2386 = vmul.f32 %v2242, %v2258
    %v2387 = vmul.f32 %v2243, %v2259
    %v2388 = vmul.f32 %v2244, %v2260
    %v2389 = vmul.f32 %v2245, %v2261
    %v2390 = vmul.f32 %v2246, %v2262
    %v2391 = vmul.f32 %v2247, %v2263
    %v2392 = vmul.f32 %v2248, %v2264
    %v2393 = vmul.f32 %v2249, %v2265
    %v2394 = vmul.f32 %v2250, %v2266
    %v2395 = vmul.f32 %v2347, %v2363
    %v2396 = vmul.f32 %v2348, %v2364
    %v2397 = vmul.f32 %v2349, %v2365
    %v2398 = vmul.f32 %v2350, %v2366
    %v2399 = vmul.f32 %v2351, %v2367
    %v2400 = vmul.f32 %v2352, %v2368
    %v2401 = vmul.f32 %v2353, %v2369
    %v2402 = vmul.f32 %v2354, %v2370
    %v2403 = vmul.f32 %v2355, %v2371
    %v2404 = vmul.f32 %v2356, %v2372
    %v2405 = vmul.f32 %v2357, %v2373
    %v2406 = vmul.f32 %v2358, %v2374
    %v2407 = vmul.f32 %v2359, %v2375
    %v2408 = vmul.f32 %v2360, %v2376
    %v2409 = vmul.f32 %v2361, %v2377
    %v2410 = vmul.f32 %v2362, %v2378
    %v2411 = vmul.f32 %v2379, %v2267
    %v2412 = vmul.f32 %v2380, %v2268
    %v2413 = vmul.f32 %v2381, %v2269
    %v2414 = vmul.f32 %v2382, %v2270
    %v2415 = vmul.f32 %v2383, %v2271
    %v2416 = vmul.f32 %v2384, %v2272
    %v2417 = vmul.f32 %v2385, %v2273
    %v2418 = vmul.f32 %v2386, %v2274
    %v2419 = vmul.f32 %v2387, %v2275
    %v2420 = vmul.f32 %v2388, %v2276
    %v2421 = vmul.f32 %v2389, %v2277
    %v2422 = vmul.f32 %v2390, %v2278
    %v2423 = vmul.f32 %v2391, %v2279
    %v2424 = vmul.f32 %v2392, %v2280
    %v2425 = vmul.f32 %v2393, %v2281
    %v2426 = vmul.f32 %v2394, %v2282
    %v2427 = vmul.f32 %v2411, 676.5204
    %v2428 = vmul.f32 %v2412, 676.5204
    %v2429 = vmul.f32 %v2413, 676.5204
    %v2430 = vmul.f32 %v2414, 676.5204
    %v2431 = vmul.f32 %v2415, 676.5204
    %v2432 = vmul.f32 %v2416, 676.5204
    %v2433 = vmul.f32 %v2417, 676.5204
    %v2434 = vmul.f32 %v2418, 676.5204
    %v2435 = vmul.f32 %v2419, 676.5204
    %v2436 = vmul.f32 %v2420, 676.5204
    %v2437 = vmul.f32 %v2421, 676.5204
    %v2438 = vmul.f32 %v2422, 676.5204
    %v2439 = vmul.f32 %v2423, 676.5204
    %v2440 = vmul.f32 %v2424, 676.5204
    %v2441 = vmul.f32 %v2425, 676.5204
    %v2442 = vmul.f32 %v2426, 676.5204
    %v2443 = vmul.f32 %v2219, %v2363
    %v2444 = vmul.f32 %v2220, %v2364
    %v2445 = vmul.f32 %v2221, %v2365
    %v2446 = vmul.f32 %v2222, %v2366
    %v2447 = vmul.f32 %v2223, %v2367
    %v2448 = vmul.f32 %v2224, %v2368
    %v2449 = vmul.f32 %v2225, %v2369
    %v2450 = vmul.f32 %v2226, %v2370
    %v2451 = vmul.f32 %v2227, %v2371
    %v2452 = vmul.f32 %v2228, %v2372
    %v2453 = vmul.f32 %v2229, %v2373
    %v2454 = vmul.f32 %v2230, %v2374
    %v2455 = vmul.f32 %v2231, %v2375
    %v2456 = vmul.f32 %v2232, %v2376
    %v2457 = vmul.f32 %v2233, %v2377
    %v2458 = vmul.f32 %v2234, %v2378
    %v2459 = vmul.f32 %v2443, -1259.1392
    %v2460 = vmul.f32 %v2444, -1259.1392
    %v2461 = vmul.f32 %v2445, -1259.1392
    %v2462 = vmul.f32 %v2446, -1259.1392
    %v2463 = vmul.f32 %v2447, -1259.1392
    %v2464 = vmul.f32 %v2448, -1259.1392
    %v2465 = vmul.f32 %v2449, -1259.1392
    %v2466 = vmul.f32 %v2450, -1259.1392
    %v2467 = vmul.f32 %v2451, -1259.1392
    %v2468 = vmul.f32 %v2452, -1259.1392
    %v2469 = vmul.f32 %v2453, -1259.1392
    %v2470 = vmul.f32 %v2454, -1259.1392
    %v2471 = vmul.f32 %v2455, -1259.1392
    %v2472 = vmul.f32 %v2456, -1259.1392
    %v2473 = vmul.f32 %v2457, -1259.1392
    %v2474 = vmul.f32 %v2458, -1259.1392
    %v2475 = vadd.f32 %v2427, %v2459
    %v2476 = vadd.f32 %v2428, %v2460
    %v2477 = vadd.f32 %v2429, %v2461
    %v2478 = vadd.f32 %v2430, %v2462
    %v2479 = vadd.f32 %v2431, %v2463
    %v2480 = vadd.f32 %v2432, %v2464
    %v2481 = vadd.f32 %v2433, %v2465
    %v2482 = vadd.f32 %v2434, %v2466
    %v2483 = vadd.f32 %v2435, %v2467
    %v2484 = vadd.f32 %v2436, %v2468
    %v2485 = vadd.f32 %v2437, %v2469
    %v2486 = vadd.f32 %v2438, %v2470
    %v2487 = vadd.f32 %v2439, %v2471
    %v2488 = vadd.f32 %v2440, %v2472
    %v2489 = vadd.f32 %v2441, %v2473
    %v2490 = vadd.f32 %v2442, %v2474
    %v2491 = vmul.f32 %v2347, %v2267
    %v2492 = vmul.f32 %v2348, %v2268
    %v2493 = vmul.f32 %v2349, %v2269
    %v2494 = vmul.f32 %v2350, %v2270
    %v2495 = vmul.f32 %v2351, %v2271
    %v2496 = vmul.f32 %v2352, %v2272
    %v2497 = vmul.f32 %v2353, %v2273
    %v2498 = vmul.f32 %v2354, %v2274
    %v2499 = vmul.f32 %v2355, %v2275
    %v2500 = vmul.f32 %v2356, %v2276
    %v2501 = vmul.f32 %v2357, %v2277
    %v2502 = vmul.f32 %v2358, %v2278
    %v2503 = vmul.f32 %v2359, %v2279
    %v2504 = vmul.f32 %v2360, %v2280
    %v2505 = vmul.f32 %v2361, %v2281
    %v2506 = vmul.f32 %v2362, %v2282
    %v2507 = vmul.f32 %v2491, 771.3234
    %v2508 = vmul.f32 %v2492, 771.3234
    %v2509 = vmul.f32 %v2493, 771.3234
    %v2510 = vmul.f32 %v2494, 771.3234
    %v2511 = vmul.f32 %v2495, 771.3234
    %v2512 = vmul.f32 %v2496, 771.3234
    %v2513 = vmul.f32 %v2497, 771.3234
    %v2514 = vmul.f32 %v2498, 771.3234
    %v2515 = vmul.f32 %v2499, 771.3234
    %v2516 = vmul.f32 %v2500, 771.3234
    %v2517 = vmul.f32 %v2501, 771.3234
    %v2518 = vmul.f32 %v2502, 771.3234
    %v2519 = vmul.f32 %v2503, 771.3234
    %v2520 = vmul.f32 %v2504, 771.3234
    %v2521 = vmul.f32 %v2505, 771.3234
    %v2522 = vmul.f32 %v2506, 771.3234
    %v2523 = vadd.f32 %v2475, %v2507
    %v2524 = vadd.f32 %v2476, %v2508
    %v2525 = vadd.f32 %v2477, %v2509
    %v2526 = vadd.f32 %v2478, %v2510
    %v2527 = vadd.f32 %v2479, %v2511
    %v2528 = vadd.f32 %v2480, %v2512
    %v2529 = vadd.f32 %v2481, %v2513
    %v2530 = vadd.f32 %v2482, %v2514
    %v2531 = vadd.f32 %v2483, %v2515
    %v2532 = vadd.f32 %v2484, %v2516
    %v2533 = vadd.f32 %v2485, %v2517
    %v2534 = vadd.f32 %v2486, %v2518
    %v2535 = vadd.f32 %v2487, %v2519
    %v2536 = vadd.f32 %v2488, %v2520
    %v2537 = vadd.f32 %v2489, %v2521
    %v2538 = vadd.f32 %v2490, %v2522
    %v2539 = vmul.f32 %v2347, %v2251
    %v2540 = vmul.f32 %v2348, %v2252
    %v2541 = vmul.f32 %v2349, %v2253
    %v2542 = vmul.f32 %v2350, %v2254
    %v2543 = vmul.f32 %v2351, %v2255
    %v2544 = vmul.f32 %v2352, %v2256
    %v2545 = vmul.f32 %v2353, %v2257
    %v2546 = vmul.f32 %v2354, %v2258
    %v2547 = vmul.f32 %v2355, %v2259
    %v2548 = vmul.f32 %v2356, %v2260
    %v2549 = vmul.f32 %v2357, %v2261
    %v2550 = vmul.f32 %v2358, %v2262
    %v2551 = vmul.f32 %v2359, %v2263
    %v2552 = vmul.f32 %v2360, %v2264
    %v2553 = vmul.f32 %v2361, %v2265
    %v2554 = vmul.f32 %v2362, %v2266
    %v2555 = vmul.f32 %v2539, -176.61504
    %v2556 = vmul.f32 %v2540, -176.61504
    %v2557 = vmul.f32 %v2541, -176.61504
    %v2558 = vmul.f32 %v2542, -176.61504
    %v2559 = vmul.f32 %v2543, -176.61504
    %v2560 = vmul.f32 %v2544, -176.61504
    %v2561 = vmul.f32 %v2545, -176.61504
    %v2562 = vmul.f32 %v2546, -176.61504
    %v2563 = vmul.f32 %v2547, -176.61504
    %v2564 = vmul.f32 %v2548, -176.61504
    %v2565 = vmul.f32 %v2549, -176.61504
    %v2566 = vmul.f32 %v2550, -176.61504
    %v2567 = vmul.f32 %v2551, -176.61504
    %v2568 = vmul.f32 %v2552, -176.61504
    %v2569 = vmul.f32 %v2553, -176.61504
    %v2570 = vmul.f32 %v2554, -176.61504
    %v2571 = vadd.f32 %v2523, %v2555
    %v2572 = vadd.f32 %v2524, %v2556
    %v2573 = vadd.f32 %v2525, %v2557
    %v2574 = vadd.f32 %v2526, %v2558
    %v2575 = vadd.f32 %v2527, %v2559
    %v2576 = vadd.f32 %v2528, %v2560
    %v2577 = vadd.f32 %v2529, %v2561
    %v2578 = vadd.f32 %v2530, %v2562
    %v2579 = vadd.f32 %v2531, %v2563
    %v2580 = vadd.f32 %v2532, %v2564
    %v2581 = vadd.f32 %v2533, %v2565
    %v2582 = vadd.f32 %v2534, %v2566
    %v2583 = vadd.f32 %v2535, %v2567
    %v2584 = vadd.f32 %v2536, %v2568
    %v2585 = vadd.f32 %v2537, %v2569
    %v2586 = vadd.f32 %v2538, %v2570
    %v2587 = vmul.f32 %v2283, %v2299
    %v2588 = vmul.f32 %v2284, %v2300
    %v2589 = vmul.f32 %v2285, %v2301
    %v2590 = vmul.f32 %v2286, %v2302
    %v2591 = vmul.f32 %v2287, %v2303
    %v2592 = vmul.f32 %v2288, %v2304
    %v2593 = vmul.f32 %v2289, %v2305
    %v2594 = vmul.f32 %v2290, %v2306
    %v2595 = vmul.f32 %v2291, %v2307
    %v2596 = vmul.f32 %v2292, %v2308
    %v2597 = vmul.f32 %v2293, %v2309
    %v2598 = vmul.f32 %v2294, %v2310
    %v2599 = vmul.f32 %v2295, %v2311
    %v2600 = vmul.f32 %v2296, %v2312
    %v2601 = vmul.f32 %v2297, %v2313
    %v2602 = vmul.f32 %v2298, %v2314
    %v2603 = vmul.f32 %v2315, %v2331
    %v2604 = vmul.f32 %v2316, %v2332
    %v2605 = vmul.f32 %v2317, %v2333
    %v2606 = vmul.f32 %v2318, %v2334
    %v2607 = vmul.f32 %v2319, %v2335
    %v2608 = vmul.f32 %v2320, %v2336
    %v2609 = vmul.f32 %v2321, %v2337
    %v2610 = vmul.f32 %v2322, %v2338
    %v2611 = vmul.f32 %v2323, %v2339
    %v2612 = vmul.f32 %v2324, %v2340
    %v2613 = vmul.f32 %v2325, %v2341
    %v2614 = vmul.f32 %v2326, %v2342
    %v2615 = vmul.f32 %v2327, %v2343
    %v2616 = vmul.f32 %v2328, %v2344
    %v2617 = vmul.f32 %v2329, %v2345
    %v2618 = vmul.f32 %v2330, %v2346
    %v2619 = vmul.f32 %v2299, %v2315
    %v2620 = vmul.f32 %v2300, %v2316
    %v2621 = vmul.f32 %v2301, %v2317
    %v2622 = vmul.f32 %v2302, %v2318
    %v2623 = vmul.f32 %v2303, %v2319
    %v2624 = vmul.f32 %v2304, %v2320
    %v2625 = vmul.f32 %v2305, %v2321
    %v2626 = vmul.f32 %v2306, %v2322
    %v2627 = vmul.f32 %v2307, %v2323
    %v2628 = vmul.f32 %v2308, %v2324
    %v2629 = vmul.f32 %v2309, %v2325
    %v2630 = vmul.f32 %v2310, %v2326
    %v2631 = vmul.f32 %v2311, %v2327
    %v2632 = vmul.f32 %v2312, %v2328
    %v2633 = vmul.f32 %v2313, %v2329
    %v2634 = vmul.f32 %v2314, %v2330
    %v2635 = vmul.f32 %v2587, %v2603
    %v2636 = vmul.f32 %v2588, %v2604
    %v2637 = vmul.f32 %v2589, %v2605
    %v2638 = vmul.f32 %v2590, %v2606
    %v2639 = vmul.f32 %v2591, %v2607
    %v2640 = vmul.f32 %v2592, %v2608
    %v2641 = vmul.f32 %v2593, %v2609
    %v2642 = vmul.f32 %v2594, %v2610
    %v2643 = vmul.f32 %v2595, %v2611
    %v2644 = vmul.f32 %v2596, %v2612
    %v2645 = vmul.f32 %v2597, %v2613
    %v2646 = vmul.f32 %v2598, %v2614
    %v2647 = vmul.f32 %v2599, %v2615
    %v2648 = vmul.f32 %v2600, %v2616
    %v2649 = vmul.f32 %v2601, %v2617
    %v2650 = vmul.f32 %v2602, %v2618
    %v2651 = vmul.f32 %v2619, %v2331
    %v2652 = vmul.f32 %v2620, %v2332
    %v2653 = vmul.f32 %v2621, %v2333
    %v2654 = vmul.f32 %v2622, %v2334
    %v2655 = vmul.f32 %v2623, %v2335
    %v2656 = vmul.f32 %v2624, %v2336
    %v2657 = vmul.f32 %v2625, %v2337
    %v2658 = vmul.f32 %v2626, %v2338
    %v2659 = vmul.f32 %v2627, %v2339
    %v2660 = vmul.f32 %v2628, %v2340
    %v2661 = vmul.f32 %v2629, %v2341
    %v2662 = vmul.f32 %v2630, %v2342
    %v2663 = vmul.f32 %v2631, %v2343
    %v2664 = vmul.f32 %v2632, %v2344
    %v2665 = vmul.f32 %v2633, %v2345
    %v2666 = vmul.f32 %v2634, %v2346
    %v2667 = vmul.f32 %v2651, 12.507343
    %v2668 = vmul.f32 %v2652, 12.507343
    %v2669 = vmul.f32 %v2653, 12.507343
    %v2670 = vmul.f32 %v2654, 12.507343
    %v2671 = vmul.f32 %v2655, 12.507343
    %v2672 = vmul.f32 %v2656, 12.507343
    %v2673 = vmul.f32 %v2657, 12.507343
    %v2674 = vmul.f32 %v2658, 12.507343
    %v2675 = vmul.f32 %v2659, 12.507343
    %v2676 = vmul.f32 %v2660, 12.507343
    %v2677 = vmul.f32 %v2661, 12.507343
    %v2678 = vmul.f32 %v2662, 12.507343
    %v2679 = vmul.f32 %v2663, 12.507343
    %v2680 = vmul.f32 %v2664, 12.507343
    %v2681 = vmul.f32 %v2665, 12.507343
    %v2682 = vmul.f32 %v2666, 12.507343
    %v2683 = vmul.f32 %v2283, %v2603
    %v2684 = vmul.f32 %v2284, %v2604
    %v2685 = vmul.f32 %v2285, %v2605
    %v2686 = vmul.f32 %v2286, %v2606
    %v2687 = vmul.f32 %v2287, %v2607
    %v2688 = vmul.f32 %v2288, %v2608
    %v2689 = vmul.f32 %v2289, %v2609
    %v2690 = vmul.f32 %v2290, %v2610
    %v2691 = vmul.f32 %v2291, %v2611
    %v2692 = vmul.f32 %v2292, %v2612
    %v2693 = vmul.f32 %v2293, %v2613
    %v2694 = vmul.f32 %v2294, %v2614
    %v2695 = vmul.f32 %v2295, %v2615
    %v2696 = vmul.f32 %v2296, %v2616
    %v2697 = vmul.f32 %v2297, %v2617
    %v2698 = vmul.f32 %v2298, %v2618
    %v2699 = vmul.f32 %v2683, -0.1385711
    %v2700 = vmul.f32 %v2684, -0.1385711
    %v2701 = vmul.f32 %v2685, -0.1385711
    %v2702 = vmul.f32 %v2686, -0.1385711
    %v2703 = vmul.f32 %v2687, -0.1385711
    %v2704 = vmul.f32 %v2688, -0.1385711
    %v2705 = vmul.f32 %v2689, -0.1385711
    %v2706 = vmul.f32 %v2690, -0.1385711
    %v2707 = vmul.f32 %v2691, -0.1385711
    %v2708 = vmul.f32 %v2692, -0.1385711
    %v2709 = vmul.f32 %v2693, -0.1385711
    %v2710 = vmul.f32 %v2694, -0.1385711
    %v2711 = vmul.f32 %v2695, -0.1385711
    %v2712 = vmul.f32 %v2696, -0.1385711
    %v2713 = vmul.f32 %v2697, -0.1385711
    %v2714 = vmul.f32 %v2698, -0.1385711
    %v2715 = vadd.f32 %v2667, %v2699
    %v2716 = vadd.f32 %v2668, %v2700
    %v2717 = vadd.f32 %v2669, %v2701
    %v2718 = vadd.f32 %v2670, %v2702
    %v2719 = vadd.f32 %v2671, %v2703
    %v2720 = vadd.f32 %v2672, %v2704
    %v2721 = vadd.f32 %v2673, %v2705
    %v2722 = vadd.f32 %v2674, %v2706
    %v2723 = vadd.f32 %v2675, %v2707
    %v2724 = vadd.f32 %v2676, %v2708
    %v2725 = vadd.f32 %v2677, %v2709
    %v2726 = vadd.f32 %v2678, %v2710
    %v2727 = vadd.f32 %v2679, %v2711
    %v2728 = vadd.f32 %v2680, %v2712
    %v2729 = vadd.f32 %v2681, %v2713
    %v2730 = vadd.f32 %v2682, %v2714
    %v2731 = vmul.f32 %v2587, %v2331
    %v2732 = vmul.f32 %v2588, %v2332
    %v2733 = vmul.f32 %v2589, %v2333
    %v2734 = vmul.f32 %v2590, %v2334
    %v2735 = vmul.f32 %v2591, %v2335
    %v2736 = vmul.f32 %v2592, %v2336
    %v2737 = vmul.f32 %v2593, %v2337
    %v2738 = vmul.f32 %v2594, %v2338
    %v2739 = vmul.f32 %v2595, %v2339
    %v2740 = vmul.f32 %v2596, %v2340
    %v2741 = vmul.f32 %v2597, %v2341
    %v2742 = vmul.f32 %v2598, %v2342
    %v2743 = vmul.f32 %v2599, %v2343
    %v2744 = vmul.f32 %v2600, %v2344
    %v2745 = vmul.f32 %v2601, %v2345
    %v2746 = vmul.f32 %v2602, %v2346
    %v2747 = vmul.f32 %v2731, 9.984369e-06
    %v2748 = vmul.f32 %v2732, 9.984369e-06
    %v2749 = vmul.f32 %v2733, 9.984369e-06
    %v2750 = vmul.f32 %v2734, 9.984369e-06
    %v2751 = vmul.f32 %v2735, 9.984369e-06
    %v2752 = vmul.f32 %v2736, 9.984369e-06
    %v2753 = vmul.f32 %v2737, 9.984369e-06
    %v2754 = vmul.f32 %v2738, 9.984369e-06
    %v2755 = vmul.f32 %v2739, 9.984369e-06
    %v2756 = vmul.f32 %v2740, 9.984369e-06
    %v2757 = vmul.f32 %v2741, 9.984369e-06
    %v2758 = vmul.f32 %v2742, 9.984369e-06
    %v2759 = vmul.f32 %v2743, 9.984369e-06
    %v2760 = vmul.f32 %v2744, 9.984369e-06
    %v2761 = vmul.f32 %v2745, 9.984369e-06
    %v2762 = vmul.f32 %v2746, 9.984369e-06
    %v2763 = vadd.f32 %v2715, %v2747
    %v2764 = vadd.f32 %v2716, %v2748
    %v2765 = vadd.f32 %v2717, %v2749
    %v2766 = vadd.f32 %v2718, %v2750
    %v2767 = vadd.f32 %v2719, %v2751
    %v2768 = vadd.f32 %v2720, %v2752
    %v2769 = vadd.f32 %v2721, %v2753
    %v2770 = vadd.f32 %v2722, %v2754
    %v2771 = vadd.f32 %v2723, %v2755
    %v2772 = vadd.f32 %v2724, %v2756
    %v2773 = vadd.f32 %v2725, %v2757
    %v2774 = vadd.f32 %v2726, %v2758
    %v2775 = vadd.f32 %v2727, %v2759
    %v2776 = vadd.f32 %v2728, %v2760
    %v2777 = vadd.f32 %v2729, %v2761
    %v2778 = vadd.f32 %v2730, %v2762
    %v2779 = vmul.f32 %v2587, %v2315
    %v2780 = vmul.f32 %v2588, %v2316
    %v2781 = vmul.f32 %v2589, %v2317
    %v2782 = vmul.f32 %v2590, %v2318
    %v2783 = vmul.f32 %v2591, %v2319
    %v2784 = vmul.f32 %v2592, %v2320
    %v2785 = vmul.f32 %v2593, %v2321
    %v2786 = vmul.f32 %v2594, %v2322
    %v2787 = vmul.f32 %v2595, %v2323
    %v2788 = vmul.f32 %v2596, %v2324
    %v2789 = vmul.f32 %v2597, %v2325
    %v2790 = vmul.f32 %v2598, %v2326
    %v2791 = vmul.f32 %v2599, %v2327
    %v2792 = vmul.f32 %v2600, %v2328
    %v2793 = vmul.f32 %v2601, %v2329
    %v2794 = vmul.f32 %v2602, %v2330
    %v2795 = vmul.f32 %v2779, 1.5056327e-07
    %v2796 = vmul.f32 %v2780, 1.5056327e-07
    %v2797 = vmul.f32 %v2781, 1.5056327e-07
    %v2798 = vmul.f32 %v2782, 1.5056327e-07
    %v2799 = vmul.f32 %v2783, 1.5056327e-07
    %v2800 = vmul.f32 %v2784, 1.5056327e-07
    %v2801 = vmul.f32 %v2785, 1.5056327e-07
    %v2802 = vmul.f32 %v2786, 1.5056327e-07
    %v2803 = vmul.f32 %v2787, 1.5056327e-07
    %v2804 = vmul.f32 %v2788, 1.5056327e-07
    %v2805 = vmul.f32 %v2789, 1.5056327e-07
    %v2806 = vmul.f32 %v2790, 1.5056327e-07
    %v2807 = vmul.f32 %v2791, 1.5056327e-07
    %v2808 = vmul.f32 %v2792, 1.5056327e-07
    %v2809 = vmul.f32 %v2793, 1.5056327e-07
    %v2810 = vmul.f32 %v2794, 1.5056327e-07
    %v2811 = vadd.f32 %v2763, %v2795
    %v2812 = vadd.f32 %v2764, %v2796
    %v2813 = vadd.f32 %v2765, %v2797
    %v2814 = vadd.f32 %v2766, %v2798
    %v2815 = vadd.f32 %v2767, %v2799
    %v2816 = vadd.f32 %v2768, %v2800
    %v2817 = vadd.f32 %v2769, %v2801
    %v2818 = vadd.f32 %v2770, %v2802
    %v2819 = vadd.f32 %v2771, %v2803
    %v2820 = vadd.f32 %v2772, %v2804
    %v2821 = vadd.f32 %v2773, %v2805
    %v2822 = vadd.f32 %v2774, %v2806
    %v2823 = vadd.f32 %v2775, %v2807
    %v2824 = vadd.f32 %v2776, %v2808
    %v2825 = vadd.f32 %v2777, %v2809
    %v2826 = vadd.f32 %v2778, %v2810
    %v2827 = vrcp.pop %v2395
    %v2828 = vmul.f32 %v2571, %v2827
    %v2829 = vrcp.pop %v2396
    %v2830 = vmul.f32 %v2572, %v2829
    %v2831 = vrcp.pop %v2397
    %v2832 = vmul.f32 %v2573, %v2831
    %v2833 = vrcp.pop %v2398
    %v2834 = vmul.f32 %v2574, %v2833
    %v2835 = vrcp.pop %v2399
    %v2836 = vmul.f32 %v2575, %v2835
    %v2837 = vrcp.pop %v2400
    %v2838 = vmul.f32 %v2576, %v2837
    %v2839 = vrcp.pop %v2401
    %v2840 = vmul.f32 %v2577, %v2839
    %v2841 = vrcp.pop %v2402
    %v2842 = vmul.f32 %v2578, %v2841
    %v2843 = vrcp.pop %v2403
    %v2844 = vmul.f32 %v2579, %v2843
    %v2845 = vrcp.pop %v2404
    %v2846 = vmul.f32 %v2580, %v2845
    %v2847 = vrcp.pop %v2405
    %v2848 = vmul.f32 %v2581, %v2847
    %v2849 = vrcp.pop %v2406
    %v2850 = vmul.f32 %v2582, %v2849
    %v2851 = vrcp.pop %v2407
    %v2852 = vmul.f32 %v2583, %v2851
    %v2853 = vrcp.pop %v2408
    %v2854 = vmul.f32 %v2584, %v2853
    %v2855 = vrcp.pop %v2409
    %v2856 = vmul.f32 %v2585, %v2855
    %v2857 = vrcp.pop %v2410
    %v2858 = vmul.f32 %v2586, %v2857
    %v2859 = vadd.f32 %v2828, 1.0
    %v2860 = vadd.f32 %v2830, 1.0
    %v2861 = vadd.f32 %v2832, 1.0
    %v2862 = vadd.f32 %v2834, 1.0
    %v2863 = vadd.f32 %v2836, 1.0
    %v2864 = vadd.f32 %v2838, 1.0
    %v2865 = vadd.f32 %v2840, 1.0
    %v2866 = vadd.f32 %v2842, 1.0
    %v2867 = vadd.f32 %v2844, 1.0
    %v2868 = vadd.f32 %v2846, 1.0
    %v2869 = vadd.f32 %v2848, 1.0
    %v2870 = vadd.f32 %v2850, 1.0
    %v2871 = vadd.f32 %v2852, 1.0
    %v2872 = vadd.f32 %v2854, 1.0
    %v2873 = vadd.f32 %v2856, 1.0
    %v2874 = vadd.f32 %v2858, 1.0
    %v2875 = vrcp.pop %v2635
    %v2876 = vmul.f32 %v2811, %v2875
    %v2877 = vrcp.pop %v2636
    %v2878 = vmul.f32 %v2812, %v2877
    %v2879 = vrcp.pop %v2637
    %v2880 = vmul.f32 %v2813, %v2879
    %v2881 = vrcp.pop %v2638
    %v2882 = vmul.f32 %v2814, %v2881
    %v2883 = vrcp.pop %v2639
    %v2884 = vmul.f32 %v2815, %v2883
    %v2885 = vrcp.pop %v2640
    %v2886 = vmul.f32 %v2816, %v2885
    %v2887 = vrcp.pop %v2641
    %v2888 = vmul.f32 %v2817, %v2887
    %v2889 = vrcp.pop %v2642
    %v2890 = vmul.f32 %v2818, %v2889
    %v2891 = vrcp.pop %v2643
    %v2892 = vmul.f32 %v2819, %v2891
    %v2893 = vrcp.pop %v2644
    %v2894 = vmul.f32 %v2820, %v2893
    %v2895 = vrcp.pop %v2645
    %v2896 = vmul.f32 %v2821, %v2895
    %v2897 = vrcp.pop %v2646
    %v2898 = vmul.f32 %v2822, %v2897
    %v2899 = vrcp.pop %v2647
    %v2900 = vmul.f32 %v2823, %v2899
    %v2901 = vrcp.pop %v2648
    %v2902 = vmul.f32 %v2824, %v2901
    %v2903 = vrcp.pop %v2649
    %v2904 = vmul.f32 %v2825, %v2903
    %v2905 = vrcp.pop %v2650
    %v2906 = vmul.f32 %v2826, %v2905
    %v2907 = vadd.f32 %v2859, %v2876
    %v2908 = vadd.f32 %v2860, %v2878
    %v2909 = vadd.f32 %v2861, %v2880
    %v2910 = vadd.f32 %v2862, %v2882
    %v2911 = vadd.f32 %v2863, %v2884
    %v2912 = vadd.f32 %v2864, %v2886
    %v2913 = vadd.f32 %v2865, %v2888
    %v2914 = vadd.f32 %v2866, %v2890
    %v2915 = vadd.f32 %v2867, %v2892
    %v2916 = vadd.f32 %v2868, %v2894
    %v2917 = vadd.f32 %v2869, %v2896
    %v2918 = vadd.f32 %v2870, %v2898
    %v2919 = vadd.f32 %v2871, %v2900
    %v2920 = vadd.f32 %v2872, %v2902
    %v2921 = vadd.f32 %v2873, %v2904
    %v2922 = vadd.f32 %v2874, %v2906
    %v2923 = vadd.f32 %v2219, 6.5
    %v2924 = vadd.f32 %v2220, 6.5
    %v2925 = vadd.f32 %v2221, 6.5
    %v2926 = vadd.f32 %v2222, 6.5
    %v2927 = vadd.f32 %v2223, 6.5
    %v2928 = vadd.f32 %v2224, 6.5
    %v2929 = vadd.f32 %v2225, 6.5
    %v2930 = vadd.f32 %v2226, 6.5
    %v2931 = vadd.f32 %v2227, 6.5
    %v2932 = vadd.f32 %v2228, 6.5
    %v2933 = vadd.f32 %v2229, 6.5
    %v2934 = vadd.f32 %v2230, 6.5
    %v2935 = vadd.f32 %v2231, 6.5
    %v2936 = vadd.f32 %v2232, 6.5
    %v2937 = vadd.f32 %v2233, 6.5
    %v2938 = vadd.f32 %v2234, 6.5
    %v2939 = vsub.f32 %v2219, 0.5
    %v2940 = vsub.f32 %v2220, 0.5
    %v2941 = vsub.f32 %v2221, 0.5
    %v2942 = vsub.f32 %v2222, 0.5
    %v2943 = vsub.f32 %v2223, 0.5
    %v2944 = vsub.f32 %v2224, 0.5
    %v2945 = vsub.f32 %v2225, 0.5
    %v2946 = vsub.f32 %v2226, 0.5
    %v2947 = vsub.f32 %v2227, 0.5
    %v2948 = vsub.f32 %v2228, 0.5
    %v2949 = vsub.f32 %v2229, 0.5
    %v2950 = vsub.f32 %v2230, 0.5
    %v2951 = vsub.f32 %v2231, 0.5
    %v2952 = vsub.f32 %v2232, 0.5
    %v2953 = vsub.f32 %v2233, 0.5
    %v2954 = vsub.f32 %v2234, 0.5
    %v2955 = vlog2.pop %v2923
    %v2956 = vmul.f32 %v2955, 0.6931472
    %v2957 = vlog2.pop %v2924
    %v2958 = vmul.f32 %v2957, 0.6931472
    %v2959 = vlog2.pop %v2925
    %v2960 = vmul.f32 %v2959, 0.6931472
    %v2961 = vlog2.pop %v2926
    %v2962 = vmul.f32 %v2961, 0.6931472
    %v2963 = vlog2.pop %v2927
    %v2964 = vmul.f32 %v2963, 0.6931472
    %v2965 = vlog2.pop %v2928
    %v2966 = vmul.f32 %v2965, 0.6931472
    %v2967 = vlog2.pop %v2929
    %v2968 = vmul.f32 %v2967, 0.6931472
    %v2969 = vlog2.pop %v2930
    %v2970 = vmul.f32 %v2969, 0.6931472
    %v2971 = vlog2.pop %v2931
    %v2972 = vmul.f32 %v2971, 0.6931472
    %v2973 = vlog2.pop %v2932
    %v2974 = vmul.f32 %v2973, 0.6931472
    %v2975 = vlog2.pop %v2933
    %v2976 = vmul.f32 %v2975, 0.6931472
    %v2977 = vlog2.pop %v2934
    %v2978 = vmul.f32 %v2977, 0.6931472
    %v2979 = vlog2.pop %v2935
    %v2980 = vmul.f32 %v2979, 0.6931472
    %v2981 = vlog2.pop %v2936
    %v2982 = vmul.f32 %v2981, 0.6931472
    %v2983 = vlog2.pop %v2937
    %v2984 = vmul.f32 %v2983, 0.6931472
    %v2985 = vlog2.pop %v2938
    %v2986 = vmul.f32 %v2985, 0.6931472
    %v2987 = vmul.f32 %v2939, %v2956
    %v2988 = vmul.f32 %v2940, %v2958
    %v2989 = vmul.f32 %v2941, %v2960
    %v2990 = vmul.f32 %v2942, %v2962
    %v2991 = vmul.f32 %v2943, %v2964
    %v2992 = vmul.f32 %v2944, %v2966
    %v2993 = vmul.f32 %v2945, %v2968
    %v2994 = vmul.f32 %v2946, %v2970
    %v2995 = vmul.f32 %v2947, %v2972
    %v2996 = vmul.f32 %v2948, %v2974
    %v2997 = vmul.f32 %v2949, %v2976
    %v2998 = vmul.f32 %v2950, %v2978
    %v2999 = vmul.f32 %v2951, %v2980
    %v3000 = vmul.f32 %v2952, %v2982
    %v3001 = vmul.f32 %v2953, %v2984
    %v3002 = vmul.f32 %v2954, %v2986
    %v3003 = vadd.f32 %v2987, 0.9189385
    %v3004 = vadd.f32 %v2988, 0.9189385
    %v3005 = vadd.f32 %v2989, 0.9189385
    %v3006 = vadd.f32 %v2990, 0.9189385
    %v3007 = vadd.f32 %v2991, 0.9189385
    %v3008 = vadd.f32 %v2992, 0.9189385
    %v3009 = vadd.f32 %v2993, 0.9189385
    %v3010 = vadd.f32 %v2994, 0.9189385
    %v3011 = vadd.f32 %v2995, 0.9189385
    %v3012 = vadd.f32 %v2996, 0.9189385
    %v3013 = vadd.f32 %v2997, 0.9189385
    %v3014 = vadd.f32 %v2998, 0.9189385
    %v3015 = vadd.f32 %v2999, 0.9189385
    %v3016 = vadd.f32 %v3000, 0.9189385
    %v3017 = vadd.f32 %v3001, 0.9189385
    %v3018 = vadd.f32 %v3002, 0.9189385
    %v3019 = vsub.f32 %v3003, %v2923
    %v3020 = vsub.f32 %v3004, %v2924
    %v3021 = vsub.f32 %v3005, %v2925
    %v3022 = vsub.f32 %v3006, %v2926
    %v3023 = vsub.f32 %v3007, %v2927
    %v3024 = vsub.f32 %v3008, %v2928
    %v3025 = vsub.f32 %v3009, %v2929
    %v3026 = vsub.f32 %v3010, %v2930
    %v3027 = vsub.f32 %v3011, %v2931
    %v3028 = vsub.f32 %v3012, %v2932
    %v3029 = vsub.f32 %v3013, %v2933
    %v3030 = vsub.f32 %v3014, %v2934
    %v3031 = vsub.f32 %v3015, %v2935
    %v3032 = vsub.f32 %v3016, %v2936
    %v3033 = vsub.f32 %v3017, %v2937
    %v3034 = vsub.f32 %v3018, %v2938
    %v3035 = vlog2.pop %v2907
    %v3036 = vmul.f32 %v3035, 0.6931472
    %v3037 = vlog2.pop %v2908
    %v3038 = vmul.f32 %v3037, 0.6931472
    %v3039 = vlog2.pop %v2909
    %v3040 = vmul.f32 %v3039, 0.6931472
    %v3041 = vlog2.pop %v2910
    %v3042 = vmul.f32 %v3041, 0.6931472
    %v3043 = vlog2.pop %v2911
    %v3044 = vmul.f32 %v3043, 0.6931472
    %v3045 = vlog2.pop %v2912
    %v3046 = vmul.f32 %v3045, 0.6931472
    %v3047 = vlog2.pop %v2913
    %v3048 = vmul.f32 %v3047, 0.6931472
    %v3049 = vlog2.pop %v2914
    %v3050 = vmul.f32 %v3049, 0.6931472
    %v3051 = vlog2.pop %v2915
    %v3052 = vmul.f32 %v3051, 0.6931472
    %v3053 = vlog2.pop %v2916
    %v3054 = vmul.f32 %v3053, 0.6931472
    %v3055 = vlog2.pop %v2917
    %v3056 = vmul.f32 %v3055, 0.6931472
    %v3057 = vlog2.pop %v2918
    %v3058 = vmul.f32 %v3057, 0.6931472
    %v3059 = vlog2.pop %v2919
    %v3060 = vmul.f32 %v3059, 0.6931472
    %v3061 = vlog2.pop %v2920
    %v3062 = vmul.f32 %v3061, 0.6931472
    %v3063 = vlog2.pop %v2921
    %v3064 = vmul.f32 %v3063, 0.6931472
    %v3065 = vlog2.pop %v2922
    %v3066 = vmul.f32 %v3065, 0.6931472
    %v3067 = vadd.f32 %v3019, %v3036
    %v3068 = vadd.f32 %v3020, %v3038
    %v3069 = vadd.f32 %v3021, %v3040
    %v3070 = vadd.f32 %v3022, %v3042
    %v3071 = vadd.f32 %v3023, %v3044
    %v3072 = vadd.f32 %v3024, %v3046
    %v3073 = vadd.f32 %v3025, %v3048
    %v3074 = vadd.f32 %v3026, %v3050
    %v3075 = vadd.f32 %v3027, %v3052
    %v3076 = vadd.f32 %v3028, %v3054
    %v3077 = vadd.f32 %v3029, %v3056
    %v3078 = vadd.f32 %v3030, %v3058
    %v3079 = vadd.f32 %v3031, %v3060
    %v3080 = vadd.f32 %v3032, %v3062
    %v3081 = vadd.f32 %v3033, %v3064
    %v3082 = vadd.f32 %v3034, %v3066
    %v3083 = vlog2.pop %v2171
    %v3084 = vmul.f32 %v3083, 0.6931472
    %v3085 = vlog2.pop %v2172
    %v3086 = vmul.f32 %v3085, 0.6931472
    %v3087 = vlog2.pop %v2173
    %v3088 = vmul.f32 %v3087, 0.6931472
    %v3089 = vlog2.pop %v2174
    %v3090 = vmul.f32 %v3089, 0.6931472
    %v3091 = vlog2.pop %v2175
    %v3092 = vmul.f32 %v3091, 0.6931472
    %v3093 = vlog2.pop %v2176
    %v3094 = vmul.f32 %v3093, 0.6931472
    %v3095 = vlog2.pop %v2177
    %v3096 = vmul.f32 %v3095, 0.6931472
    %v3097 = vlog2.pop %v2178
    %v3098 = vmul.f32 %v3097, 0.6931472
    %v3099 = vlog2.pop %v2179
    %v3100 = vmul.f32 %v3099, 0.6931472
    %v3101 = vlog2.pop %v2180
    %v3102 = vmul.f32 %v3101, 0.6931472
    %v3103 = vlog2.pop %v2181
    %v3104 = vmul.f32 %v3103, 0.6931472
    %v3105 = vlog2.pop %v2182
    %v3106 = vmul.f32 %v3105, 0.6931472
    %v3107 = vlog2.pop %v2183
    %v3108 = vmul.f32 %v3107, 0.6931472
    %v3109 = vlog2.pop %v2184
    %v3110 = vmul.f32 %v3109, 0.6931472
    %v3111 = vlog2.pop %v2185
    %v3112 = vmul.f32 %v3111, 0.6931472
    %v3113 = vlog2.pop %v2186
    %v3114 = vmul.f32 %v3113, 0.6931472
    %v3115 = vsub.f32 %v3067, %v3084
    %v3116 = vsub.f32 %v3068, %v3086
    %v3117 = vsub.f32 %v3069, %v3088
    %v3118 = vsub.f32 %v3070, %v3090
    %v3119 = vsub.f32 %v3071, %v3092
    %v3120 = vsub.f32 %v3072, %v3094
    %v3121 = vsub.f32 %v3073, %v3096
    %v3122 = vsub.f32 %v3074, %v3098
    %v3123 = vsub.f32 %v3075, %v3100
    %v3124 = vsub.f32 %v3076, %v3102
    %v3125 = vsub.f32 %v3077, %v3104
    %v3126 = vsub.f32 %v3078, %v3106
    %v3127 = vsub.f32 %v3079, %v3108
    %v3128 = vsub.f32 %v3080, %v3110
    %v3129 = vsub.f32 %v3081, %v3112
    %v3130 = vsub.f32 %v3082, %v3114
    %v3131 = vsel %vm2187, %v3115, %v3067
    %v3132 = vsel %vm2188, %v3116, %v3068
    %v3133 = vsel %vm2189, %v3117, %v3069
    %v3134 = vsel %vm2190, %v3118, %v3070
    %v3135 = vsel %vm2191, %v3119, %v3071
    %v3136 = vsel %vm2192, %v3120, %v3072
    %v3137 = vsel %vm2193, %v3121, %v3073
    %v3138 = vsel %vm2194, %v3122, %v3074
    %v3139 = vsel %vm2195, %v3123, %v3075
    %v3140 = vsel %vm2196, %v3124, %v3076
    %v3141 = vsel %vm2197, %v3125, %v3077
    %v3142 = vsel %vm2198, %v3126, %v3078
    %v3143 = vsel %vm2199, %v3127, %v3079
    %v3144 = vsel %vm2200, %v3128, %v3080
    %v3145 = vsel %vm2201, %v3129, %v3081
    %v3146 = vsel %vm2202, %v3130, %v3082
    %v3147 = vsub.f32 %v2139, %v3131
    %v3148 = vsub.f32 %v2140, %v3132
    %v3149 = vsub.f32 %v2141, %v3133
    %v3150 = vsub.f32 %v2142, %v3134
    %v3151 = vsub.f32 %v2143, %v3135
    %v3152 = vsub.f32 %v2144, %v3136
    %v3153 = vsub.f32 %v2145, %v3137
    %v3154 = vsub.f32 %v2146, %v3138
    %v3155 = vsub.f32 %v2147, %v3139
    %v3156 = vsub.f32 %v2148, %v3140
    %v3157 = vsub.f32 %v2149, %v3141
    %v3158 = vsub.f32 %v2150, %v3142
    %v3159 = vsub.f32 %v2151, %v3143
    %v3160 = vsub.f32 %v2152, %v3144
    %v3161 = vsub.f32 %v2153, %v3145
    %v3162 = vsub.f32 %v2154, %v3146
    %v3163 = vsub.f32 %v316, %v204
    %v3164 = vsub.f32 %v318, %v206
    %v3165 = vsub.f32 %v320, %v208
    %v3166 = vsub.f32 %v322, %v210
    %v3167 = vsub.f32 %v324, %v212
    %v3168 = vsub.f32 %v326, %v214
    %v3169 = vsub.f32 %v328, %v216
    %v3170 = vsub.f32 %v330, %v218
    %v3171 = vsub.f32 %v332, %v220
    %v3172 = vsub.f32 %v334, %v222
    %v3173 = vsub.f32 %v336, %v224
    %v3174 = vsub.f32 %v338, %v226
    %v3175 = vsub.f32 %v340, %v228
    %v3176 = vsub.f32 %v342, %v230
    %v3177 = vsub.f32 %v344, %v232
    %v3178 = vsub.f32 %v346, %v234
    %v3179 = vmul.f32 %v2155, %v3163
    %v3180 = vmul.f32 %v2156, %v3164
    %v3181 = vmul.f32 %v2157, %v3165
    %v3182 = vmul.f32 %v2158, %v3166
    %v3183 = vmul.f32 %v2159, %v3167
    %v3184 = vmul.f32 %v2160, %v3168
    %v3185 = vmul.f32 %v2161, %v3169
    %v3186 = vmul.f32 %v2162, %v3170
    %v3187 = vmul.f32 %v2163, %v3171
    %v3188 = vmul.f32 %v2164, %v3172
    %v3189 = vmul.f32 %v2165, %v3173
    %v3190 = vmul.f32 %v2166, %v3174
    %v3191 = vmul.f32 %v2167, %v3175
    %v3192 = vmul.f32 %v2168, %v3176
    %v3193 = vmul.f32 %v2169, %v3177
    %v3194 = vmul.f32 %v2170, %v3178
    %v3195 = vsub.f32 %v204, %v252
    %v3196 = vsub.f32 %v206, %v254
    %v3197 = vsub.f32 %v208, %v256
    %v3198 = vsub.f32 %v210, %v258
    %v3199 = vsub.f32 %v212, %v260
    %v3200 = vsub.f32 %v214, %v262
    %v3201 = vsub.f32 %v216, %v264
    %v3202 = vsub.f32 %v218, %v266
    %v3203 = vsub.f32 %v220, %v268
    %v3204 = vsub.f32 %v222, %v270
    %v3205 = vsub.f32 %v224, %v272
    %v3206 = vsub.f32 %v226, %v274
    %v3207 = vsub.f32 %v228, %v276
    %v3208 = vsub.f32 %v230, %v278
    %v3209 = vsub.f32 %v232, %v280
    %v3210 = vsub.f32 %v234, %v282
    %v3211 = vmul.f32 %v123, %v3195
    %v3212 = vmul.f32 %v124, %v3196
    %v3213 = vmul.f32 %v125, %v3197
    %v3214 = vmul.f32 %v126, %v3198
    %v3215 = vmul.f32 %v127, %v3199
    %v3216 = vmul.f32 %v128, %v3200
    %v3217 = vmul.f32 %v129, %v3201
    %v3218 = vmul.f32 %v130, %v3202
    %v3219 = vmul.f32 %v131, %v3203
    %v3220 = vmul.f32 %v132, %v3204
    %v3221 = vmul.f32 %v133, %v3205
    %v3222 = vmul.f32 %v134, %v3206
    %v3223 = vmul.f32 %v135, %v3207
    %v3224 = vmul.f32 %v136, %v3208
    %v3225 = vmul.f32 %v137, %v3209
    %v3226 = vmul.f32 %v138, %v3210
    %v3227 = vadd.f32 %v3179, %v3211
    %v3228 = vadd.f32 %v3180, %v3212
    %v3229 = vadd.f32 %v3181, %v3213
    %v3230 = vadd.f32 %v3182, %v3214
    %v3231 = vadd.f32 %v3183, %v3215
    %v3232 = vadd.f32 %v3184, %v3216
    %v3233 = vadd.f32 %v3185, %v3217
    %v3234 = vadd.f32 %v3186, %v3218
    %v3235 = vadd.f32 %v3187, %v3219
    %v3236 = vadd.f32 %v3188, %v3220
    %v3237 = vadd.f32 %v3189, %v3221
    %v3238 = vadd.f32 %v3190, %v3222
    %v3239 = vadd.f32 %v3191, %v3223
    %v3240 = vadd.f32 %v3192, %v3224
    %v3241 = vadd.f32 %v3193, %v3225
    %v3242 = vadd.f32 %v3194, %v3226
    %v3243 = vadd.f32 %v3147, %v3227
    %v3244 = vadd.f32 %v3148, %v3228
    %v3245 = vadd.f32 %v3149, %v3229
    %v3246 = vadd.f32 %v3150, %v3230
    %v3247 = vadd.f32 %v3151, %v3231
    %v3248 = vadd.f32 %v3152, %v3232
    %v3249 = vadd.f32 %v3153, %v3233
    %v3250 = vadd.f32 %v3154, %v3234
    %v3251 = vadd.f32 %v3155, %v3235
    %v3252 = vadd.f32 %v3156, %v3236
    %v3253 = vadd.f32 %v3157, %v3237
    %v3254 = vadd.f32 %v3158, %v3238
    %v3255 = vadd.f32 %v3159, %v3239
    %v3256 = vadd.f32 %v3160, %v3240
    %v3257 = vadd.f32 %v3161, %v3241
    %v3258 = vadd.f32 %v3162, %v3242
    %v3259 = vsub.f32 1.0, %v171
    %v3260 = vsub.f32 1.0, %v172
    %v3261 = vsub.f32 1.0, %v173
    %v3262 = vsub.f32 1.0, %v174
    %v3263 = vsub.f32 1.0, %v175
    %v3264 = vsub.f32 1.0, %v176
    %v3265 = vsub.f32 1.0, %v177
    %v3266 = vsub.f32 1.0, %v178
    %v3267 = vsub.f32 1.0, %v179
    %v3268 = vsub.f32 1.0, %v180
    %v3269 = vsub.f32 1.0, %v181
    %v3270 = vsub.f32 1.0, %v182
    %v3271 = vsub.f32 1.0, %v183
    %v3272 = vsub.f32 1.0, %v184
    %v3273 = vsub.f32 1.0, %v185
    %v3274 = vsub.f32 1.0, %v186
    %v3275 = vadd.f32 %v3259, 1e-10
    %v3276 = vadd.f32 %v3260, 1e-10
    %v3277 = vadd.f32 %v3261, 1e-10
    %v3278 = vadd.f32 %v3262, 1e-10
    %v3279 = vadd.f32 %v3263, 1e-10
    %v3280 = vadd.f32 %v3264, 1e-10
    %v3281 = vadd.f32 %v3265, 1e-10
    %v3282 = vadd.f32 %v3266, 1e-10
    %v3283 = vadd.f32 %v3267, 1e-10
    %v3284 = vadd.f32 %v3268, 1e-10
    %v3285 = vadd.f32 %v3269, 1e-10
    %v3286 = vadd.f32 %v3270, 1e-10
    %v3287 = vadd.f32 %v3271, 1e-10
    %v3288 = vadd.f32 %v3272, 1e-10
    %v3289 = vadd.f32 %v3273, 1e-10
    %v3290 = vadd.f32 %v3274, 1e-10
    %v3291 = vlog2.pop %v3275
    %v3292 = vmul.f32 %v3291, 0.6931472
    %v3293 = vlog2.pop %v3276
    %v3294 = vmul.f32 %v3293, 0.6931472
    %v3295 = vlog2.pop %v3277
    %v3296 = vmul.f32 %v3295, 0.6931472
    %v3297 = vlog2.pop %v3278
    %v3298 = vmul.f32 %v3297, 0.6931472
    %v3299 = vlog2.pop %v3279
    %v3300 = vmul.f32 %v3299, 0.6931472
    %v3301 = vlog2.pop %v3280
    %v3302 = vmul.f32 %v3301, 0.6931472
    %v3303 = vlog2.pop %v3281
    %v3304 = vmul.f32 %v3303, 0.6931472
    %v3305 = vlog2.pop %v3282
    %v3306 = vmul.f32 %v3305, 0.6931472
    %v3307 = vlog2.pop %v3283
    %v3308 = vmul.f32 %v3307, 0.6931472
    %v3309 = vlog2.pop %v3284
    %v3310 = vmul.f32 %v3309, 0.6931472
    %v3311 = vlog2.pop %v3285
    %v3312 = vmul.f32 %v3311, 0.6931472
    %v3313 = vlog2.pop %v3286
    %v3314 = vmul.f32 %v3313, 0.6931472
    %v3315 = vlog2.pop %v3287
    %v3316 = vmul.f32 %v3315, 0.6931472
    %v3317 = vlog2.pop %v3288
    %v3318 = vmul.f32 %v3317, 0.6931472
    %v3319 = vlog2.pop %v3289
    %v3320 = vmul.f32 %v3319, 0.6931472
    %v3321 = vlog2.pop %v3290
    %v3322 = vmul.f32 %v3321, 0.6931472
    %v3323 = vsub.f32 %v3243, %v3292
    %v3324 = vsub.f32 %v3244, %v3294
    %v3325 = vsub.f32 %v3245, %v3296
    %v3326 = vsub.f32 %v3246, %v3298
    %v3327 = vsub.f32 %v3247, %v3300
    %v3328 = vsub.f32 %v3248, %v3302
    %v3329 = vsub.f32 %v3249, %v3304
    %v3330 = vsub.f32 %v3250, %v3306
    %v3331 = vsub.f32 %v3251, %v3308
    %v3332 = vsub.f32 %v3252, %v3310
    %v3333 = vsub.f32 %v3253, %v3312
    %v3334 = vsub.f32 %v3254, %v3314
    %v3335 = vsub.f32 %v3255, %v3316
    %v3336 = vsub.f32 %v3256, %v3318
    %v3337 = vsub.f32 %v3257, %v3320
    %v3338 = vsub.f32 %v3258, %v3322
    %v3339 = vsub.f32 %v204, %v316
    %v3340 = vsub.f32 %v206, %v318
    %v3341 = vsub.f32 %v208, %v320
    %v3342 = vsub.f32 %v210, %v322
    %v3343 = vsub.f32 %v212, %v324
    %v3344 = vsub.f32 %v214, %v326
    %v3345 = vsub.f32 %v216, %v328
    %v3346 = vsub.f32 %v218, %v330
    %v3347 = vsub.f32 %v220, %v332
    %v3348 = vsub.f32 %v222, %v334
    %v3349 = vsub.f32 %v224, %v336
    %v3350 = vsub.f32 %v226, %v338
    %v3351 = vsub.f32 %v228, %v340
    %v3352 = vsub.f32 %v230, %v342
    %v3353 = vsub.f32 %v232, %v344
    %v3354 = vsub.f32 %v234, %v346
    %v3355 = vmul.f32 %v155, %v3339
    %v3356 = vmul.f32 %v156, %v3340
    %v3357 = vmul.f32 %v157, %v3341
    %v3358 = vmul.f32 %v158, %v3342
    %v3359 = vmul.f32 %v159, %v3343
    %v3360 = vmul.f32 %v160, %v3344
    %v3361 = vmul.f32 %v161, %v3345
    %v3362 = vmul.f32 %v162, %v3346
    %v3363 = vmul.f32 %v163, %v3347
    %v3364 = vmul.f32 %v164, %v3348
    %v3365 = vmul.f32 %v165, %v3349
    %v3366 = vmul.f32 %v166, %v3350
    %v3367 = vmul.f32 %v167, %v3351
    %v3368 = vmul.f32 %v168, %v3352
    %v3369 = vmul.f32 %v169, %v3353
    %v3370 = vmul.f32 %v170, %v3354
    %v3371 = vmul.f32 %v3355, 1.442695
    %v3372 = vpow.pop %v3371
    %v3373 = vmul.f32 %v3356, 1.442695
    %v3374 = vpow.pop %v3373
    %v3375 = vmul.f32 %v3357, 1.442695
    %v3376 = vpow.pop %v3375
    %v3377 = vmul.f32 %v3358, 1.442695
    %v3378 = vpow.pop %v3377
    %v3379 = vmul.f32 %v3359, 1.442695
    %v3380 = vpow.pop %v3379
    %v3381 = vmul.f32 %v3360, 1.442695
    %v3382 = vpow.pop %v3381
    %v3383 = vmul.f32 %v3361, 1.442695
    %v3384 = vpow.pop %v3383
    %v3385 = vmul.f32 %v3362, 1.442695
    %v3386 = vpow.pop %v3385
    %v3387 = vmul.f32 %v3363, 1.442695
    %v3388 = vpow.pop %v3387
    %v3389 = vmul.f32 %v3364, 1.442695
    %v3390 = vpow.pop %v3389
    %v3391 = vmul.f32 %v3365, 1.442695
    %v3392 = vpow.pop %v3391
    %v3393 = vmul.f32 %v3366, 1.442695
    %v3394 = vpow.pop %v3393
    %v3395 = vmul.f32 %v3367, 1.442695
    %v3396 = vpow.pop %v3395
    %v3397 = vmul.f32 %v3368, 1.442695
    %v3398 = vpow.pop %v3397
    %v3399 = vmul.f32 %v3369, 1.442695
    %v3400 = vpow.pop %v3399
    %v3401 = vmul.f32 %v3370, 1.442695
    %v3402 = vpow.pop %v3401
    %v3403 = vmul.f32 %v3259, %v3372
    %v3404 = vmul.f32 %v3260, %v3374
    %v3405 = vmul.f32 %v3261, %v3376
    %v3406 = vmul.f32 %v3262, %v3378
    %v3407 = vmul.f32 %v3263, %v3380
    %v3408 = vmul.f32 %v3264, %v3382
    %v3409 = vmul.f32 %v3265, %v3384
    %v3410 = vmul.f32 %v3266, %v3386
    %v3411 = vmul.f32 %v3267, %v3388
    %v3412 = vmul.f32 %v3268, %v3390
    %v3413 = vmul.f32 %v3269, %v3392
    %v3414 = vmul.f32 %v3270, %v3394
    %v3415 = vmul.f32 %v3271, %v3396
    %v3416 = vmul.f32 %v3272, %v3398
    %v3417 = vmul.f32 %v3273, %v3400
    %v3418 = vmul.f32 %v3274, %v3402
    %v3419 = vadd.f32 %v171, %v3403
    %v3420 = vadd.f32 %v172, %v3404
    %v3421 = vadd.f32 %v173, %v3405
    %v3422 = vadd.f32 %v174, %v3406
    %v3423 = vadd.f32 %v175, %v3407
    %v3424 = vadd.f32 %v176, %v3408
    %v3425 = vadd.f32 %v177, %v3409
    %v3426 = vadd.f32 %v178, %v3410
    %v3427 = vadd.f32 %v179, %v3411
    %v3428 = vadd.f32 %v180, %v3412
    %v3429 = vadd.f32 %v181, %v3413
    %v3430 = vadd.f32 %v182, %v3414
    %v3431 = vadd.f32 %v183, %v3415
    %v3432 = vadd.f32 %v184, %v3416
    %v3433 = vadd.f32 %v185, %v3417
    %v3434 = vadd.f32 %v186, %v3418
    %v3435 = vadd.f32 %v3419, 1e-10
    %v3436 = vadd.f32 %v3420, 1e-10
    %v3437 = vadd.f32 %v3421, 1e-10
    %v3438 = vadd.f32 %v3422, 1e-10
    %v3439 = vadd.f32 %v3423, 1e-10
    %v3440 = vadd.f32 %v3424, 1e-10
    %v3441 = vadd.f32 %v3425, 1e-10
    %v3442 = vadd.f32 %v3426, 1e-10
    %v3443 = vadd.f32 %v3427, 1e-10
    %v3444 = vadd.f32 %v3428, 1e-10
    %v3445 = vadd.f32 %v3429, 1e-10
    %v3446 = vadd.f32 %v3430, 1e-10
    %v3447 = vadd.f32 %v3431, 1e-10
    %v3448 = vadd.f32 %v3432, 1e-10
    %v3449 = vadd.f32 %v3433, 1e-10
    %v3450 = vadd.f32 %v3434, 1e-10
    %v3451 = vlog2.pop %v3435
    %v3452 = vmul.f32 %v3451, 0.6931472
    %v3453 = vlog2.pop %v3436
    %v3454 = vmul.f32 %v3453, 0.6931472
    %v3455 = vlog2.pop %v3437
    %v3456 = vmul.f32 %v3455, 0.6931472
    %v3457 = vlog2.pop %v3438
    %v3458 = vmul.f32 %v3457, 0.6931472
    %v3459 = vlog2.pop %v3439
    %v3460 = vmul.f32 %v3459, 0.6931472
    %v3461 = vlog2.pop %v3440
    %v3462 = vmul.f32 %v3461, 0.6931472
    %v3463 = vlog2.pop %v3441
    %v3464 = vmul.f32 %v3463, 0.6931472
    %v3465 = vlog2.pop %v3442
    %v3466 = vmul.f32 %v3465, 0.6931472
    %v3467 = vlog2.pop %v3443
    %v3468 = vmul.f32 %v3467, 0.6931472
    %v3469 = vlog2.pop %v3444
    %v3470 = vmul.f32 %v3469, 0.6931472
    %v3471 = vlog2.pop %v3445
    %v3472 = vmul.f32 %v3471, 0.6931472
    %v3473 = vlog2.pop %v3446
    %v3474 = vmul.f32 %v3473, 0.6931472
    %v3475 = vlog2.pop %v3447
    %v3476 = vmul.f32 %v3475, 0.6931472
    %v3477 = vlog2.pop %v3448
    %v3478 = vmul.f32 %v3477, 0.6931472
    %v3479 = vlog2.pop %v3449
    %v3480 = vmul.f32 %v3479, 0.6931472
    %v3481 = vlog2.pop %v3450
    %v3482 = vmul.f32 %v3481, 0.6931472
    %v3483 = vsub.f32 0.0, %v3452
    %v3484 = vsub.f32 0.0, %v3454
    %v3485 = vsub.f32 0.0, %v3456
    %v3486 = vsub.f32 0.0, %v3458
    %v3487 = vsub.f32 0.0, %v3460
    %v3488 = vsub.f32 0.0, %v3462
    %v3489 = vsub.f32 0.0, %v3464
    %v3490 = vsub.f32 0.0, %v3466
    %v3491 = vsub.f32 0.0, %v3468
    %v3492 = vsub.f32 0.0, %v3470
    %v3493 = vsub.f32 0.0, %v3472
    %v3494 = vsub.f32 0.0, %v3474
    %v3495 = vsub.f32 0.0, %v3476
    %v3496 = vsub.f32 0.0, %v3478
    %v3497 = vsub.f32 0.0, %v3480
    %v3498 = vsub.f32 0.0, %v3482
    %vm3499 = vcmp.le.f32.partialorder %v123, 1e-08
    %vm3500 = vcmp.le.f32.partialorder %v124, 1e-08
    %vm3501 = vcmp.le.f32.partialorder %v125, 1e-08
    %vm3502 = vcmp.le.f32.partialorder %v126, 1e-08
    %vm3503 = vcmp.le.f32.partialorder %v127, 1e-08
    %vm3504 = vcmp.le.f32.partialorder %v128, 1e-08
    %vm3505 = vcmp.le.f32.partialorder %v129, 1e-08
    %vm3506 = vcmp.le.f32.partialorder %v130, 1e-08
    %vm3507 = vcmp.le.f32.partialorder %v131, 1e-08
    %vm3508 = vcmp.le.f32.partialorder %v132, 1e-08
    %vm3509 = vcmp.le.f32.partialorder %v133, 1e-08
    %vm3510 = vcmp.le.f32.partialorder %v134, 1e-08
    %vm3511 = vcmp.le.f32.partialorder %v135, 1e-08
    %vm3512 = vcmp.le.f32.partialorder %v136, 1e-08
    %vm3513 = vcmp.le.f32.partialorder %v137, 1e-08
    %vm3514 = vcmp.le.f32.partialorder %v138, 1e-08
    %v3515 = vsel %vm3499, %v3483, %v3323
    %v3516 = vsel %vm3500, %v3484, %v3324
    %v3517 = vsel %vm3501, %v3485, %v3325
    %v3518 = vsel %vm3502, %v3486, %v3326
    %v3519 = vsel %vm3503, %v3487, %v3327
    %v3520 = vsel %vm3504, %v3488, %v3328
    %v3521 = vsel %vm3505, %v3489, %v3329
    %v3522 = vsel %vm3506, %v3490, %v3330
    %v3523 = vsel %vm3507, %v3491, %v3331
    %v3524 = vsel %vm3508, %v3492, %v3332
    %v3525 = vsel %vm3509, %v3493, %v3333
    %v3526 = vsel %vm3510, %v3494, %v3334
    %v3527 = vsel %vm3511, %v3495, %v3335
    %v3528 = vsel %vm3512, %v3496, %v3336
    %v3529 = vsel %vm3513, %v3497, %v3337
    %v3530 = vsel %vm3514, %v3498, %v3338
    %v3531 = vadd.f32 %v3515, %v3517
    %v3532 = vadd.f32 %v3516, %v3518
    %v3533 = vadd.f32 %v3531, %v3519
    %v3534 = vadd.f32 %v3532, %v3520
    %v3535 = vadd.f32 %v3533, %v3521
    %v3536 = vadd.f32 %v3534, %v3522
    %v3537 = vadd.f32 %v3535, %v3523
    %v3538 = vadd.f32 %v3536, %v3524
    %v3539 = vadd.f32 %v3537, %v3525
    %v3540 = vadd.f32 %v3538, %v3526
    %v3541 = vadd.f32 %v3539, %v3527
    %v3542 = vadd.f32 %v3540, %v3528
    %v3543 = vadd.f32 %v3541, %v3529
    %v3544 = vadd.f32 %v3542, %v3530
    %v3545 = vld [vmem:[#allocation10] sm:$0xff]
    %v3546 = vld [vmem:[#allocation10 + $0x8] sm:$0xff]
    %v3547 = vadd.f32 %v3545, %v3543
    %v3548 = vadd.f32 %v3546, %v3544
    %3549 = vst [vmem:[#allocation10] sm:$0xff] %v3547
    %3550 = vst [vmem:[#allocation10 + $0x8] sm:$0xff] %v3548
    // Predicated region
    $region38: #{tpu_custom_call.1} parent=1 // pred_check
      _
    $region39: #{tpu_custom_call.1} parent=1 // pred_check_branch
      %3552 = sbr.rel (0) target = $region41
    $region40: #{tpu_custom_call.1} parent=1 // pred_region
      %s3554 = ssub.s32 256, 256
      %3555 = vsyncadd [#allocation4], %s3554
      %s3557 = sshll.u32 [#allocation10], 4
      %s3558 = int_to_ptr.vmem [resolvable:$true] %s3557
      %3560 = dma.vmem_to_hbm [thread:$0]  %s3558, 256, %s4, [#allocation4]
    $region41: #{tpu_custom_call.1} parent=1 // pred_fallthru
      _
    // Predicated region
    $region42: #{tpu_custom_call.1} parent=1 // pred_check
      _
    $region43: #{tpu_custom_call.1} parent=1 // pred_check_branch
      %3562 = sbr.rel (0) target = $region45
    $region44: #{tpu_custom_call.1} parent=1 // pred_region
      %3563 = dma.done [#allocation4], 256
    $region45: #{tpu_custom_call.1} parent=1 // pred_fallthru
      _
    %3564 = vsyncpa [#allocation3], 1
    %3565 = vsyncpa [#allocation6], 1
    %3566 = vsyncpa [#allocation9], 1
    %3567 = vsyncpa [#allocation4], 1

</llo_original>
